<compile_context>
chip_gen: v7x
topology: tpu7x:2x2x1
jax: 0.10.0
libtpu: 0.0.40
codegen_flags: <defaults>
</compile_context>

<pallas_src>
import jax
import jax.numpy as jnp
from jax.experimental import pallas as pl
from jax.experimental.pallas import tpu as pltpu

SELU_ALPHA = 1.6732632423543772
SELU_LAMBDA = 1.0507009873554805
BN_EPS = 1e-5


def conv3d_im2col_kernel(x_ref, w_ref, b_ref, y_ref, sum_ref, ssq_ref, col_ref):
    """One (batch element, D-tile) per grid step.

    x_ref   : (D+2, H+2, W+2, Cin)  f32   zero-padded input slab (whole batch elem)
    w_ref   : (27*Cin, Cout)        bf16  im2col weight
    b_ref   : (1, Cout)             f32   conv bias
    y_ref   : (DT, H, W, Cout)      f32   conv output tile (unpadded channels)
    sum_ref : (1, Cout)             f32   per-step partial channel sum
    ssq_ref : (1, Cout)             f32   per-step partial channel sum-of-squares
    col_ref : (DT*H*W, 27*Cin)      bf16  VMEM scratch: im2col patch matrix
    """
    DT, H, W, COUT = y_ref.shape
    CIN = x_ref.shape[-1]
    rows = DT * H * W
    d0 = pl.multiple_of(pl.program_id(1) * DT, DT)

    # Fill the im2col scratch with the 27 shifted windows (one slice-store per
    # tap), then a single MXU matmul: (rows, 27*Cin) @ (27*Cin, Cout).
    for kd in range(3):
        for kh in range(3):
            for kw in range(3):
                k = (kd * 3 + kh) * 3 + kw
                patch = x_ref[pl.ds(d0 + kd, DT), kh:kh + H, kw:kw + W, :]
                col_ref[:, k * CIN:(k + 1) * CIN] = (
                    patch.reshape(rows, CIN).astype(col_ref.dtype))

    acc = jnp.dot(col_ref[...], w_ref[...],
                  preferred_element_type=jnp.float32)        # f32 accumulation
    acc = acc + b_ref[...]

    y_ref[...] = acc.reshape(DT, H, W, COUT).astype(y_ref.dtype)

    # Per-step partial statistics (reduced outside the kernel) so the grid can
    # stay fully "parallel" (no cross-step accumulation -> 2-TC sharding OK).
    sum_ref[...] = jnp.sum(acc, axis=0, keepdims=True)
    ssq_ref[...] = jnp.sum(acc * acc, axis=0, keepdims=True)


def bn_selu_kernel(y_ref, scale_ref, shift_ref, o_ref):
    """Elementwise z = y*scale + shift ; out = SELU(z).

    Operates on a lane-dense 2-D view (rows, H*W*Cout); scale/shift are a
    single pre-tiled (1, H*W*Cout) row, resident across grid steps.
    """
    z = y_ref[...] * scale_ref[...] + shift_ref[...]
    o_ref[...] = (SELU_LAMBDA *
                  jnp.where(z > 0, z, SELU_ALPHA * jnp.expm1(z))
                  ).astype(o_ref.dtype)


def _choose_d_tile(D, H, W, cin, cout, vmem_budget=4 << 20):
    """Largest divisor of D whose per-tile working set fits `vmem_budget`,
    preferring >= 2 tiles so the software pipeline has steps to overlap."""
    per_row = 27 * cin * 2 + cout * 4 * 3   # bf16 col + f32 acc + f32 out tile(s)
    fitting = [d for d in range(1, D + 1)
               if D % d == 0 and d * H * W * per_row <= vmem_budget]
    if not fitting:
        return 1
    multi = [d for d in fitting if D // d >= 2]
    return max(multi) if multi else max(fitting)


def _choose_row_block(R, L, vmem_budget=4 << 20):
    """Row-block for the (R, L) BN/SELU pass: divisor of R that is a multiple
    of 8 (or R itself), fits the budget, preferring >= 2 grid steps."""
    per_row = L * 4 * 4   # double-buffered f32 in + out tiles
    legal = [r for r in range(1, R + 1) if R % r == 0 and (r % 8 == 0 or r == R)]
    fitting = [r for r in legal if r * per_row <= vmem_budget] or [min(legal)]
    multi = [r for r in fitting if R // r >= 2]
    return max(multi) if multi else max(fitting)


def conv_block_forward(x_ncdhw, conv_w, conv_b, gamma, beta, eps=BN_EPS):
    """Forward pass of ConvBlock.  x_ncdhw: (N, Cin, D, H, W) float32."""
    N, Cin, D, H, W = x_ncdhw.shape
    Cout = conv_w.shape[0]

    # NCDHW -> NDHWC, zero-pad spatial dims by 1 (padding=1).
    # TODO(synk): the explicit halo pad materializes one extra input-sized copy
    # in HBM; at large volumes move halo handling (masked boundary taps /
    # manual DMA) into the kernel.
    x = jnp.transpose(x_ncdhw, (0, 2, 3, 4, 1))
    xp = jnp.pad(x, ((0, 0), (1, 1), (1, 1), (1, 1), (0, 0)))

    # (Cout, Cin, 3,3,3) -> (3,3,3,Cin,Cout) -> (27*Cin, Cout), bf16 for MXU.
    w = jnp.transpose(conv_w, (2, 3, 4, 1, 0)).reshape(27 * Cin, Cout)
    w = w.astype(jnp.bfloat16)
    b = conv_b.reshape(1, Cout).astype(jnp.float32)

    DT = _choose_d_tile(D, H, W, Cin, Cout)
    n_dblk = D // DT
    rows = DT * H * W

    conv_out, psum, pssq = pl.pallas_call(
        conv3d_im2col_kernel,
        out_shape=(
            jax.ShapeDtypeStruct((N, D, H, W, Cout), jnp.float32),
            jax.ShapeDtypeStruct((N, n_dblk, 1, Cout), jnp.float32),
            jax.ShapeDtypeStruct((N, n_dblk, 1, Cout), jnp.float32),
        ),
        grid_spec=pltpu.PrefetchScalarGridSpec(
            num_scalar_prefetch=0,
            grid=(N, n_dblk),
            in_specs=[
                # whole padded slab per batch element; D-tile sliced in-kernel
                pl.BlockSpec((None, D + 2, H + 2, W + 2, Cin),
                             lambda n, d: (n, 0, 0, 0, 0)),
                pl.BlockSpec((27 * Cin, Cout), lambda n, d: (0, 0)),
                pl.BlockSpec((1, Cout), lambda n, d: (0, 0)),
            ],
            out_specs=[
                pl.BlockSpec((None, DT, H, W, Cout),
                             lambda n, d: (n, d, 0, 0, 0)),
                pl.BlockSpec((None, None, 1, Cout), lambda n, d: (n, d, 0, 0)),
                pl.BlockSpec((None, None, 1, Cout), lambda n, d: (n, d, 0, 0)),
            ],
            scratch_shapes=[pltpu.VMEM((rows, 27 * Cin), jnp.bfloat16)],
        ),
        compiler_params=pltpu.CompilerParams(
            dimension_semantics=("parallel", "parallel"),
            vmem_limit_bytes=32 * 1024 * 1024),
    )(xp, w, b)

    # Training-mode BatchNorm3d: biased batch statistics over (N, D, H, W).
    # TODO(synk): running_mean / running_var buffer updates (training side
    # effect of nn.BatchNorm3d) are not materialized; forward output does not
    # depend on them.
    count = float(N * D * H * W)
    csum = jnp.sum(psum, axis=(0, 1, 2))
    cssq = jnp.sum(pssq, axis=(0, 1, 2))
    mean = csum / count
    var = jnp.maximum(cssq / count - mean * mean, 0.0)   # clamp cancellation
    inv = jax.lax.rsqrt(var + eps)
    g = gamma.astype(jnp.float32)
    scale = g * inv                                      # (Cout,)
    shift = beta.astype(jnp.float32) - mean * g * inv    # (Cout,)

    # Lane-dense 2-D view for the elementwise pass (free contiguous reshape).
    L = H * W * Cout
    R = N * D
    y2d = conv_out.reshape(R, L)
    scale_row = jnp.tile(scale, H * W).reshape(1, L)     # matches (h, w, c) order
    shift_row = jnp.tile(shift, H * W).reshape(1, L)

    RB = _choose_row_block(R, L)

    out2d = pl.pallas_call(
        bn_selu_kernel,
        out_shape=jax.ShapeDtypeStruct((R, L), jnp.float32),
        grid_spec=pltpu.PrefetchScalarGridSpec(
            num_scalar_prefetch=0,
            grid=(R // RB,),
            in_specs=[
                pl.BlockSpec((RB, L), lambda i: (i, 0)),
                pl.BlockSpec((1, L), lambda i: (0, 0)),
                pl.BlockSpec((1, L), lambda i: (0, 0)),
            ],
            out_specs=pl.BlockSpec((RB, L), lambda i: (i, 0)),
        ),
        compiler_params=pltpu.CompilerParams(
            dimension_semantics=("parallel",),
            vmem_limit_bytes=32 * 1024 * 1024),
    )(y2d, scale_row, shift_row)

    out = out2d.reshape(N, D, H, W, Cout)
    return jnp.transpose(out, (0, 4, 1, 2, 3))  # back to NCDHW


def reference_forward(x, conv_w, conv_b, gamma, beta, eps=BN_EPS):
    """Plain-JAX f32 reference (conv3d + training-mode BN + SELU) in NCDHW."""
    y = jax.lax.conv_general_dilated(
        x, conv_w, window_strides=(1, 1, 1), padding=((1, 1), (1, 1), (1, 1)),
        dimension_numbers=("NCDHW", "OIDHW", "NCDHW"))
    y = y + conv_b.reshape(1, -1, 1, 1, 1)
    mean = jnp.mean(y, axis=(0, 2, 3, 4), keepdims=True)
    var = jnp.mean((y - mean) ** 2, axis=(0, 2, 3, 4), keepdims=True)
    z = (y - mean) * jax.lax.rsqrt(var + eps)
    z = z * gamma.reshape(1, -1, 1, 1, 1) + beta.reshape(1, -1, 1, 1, 1)
    return SELU_LAMBDA * jnp.where(z > 0, z, SELU_ALPHA * jnp.expm1(z))


if __name__ == "__main__":
    key = jax.random.PRNGKey(0)
    N, Cin, Cout, D, H, W = 2, 4, 8, 8, 8, 8

    k1, k2, k3, k4, k5 = jax.random.split(key, 5)
    x = jax.random.normal(k1, (N, Cin, D, H, W), jnp.float32)
    conv_w = 0.1 * jax.random.normal(k2, (Cout, Cin, 3, 3, 3), jnp.float32)
    conv_b = 0.1 * jax.random.normal(k3, (Cout,), jnp.float32)
    gamma = 1.0 + 0.1 * jax.random.normal(k4, (Cout,), jnp.float32)
    beta = 0.1 * jax.random.normal(k5, (Cout,), jnp.float32)

    out = conv_block_forward(x, conv_w, conv_b, gamma, beta)
    out = jax.block_until_ready(out)

    ref = jax.block_until_ready(reference_forward(x, conv_w, conv_b, gamma, beta))
    assert out.shape == (N, Cout, D, H, W)
    # Tolerance accounts for bf16 MXU inputs (f32 accumulation) vs f32 reference.
    assert jnp.allclose(out, ref, atol=5e-2, rtol=5e-2), (
        "max abs err = " + str(float(jnp.max(jnp.abs(out - ref)))))

    print("KERNEL_OK")
</pallas_src>

<mosaic_0001>
module attributes {stable_mosaic.version = 11 : i64} {
  func.func @conv3d_im2col_kernel(%arg0: i32, %arg1: i32, %arg2: memref<1x10x10x10x4xf32, #tpu.memory_space<vmem>>, %arg3: memref<108x8xbf16, #tpu.memory_space<vmem>>, %arg4: memref<1x8xf32, #tpu.memory_space<vmem>>, %arg5: memref<1x4x8x8x8xf32, #tpu.memory_space<vmem>>, %arg6: memref<1x1x1x8xf32, #tpu.memory_space<vmem>>, %arg7: memref<1x1x1x8xf32, #tpu.memory_space<vmem>>, %arg8: memref<256x108xbf16, #tpu.memory_space<vmem>>) attributes {dimension_semantics = [#tpu.dimension_semantics<parallel>, #tpu.dimension_semantics<parallel>], iteration_bounds = array<i64: 2, 2>, scalar_prefetch = 0 : i64, scratch_operands = 1 : i64, tpu.core_type = #tpu.core_type<tc>, window_params = [{transform_indices = @transform_0, window_bounds = array<i64: 1, 10, 10, 10, 4>}, {pipeline_mode = #tpu.pipeline_mode<synchronous>, transform_indices = @transform_1, window_bounds = array<i64: 108, 8>}, {pipeline_mode = #tpu.pipeline_mode<synchronous>, transform_indices = @transform_2, window_bounds = array<i64: 1, 8>}, {transform_indices = @transform_3, window_bounds = array<i64: 1, 4, 8, 8, 8>}, {transform_indices = @transform_4, window_bounds = array<i64: 1, 1, 1, 8>}, {transform_indices = @transform_5, window_bounds = array<i64: 1, 1, 1, 8>}]} {
    %c4_i32 = arith.constant 4 : i32
    %0 = arith.muli %arg1, %c4_i32 : i32
    %1 = tpu.assume_multiple %0, 4 : i32
    %c0_i32 = arith.constant 0 : i32
    %2 = arith.addi %1, %c0_i32 : i32
    %c0 = arith.constant 0 : index
    %3 = arith.index_cast %2 : i32 to index
    %c0_0 = arith.constant 0 : index
    %c0_1 = arith.constant 0 : index
    %c0_2 = arith.constant 0 : index
    %4 = vector.load %arg2[%c0, %3, %c0_0, %c0_1, %c0_2] : memref<1x10x10x10x4xf32, #tpu.memory_space<vmem>>, vector<1x4x8x8x4xf32>
    %5 = vector.shape_cast %4 : vector<1x4x8x8x4xf32> to vector<4x8x8x4xf32>
    %6 = vector.shape_cast %5 : vector<4x8x8x4xf32> to vector<256x4xf32>
    %7 = arith.truncf %6 : vector<256x4xf32> to vector<256x4xbf16>
    %c0_3 = arith.constant 0 : index
    %c0_4 = arith.constant 0 : index
    %8 = vector.load %arg8[%c0_3, %c0_4] : memref<256x108xbf16, #tpu.memory_space<vmem>>, vector<256x4xbf16>
    tpu.vector_store %arg8[%c0_3, %c0_4], %7 {strides = array<i32>} : memref<256x108xbf16, #tpu.memory_space<vmem>>, vector<256x4xbf16>,
    %c0_i32_5 = arith.constant 0 : i32
    %9 = arith.addi %1, %c0_i32_5 : i32
    %c0_6 = arith.constant 0 : index
    %10 = arith.index_cast %9 : i32 to index
    %c0_7 = arith.constant 0 : index
    %c1 = arith.constant 1 : index
    %c0_8 = arith.constant 0 : index
    %11 = vector.load %arg2[%c0_6, %10, %c0_7, %c1, %c0_8] : memref<1x10x10x10x4xf32, #tpu.memory_space<vmem>>, vector<1x4x8x8x4xf32>
    %12 = vector.shape_cast %11 : vector<1x4x8x8x4xf32> to vector<4x8x8x4xf32>
    %13 = vector.shape_cast %12 : vector<4x8x8x4xf32> to vector<256x4xf32>
    %14 = arith.truncf %13 : vector<256x4xf32> to vector<256x4xbf16>
    %c0_9 = arith.constant 0 : index
    %c4 = arith.constant 4 : index
    %15 = vector.load %arg8[%c0_9, %c4] : memref<256x108xbf16, #tpu.memory_space<vmem>>, vector<256x4xbf16>
    tpu.vector_store %arg8[%c0_9, %c4], %14 {strides = array<i32>} : memref<256x108xbf16, #tpu.memory_space<vmem>>, vector<256x4xbf16>,
    %c0_i32_10 = arith.constant 0 : i32
    %16 = arith.addi %1, %c0_i32_10 : i32
    %c0_11 = arith.constant 0 : index
    %17 = arith.index_cast %16 : i32 to index
    %c0_12 = arith.constant 0 : index
    %c2 = arith.constant 2 : index
    %c0_13 = arith.constant 0 : index
    %18 = vector.load %arg2[%c0_11, %17, %c0_12, %c2, %c0_13] : memref<1x10x10x10x4xf32, #tpu.memory_space<vmem>>, vector<1x4x8x8x4xf32>
    %19 = vector.shape_cast %18 : vector<1x4x8x8x4xf32> to vector<4x8x8x4xf32>
    %20 = vector.shape_cast %19 : vector<4x8x8x4xf32> to vector<256x4xf32>
    %21 = arith.truncf %20 : vector<256x4xf32> to vector<256x4xbf16>
    %c0_14 = arith.constant 0 : index
    %c8 = arith.constant 8 : index
    %22 = vector.load %arg8[%c0_14, %c8] : memref<256x108xbf16, #tpu.memory_space<vmem>>, vector<256x4xbf16>
    tpu.vector_store %arg8[%c0_14, %c8], %21 {strides = array<i32>} : memref<256x108xbf16, #tpu.memory_space<vmem>>, vector<256x4xbf16>,
    %c0_i32_15 = arith.constant 0 : i32
    %23 = arith.addi %1, %c0_i32_15 : i32
    %c0_16 = arith.constant 0 : index
    %24 = arith.index_cast %23 : i32 to index
    %c1_17 = arith.constant 1 : index
    %c0_18 = arith.constant 0 : index
    %c0_19 = arith.constant 0 : index
    %25 = vector.load %arg2[%c0_16, %24, %c1_17, %c0_18, %c0_19] : memref<1x10x10x10x4xf32, #tpu.memory_space<vmem>>, vector<1x4x8x8x4xf32>
    %26 = vector.shape_cast %25 : vector<1x4x8x8x4xf32> to vector<4x8x8x4xf32>
    %27 = vector.shape_cast %26 : vector<4x8x8x4xf32> to vector<256x4xf32>
    %28 = arith.truncf %27 : vector<256x4xf32> to vector<256x4xbf16>
    %c0_20 = arith.constant 0 : index
    %c12 = arith.constant 12 : index
    %29 = vector.load %arg8[%c0_20, %c12] : memref<256x108xbf16, #tpu.memory_space<vmem>>, vector<256x4xbf16>
    tpu.vector_store %arg8[%c0_20, %c12], %28 {strides = array<i32>} : memref<256x108xbf16, #tpu.memory_space<vmem>>, vector<256x4xbf16>,
    %c0_i32_21 = arith.constant 0 : i32
    %30 = arith.addi %1, %c0_i32_21 : i32
    %c0_22 = arith.constant 0 : index
    %31 = arith.index_cast %30 : i32 to index
    %c1_23 = arith.constant 1 : index
    %c1_24 = arith.constant 1 : index
    %c0_25 = arith.constant 0 : index
    %32 = vector.load %arg2[%c0_22, %31, %c1_23, %c1_24, %c0_25] : memref<1x10x10x10x4xf32, #tpu.memory_space<vmem>>, vector<1x4x8x8x4xf32>
    %33 = vector.shape_cast %32 : vector<1x4x8x8x4xf32> to vector<4x8x8x4xf32>
    %34 = vector.shape_cast %33 : vector<4x8x8x4xf32> to vector<256x4xf32>
    %35 = arith.truncf %34 : vector<256x4xf32> to vector<256x4xbf16>
    %c0_26 = arith.constant 0 : index
    %c16 = arith.constant 16 : index
    %36 = vector.load %arg8[%c0_26, %c16] : memref<256x108xbf16, #tpu.memory_space<vmem>>, vector<256x4xbf16>
    tpu.vector_store %arg8[%c0_26, %c16], %35 {strides = array<i32>} : memref<256x108xbf16, #tpu.memory_space<vmem>>, vector<256x4xbf16>,
    %c0_i32_27 = arith.constant 0 : i32
    %37 = arith.addi %1, %c0_i32_27 : i32
    %c0_28 = arith.constant 0 : index
    %38 = arith.index_cast %37 : i32 to index
    %c1_29 = arith.constant 1 : index
    %c2_30 = arith.constant 2 : index
    %c0_31 = arith.constant 0 : index
    %39 = vector.load %arg2[%c0_28, %38, %c1_29, %c2_30, %c0_31] : memref<1x10x10x10x4xf32, #tpu.memory_space<vmem>>, vector<1x4x8x8x4xf32>
    %40 = vector.shape_cast %39 : vector<1x4x8x8x4xf32> to vector<4x8x8x4xf32>
    %41 = vector.shape_cast %40 : vector<4x8x8x4xf32> to vector<256x4xf32>
    %42 = arith.truncf %41 : vector<256x4xf32> to vector<256x4xbf16>
    %c0_32 = arith.constant 0 : index
    %c20 = arith.constant 20 : index
    %43 = vector.load %arg8[%c0_32, %c20] : memref<256x108xbf16, #tpu.memory_space<vmem>>, vector<256x4xbf16>
    tpu.vector_store %arg8[%c0_32, %c20], %42 {strides = array<i32>} : memref<256x108xbf16, #tpu.memory_space<vmem>>, vector<256x4xbf16>,
    %c0_i32_33 = arith.constant 0 : i32
    %44 = arith.addi %1, %c0_i32_33 : i32
    %c0_34 = arith.constant 0 : index
    %45 = arith.index_cast %44 : i32 to index
    %c2_35 = arith.constant 2 : index
    %c0_36 = arith.constant 0 : index
    %c0_37 = arith.constant 0 : index
    %46 = vector.load %arg2[%c0_34, %45, %c2_35, %c0_36, %c0_37] : memref<1x10x10x10x4xf32, #tpu.memory_space<vmem>>, vector<1x4x8x8x4xf32>
    %47 = vector.shape_cast %46 : vector<1x4x8x8x4xf32> to vector<4x8x8x4xf32>
    %48 = vector.shape_cast %47 : vector<4x8x8x4xf32> to vector<256x4xf32>
    %49 = arith.truncf %48 : vector<256x4xf32> to vector<256x4xbf16>
    %c0_38 = arith.constant 0 : index
    %c24 = arith.constant 24 : index
    %50 = vector.load %arg8[%c0_38, %c24] : memref<256x108xbf16, #tpu.memory_space<vmem>>, vector<256x4xbf16>
    tpu.vector_store %arg8[%c0_38, %c24], %49 {strides = array<i32>} : memref<256x108xbf16, #tpu.memory_space<vmem>>, vector<256x4xbf16>,
    %c0_i32_39 = arith.constant 0 : i32
    %51 = arith.addi %1, %c0_i32_39 : i32
    %c0_40 = arith.constant 0 : index
    %52 = arith.index_cast %51 : i32 to index
    %c2_41 = arith.constant 2 : index
    %c1_42 = arith.constant 1 : index
    %c0_43 = arith.constant 0 : index
    %53 = vector.load %arg2[%c0_40, %52, %c2_41, %c1_42, %c0_43] : memref<1x10x10x10x4xf32, #tpu.memory_space<vmem>>, vector<1x4x8x8x4xf32>
    %54 = vector.shape_cast %53 : vector<1x4x8x8x4xf32> to vector<4x8x8x4xf32>
    %55 = vector.shape_cast %54 : vector<4x8x8x4xf32> to vector<256x4xf32>
    %56 = arith.truncf %55 : vector<256x4xf32> to vector<256x4xbf16>
    %c0_44 = arith.constant 0 : index
    %c28 = arith.constant 28 : index
    %57 = vector.load %arg8[%c0_44, %c28] : memref<256x108xbf16, #tpu.memory_space<vmem>>, vector<256x4xbf16>
    tpu.vector_store %arg8[%c0_44, %c28], %56 {strides = array<i32>} : memref<256x108xbf16, #tpu.memory_space<vmem>>, vector<256x4xbf16>,
    %c0_i32_45 = arith.constant 0 : i32
    %58 = arith.addi %1, %c0_i32_45 : i32
    %c0_46 = arith.constant 0 : index
    %59 = arith.index_cast %58 : i32 to index
    %c2_47 = arith.constant 2 : index
    %c2_48 = arith.constant 2 : index
    %c0_49 = arith.constant 0 : index
    %60 = vector.load %arg2[%c0_46, %59, %c2_47, %c2_48, %c0_49] : memref<1x10x10x10x4xf32, #tpu.memory_space<vmem>>, vector<1x4x8x8x4xf32>
    %61 = vector.shape_cast %60 : vector<1x4x8x8x4xf32> to vector<4x8x8x4xf32>
    %62 = vector.shape_cast %61 : vector<4x8x8x4xf32> to vector<256x4xf32>
    %63 = arith.truncf %62 : vector<256x4xf32> to vector<256x4xbf16>
    %c0_50 = arith.constant 0 : index
    %c32 = arith.constant 32 : index
    %64 = vector.load %arg8[%c0_50, %c32] : memref<256x108xbf16, #tpu.memory_space<vmem>>, vector<256x4xbf16>
    tpu.vector_store %arg8[%c0_50, %c32], %63 {strides = array<i32>} : memref<256x108xbf16, #tpu.memory_space<vmem>>, vector<256x4xbf16>,
    %c1_i32 = arith.constant 1 : i32
    %65 = arith.addi %1, %c1_i32 : i32
    %c0_51 = arith.constant 0 : index
    %66 = arith.index_cast %65 : i32 to index
    %c0_52 = arith.constant 0 : index
    %c0_53 = arith.constant 0 : index
    %c0_54 = arith.constant 0 : index
    %67 = vector.load %arg2[%c0_51, %66, %c0_52, %c0_53, %c0_54] : memref<1x10x10x10x4xf32, #tpu.memory_space<vmem>>, vector<1x4x8x8x4xf32>
    %68 = vector.shape_cast %67 : vector<1x4x8x8x4xf32> to vector<4x8x8x4xf32>
    %69 = vector.shape_cast %68 : vector<4x8x8x4xf32> to vector<256x4xf32>
    %70 = arith.truncf %69 : vector<256x4xf32> to vector<256x4xbf16>
    %c0_55 = arith.constant 0 : index
    %c36 = arith.constant 36 : index
    %71 = vector.load %arg8[%c0_55, %c36] : memref<256x108xbf16, #tpu.memory_space<vmem>>, vector<256x4xbf16>
    tpu.vector_store %arg8[%c0_55, %c36], %70 {strides = array<i32>} : memref<256x108xbf16, #tpu.memory_space<vmem>>, vector<256x4xbf16>,
    %c1_i32_56 = arith.constant 1 : i32
    %72 = arith.addi %1, %c1_i32_56 : i32
    %c0_57 = arith.constant 0 : index
    %73 = arith.index_cast %72 : i32 to index
    %c0_58 = arith.constant 0 : index
    %c1_59 = arith.constant 1 : index
    %c0_60 = arith.constant 0 : index
    %74 = vector.load %arg2[%c0_57, %73, %c0_58, %c1_59, %c0_60] : memref<1x10x10x10x4xf32, #tpu.memory_space<vmem>>, vector<1x4x8x8x4xf32>
    %75 = vector.shape_cast %74 : vector<1x4x8x8x4xf32> to vector<4x8x8x4xf32>
    %76 = vector.shape_cast %75 : vector<4x8x8x4xf32> to vector<256x4xf32>
    %77 = arith.truncf %76 : vector<256x4xf32> to vector<256x4xbf16>
    %c0_61 = arith.constant 0 : index
    %c40 = arith.constant 40 : index
    %78 = vector.load %arg8[%c0_61, %c40] : memref<256x108xbf16, #tpu.memory_space<vmem>>, vector<256x4xbf16>
    tpu.vector_store %arg8[%c0_61, %c40], %77 {strides = array<i32>} : memref<256x108xbf16, #tpu.memory_space<vmem>>, vector<256x4xbf16>,
    %c1_i32_62 = arith.constant 1 : i32
    %79 = arith.addi %1, %c1_i32_62 : i32
    %c0_63 = arith.constant 0 : index
    %80 = arith.index_cast %79 : i32 to index
    %c0_64 = arith.constant 0 : index
    %c2_65 = arith.constant 2 : index
    %c0_66 = arith.constant 0 : index
    %81 = vector.load %arg2[%c0_63, %80, %c0_64, %c2_65, %c0_66] : memref<1x10x10x10x4xf32, #tpu.memory_space<vmem>>, vector<1x4x8x8x4xf32>
    %82 = vector.shape_cast %81 : vector<1x4x8x8x4xf32> to vector<4x8x8x4xf32>
    %83 = vector.shape_cast %82 : vector<4x8x8x4xf32> to vector<256x4xf32>
    %84 = arith.truncf %83 : vector<256x4xf32> to vector<256x4xbf16>
    %c0_67 = arith.constant 0 : index
    %c44 = arith.constant 44 : index
    %85 = vector.load %arg8[%c0_67, %c44] : memref<256x108xbf16, #tpu.memory_space<vmem>>, vector<256x4xbf16>
    tpu.vector_store %arg8[%c0_67, %c44], %84 {strides = array<i32>} : memref<256x108xbf16, #tpu.memory_space<vmem>>, vector<256x4xbf16>,
    %c1_i32_68 = arith.constant 1 : i32
    %86 = arith.addi %1, %c1_i32_68 : i32
    %c0_69 = arith.constant 0 : index
    %87 = arith.index_cast %86 : i32 to index
    %c1_70 = arith.constant 1 : index
    %c0_71 = arith.constant 0 : index
    %c0_72 = arith.constant 0 : index
    %88 = vector.load %arg2[%c0_69, %87, %c1_70, %c0_71, %c0_72] : memref<1x10x10x10x4xf32, #tpu.memory_space<vmem>>, vector<1x4x8x8x4xf32>
    %89 = vector.shape_cast %88 : vector<1x4x8x8x4xf32> to vector<4x8x8x4xf32>
    %90 = vector.shape_cast %89 : vector<4x8x8x4xf32> to vector<256x4xf32>
    %91 = arith.truncf %90 : vector<256x4xf32> to vector<256x4xbf16>
    %c0_73 = arith.constant 0 : index
    %c48 = arith.constant 48 : index
    %92 = vector.load %arg8[%c0_73, %c48] : memref<256x108xbf16, #tpu.memory_space<vmem>>, vector<256x4xbf16>
    tpu.vector_store %arg8[%c0_73, %c48], %91 {strides = array<i32>} : memref<256x108xbf16, #tpu.memory_space<vmem>>, vector<256x4xbf16>,
    %c1_i32_74 = arith.constant 1 : i32
    %93 = arith.addi %1, %c1_i32_74 : i32
    %c0_75 = arith.constant 0 : index
    %94 = arith.index_cast %93 : i32 to index
    %c1_76 = arith.constant 1 : index
    %c1_77 = arith.constant 1 : index
    %c0_78 = arith.constant 0 : index
    %95 = vector.load %arg2[%c0_75, %94, %c1_76, %c1_77, %c0_78] : memref<1x10x10x10x4xf32, #tpu.memory_space<vmem>>, vector<1x4x8x8x4xf32>
    %96 = vector.shape_cast %95 : vector<1x4x8x8x4xf32> to vector<4x8x8x4xf32>
    %97 = vector.shape_cast %96 : vector<4x8x8x4xf32> to vector<256x4xf32>
    %98 = arith.truncf %97 : vector<256x4xf32> to vector<256x4xbf16>
    %c0_79 = arith.constant 0 : index
    %c52 = arith.constant 52 : index
    %99 = vector.load %arg8[%c0_79, %c52] : memref<256x108xbf16, #tpu.memory_space<vmem>>, vector<256x4xbf16>
    tpu.vector_store %arg8[%c0_79, %c52], %98 {strides = array<i32>} : memref<256x108xbf16, #tpu.memory_space<vmem>>, vector<256x4xbf16>,
    %c1_i32_80 = arith.constant 1 : i32
    %100 = arith.addi %1, %c1_i32_80 : i32
    %c0_81 = arith.constant 0 : index
    %101 = arith.index_cast %100 : i32 to index
    %c1_82 = arith.constant 1 : index
    %c2_83 = arith.constant 2 : index
    %c0_84 = arith.constant 0 : index
    %102 = vector.load %arg2[%c0_81, %101, %c1_82, %c2_83, %c0_84] : memref<1x10x10x10x4xf32, #tpu.memory_space<vmem>>, vector<1x4x8x8x4xf32>
    %103 = vector.shape_cast %102 : vector<1x4x8x8x4xf32> to vector<4x8x8x4xf32>
    %104 = vector.shape_cast %103 : vector<4x8x8x4xf32> to vector<256x4xf32>
    %105 = arith.truncf %104 : vector<256x4xf32> to vector<256x4xbf16>
    %c0_85 = arith.constant 0 : index
    %c56 = arith.constant 56 : index
    %106 = vector.load %arg8[%c0_85, %c56] : memref<256x108xbf16, #tpu.memory_space<vmem>>, vector<256x4xbf16>
    tpu.vector_store %arg8[%c0_85, %c56], %105 {strides = array<i32>} : memref<256x108xbf16, #tpu.memory_space<vmem>>, vector<256x4xbf16>,
    %c1_i32_86 = arith.constant 1 : i32
    %107 = arith.addi %1, %c1_i32_86 : i32
    %c0_87 = arith.constant 0 : index
    %108 = arith.index_cast %107 : i32 to index
    %c2_88 = arith.constant 2 : index
    %c0_89 = arith.constant 0 : index
    %c0_90 = arith.constant 0 : index
    %109 = vector.load %arg2[%c0_87, %108, %c2_88, %c0_89, %c0_90] : memref<1x10x10x10x4xf32, #tpu.memory_space<vmem>>, vector<1x4x8x8x4xf32>
    %110 = vector.shape_cast %109 : vector<1x4x8x8x4xf32> to vector<4x8x8x4xf32>
    %111 = vector.shape_cast %110 : vector<4x8x8x4xf32> to vector<256x4xf32>
    %112 = arith.truncf %111 : vector<256x4xf32> to vector<256x4xbf16>
    %c0_91 = arith.constant 0 : index
    %c60 = arith.constant 60 : index
    %113 = vector.load %arg8[%c0_91, %c60] : memref<256x108xbf16, #tpu.memory_space<vmem>>, vector<256x4xbf16>
    tpu.vector_store %arg8[%c0_91, %c60], %112 {strides = array<i32>} : memref<256x108xbf16, #tpu.memory_space<vmem>>, vector<256x4xbf16>,
    %c1_i32_92 = arith.constant 1 : i32
    %114 = arith.addi %1, %c1_i32_92 : i32
    %c0_93 = arith.constant 0 : index
    %115 = arith.index_cast %114 : i32 to index
    %c2_94 = arith.constant 2 : index
    %c1_95 = arith.constant 1 : index
    %c0_96 = arith.constant 0 : index
    %116 = vector.load %arg2[%c0_93, %115, %c2_94, %c1_95, %c0_96] : memref<1x10x10x10x4xf32, #tpu.memory_space<vmem>>, vector<1x4x8x8x4xf32>
    %117 = vector.shape_cast %116 : vector<1x4x8x8x4xf32> to vector<4x8x8x4xf32>
    %118 = vector.shape_cast %117 : vector<4x8x8x4xf32> to vector<256x4xf32>
    %119 = arith.truncf %118 : vector<256x4xf32> to vector<256x4xbf16>
    %c0_97 = arith.constant 0 : index
    %c64 = arith.constant 64 : index
    %120 = vector.load %arg8[%c0_97, %c64] : memref<256x108xbf16, #tpu.memory_space<vmem>>, vector<256x4xbf16>
    tpu.vector_store %arg8[%c0_97, %c64], %119 {strides = array<i32>} : memref<256x108xbf16, #tpu.memory_space<vmem>>, vector<256x4xbf16>,
    %c1_i32_98 = arith.constant 1 : i32
    %121 = arith.addi %1, %c1_i32_98 : i32
    %c0_99 = arith.constant 0 : index
    %122 = arith.index_cast %121 : i32 to index
    %c2_100 = arith.constant 2 : index
    %c2_101 = arith.constant 2 : index
    %c0_102 = arith.constant 0 : index
    %123 = vector.load %arg2[%c0_99, %122, %c2_100, %c2_101, %c0_102] : memref<1x10x10x10x4xf32, #tpu.memory_space<vmem>>, vector<1x4x8x8x4xf32>
    %124 = vector.shape_cast %123 : vector<1x4x8x8x4xf32> to vector<4x8x8x4xf32>
    %125 = vector.shape_cast %124 : vector<4x8x8x4xf32> to vector<256x4xf32>
    %126 = arith.truncf %125 : vector<256x4xf32> to vector<256x4xbf16>
    %c0_103 = arith.constant 0 : index
    %c68 = arith.constant 68 : index
    %127 = vector.load %arg8[%c0_103, %c68] : memref<256x108xbf16, #tpu.memory_space<vmem>>, vector<256x4xbf16>
    tpu.vector_store %arg8[%c0_103, %c68], %126 {strides = array<i32>} : memref<256x108xbf16, #tpu.memory_space<vmem>>, vector<256x4xbf16>,
    %c2_i32 = arith.constant 2 : i32
    %128 = arith.addi %1, %c2_i32 : i32
    %c0_104 = arith.constant 0 : index
    %129 = arith.index_cast %128 : i32 to index
    %c0_105 = arith.constant 0 : index
    %c0_106 = arith.constant 0 : index
    %c0_107 = arith.constant 0 : index
    %130 = vector.load %arg2[%c0_104, %129, %c0_105, %c0_106, %c0_107] : memref<1x10x10x10x4xf32, #tpu.memory_space<vmem>>, vector<1x4x8x8x4xf32>
    %131 = vector.shape_cast %130 : vector<1x4x8x8x4xf32> to vector<4x8x8x4xf32>
    %132 = vector.shape_cast %131 : vector<4x8x8x4xf32> to vector<256x4xf32>
    %133 = arith.truncf %132 : vector<256x4xf32> to vector<256x4xbf16>
    %c0_108 = arith.constant 0 : index
    %c72 = arith.constant 72 : index
    %134 = vector.load %arg8[%c0_108, %c72] : memref<256x108xbf16, #tpu.memory_space<vmem>>, vector<256x4xbf16>
    tpu.vector_store %arg8[%c0_108, %c72], %133 {strides = array<i32>} : memref<256x108xbf16, #tpu.memory_space<vmem>>, vector<256x4xbf16>,
    %c2_i32_109 = arith.constant 2 : i32
    %135 = arith.addi %1, %c2_i32_109 : i32
    %c0_110 = arith.constant 0 : index
    %136 = arith.index_cast %135 : i32 to index
    %c0_111 = arith.constant 0 : index
    %c1_112 = arith.constant 1 : index
    %c0_113 = arith.constant 0 : index
    %137 = vector.load %arg2[%c0_110, %136, %c0_111, %c1_112, %c0_113] : memref<1x10x10x10x4xf32, #tpu.memory_space<vmem>>, vector<1x4x8x8x4xf32>
    %138 = vector.shape_cast %137 : vector<1x4x8x8x4xf32> to vector<4x8x8x4xf32>
    %139 = vector.shape_cast %138 : vector<4x8x8x4xf32> to vector<256x4xf32>
    %140 = arith.truncf %139 : vector<256x4xf32> to vector<256x4xbf16>
    %c0_114 = arith.constant 0 : index
    %c76 = arith.constant 76 : index
    %141 = vector.load %arg8[%c0_114, %c76] : memref<256x108xbf16, #tpu.memory_space<vmem>>, vector<256x4xbf16>
    tpu.vector_store %arg8[%c0_114, %c76], %140 {strides = array<i32>} : memref<256x108xbf16, #tpu.memory_space<vmem>>, vector<256x4xbf16>,
    %c2_i32_115 = arith.constant 2 : i32
    %142 = arith.addi %1, %c2_i32_115 : i32
    %c0_116 = arith.constant 0 : index
    %143 = arith.index_cast %142 : i32 to index
    %c0_117 = arith.constant 0 : index
    %c2_118 = arith.constant 2 : index
    %c0_119 = arith.constant 0 : index
    %144 = vector.load %arg2[%c0_116, %143, %c0_117, %c2_118, %c0_119] : memref<1x10x10x10x4xf32, #tpu.memory_space<vmem>>, vector<1x4x8x8x4xf32>
    %145 = vector.shape_cast %144 : vector<1x4x8x8x4xf32> to vector<4x8x8x4xf32>
    %146 = vector.shape_cast %145 : vector<4x8x8x4xf32> to vector<256x4xf32>
    %147 = arith.truncf %146 : vector<256x4xf32> to vector<256x4xbf16>
    %c0_120 = arith.constant 0 : index
    %c80 = arith.constant 80 : index
    %148 = vector.load %arg8[%c0_120, %c80] : memref<256x108xbf16, #tpu.memory_space<vmem>>, vector<256x4xbf16>
    tpu.vector_store %arg8[%c0_120, %c80], %147 {strides = array<i32>} : memref<256x108xbf16, #tpu.memory_space<vmem>>, vector<256x4xbf16>,
    %c2_i32_121 = arith.constant 2 : i32
    %149 = arith.addi %1, %c2_i32_121 : i32
    %c0_122 = arith.constant 0 : index
    %150 = arith.index_cast %149 : i32 to index
    %c1_123 = arith.constant 1 : index
    %c0_124 = arith.constant 0 : index
    %c0_125 = arith.constant 0 : index
    %151 = vector.load %arg2[%c0_122, %150, %c1_123, %c0_124, %c0_125] : memref<1x10x10x10x4xf32, #tpu.memory_space<vmem>>, vector<1x4x8x8x4xf32>
    %152 = vector.shape_cast %151 : vector<1x4x8x8x4xf32> to vector<4x8x8x4xf32>
    %153 = vector.shape_cast %152 : vector<4x8x8x4xf32> to vector<256x4xf32>
    %154 = arith.truncf %153 : vector<256x4xf32> to vector<256x4xbf16>
    %c0_126 = arith.constant 0 : index
    %c84 = arith.constant 84 : index
    %155 = vector.load %arg8[%c0_126, %c84] : memref<256x108xbf16, #tpu.memory_space<vmem>>, vector<256x4xbf16>
    tpu.vector_store %arg8[%c0_126, %c84], %154 {strides = array<i32>} : memref<256x108xbf16, #tpu.memory_space<vmem>>, vector<256x4xbf16>,
    %c2_i32_127 = arith.constant 2 : i32
    %156 = arith.addi %1, %c2_i32_127 : i32
    %c0_128 = arith.constant 0 : index
    %157 = arith.index_cast %156 : i32 to index
    %c1_129 = arith.constant 1 : index
    %c1_130 = arith.constant 1 : index
    %c0_131 = arith.constant 0 : index
    %158 = vector.load %arg2[%c0_128, %157, %c1_129, %c1_130, %c0_131] : memref<1x10x10x10x4xf32, #tpu.memory_space<vmem>>, vector<1x4x8x8x4xf32>
    %159 = vector.shape_cast %158 : vector<1x4x8x8x4xf32> to vector<4x8x8x4xf32>
    %160 = vector.shape_cast %159 : vector<4x8x8x4xf32> to vector<256x4xf32>
    %161 = arith.truncf %160 : vector<256x4xf32> to vector<256x4xbf16>
    %c0_132 = arith.constant 0 : index
    %c88 = arith.constant 88 : index
    %162 = vector.load %arg8[%c0_132, %c88] : memref<256x108xbf16, #tpu.memory_space<vmem>>, vector<256x4xbf16>
    tpu.vector_store %arg8[%c0_132, %c88], %161 {strides = array<i32>} : memref<256x108xbf16, #tpu.memory_space<vmem>>, vector<256x4xbf16>,
    %c2_i32_133 = arith.constant 2 : i32
    %163 = arith.addi %1, %c2_i32_133 : i32
    %c0_134 = arith.constant 0 : index
    %164 = arith.index_cast %163 : i32 to index
    %c1_135 = arith.constant 1 : index
    %c2_136 = arith.constant 2 : index
    %c0_137 = arith.constant 0 : index
    %165 = vector.load %arg2[%c0_134, %164, %c1_135, %c2_136, %c0_137] : memref<1x10x10x10x4xf32, #tpu.memory_space<vmem>>, vector<1x4x8x8x4xf32>
    %166 = vector.shape_cast %165 : vector<1x4x8x8x4xf32> to vector<4x8x8x4xf32>
    %167 = vector.shape_cast %166 : vector<4x8x8x4xf32> to vector<256x4xf32>
    %168 = arith.truncf %167 : vector<256x4xf32> to vector<256x4xbf16>
    %c0_138 = arith.constant 0 : index
    %c92 = arith.constant 92 : index
    %169 = vector.load %arg8[%c0_138, %c92] : memref<256x108xbf16, #tpu.memory_space<vmem>>, vector<256x4xbf16>
    tpu.vector_store %arg8[%c0_138, %c92], %168 {strides = array<i32>} : memref<256x108xbf16, #tpu.memory_space<vmem>>, vector<256x4xbf16>,
    %c2_i32_139 = arith.constant 2 : i32
    %170 = arith.addi %1, %c2_i32_139 : i32
    %c0_140 = arith.constant 0 : index
    %171 = arith.index_cast %170 : i32 to index
    %c2_141 = arith.constant 2 : index
    %c0_142 = arith.constant 0 : index
    %c0_143 = arith.constant 0 : index
    %172 = vector.load %arg2[%c0_140, %171, %c2_141, %c0_142, %c0_143] : memref<1x10x10x10x4xf32, #tpu.memory_space<vmem>>, vector<1x4x8x8x4xf32>
    %173 = vector.shape_cast %172 : vector<1x4x8x8x4xf32> to vector<4x8x8x4xf32>
    %174 = vector.shape_cast %173 : vector<4x8x8x4xf32> to vector<256x4xf32>
    %175 = arith.truncf %174 : vector<256x4xf32> to vector<256x4xbf16>
    %c0_144 = arith.constant 0 : index
    %c96 = arith.constant 96 : index
    %176 = vector.load %arg8[%c0_144, %c96] : memref<256x108xbf16, #tpu.memory_space<vmem>>, vector<256x4xbf16>
    tpu.vector_store %arg8[%c0_144, %c96], %175 {strides = array<i32>} : memref<256x108xbf16, #tpu.memory_space<vmem>>, vector<256x4xbf16>,
    %c2_i32_145 = arith.constant 2 : i32
    %177 = arith.addi %1, %c2_i32_145 : i32
    %c0_146 = arith.constant 0 : index
    %178 = arith.index_cast %177 : i32 to index
    %c2_147 = arith.constant 2 : index
    %c1_148 = arith.constant 1 : index
    %c0_149 = arith.constant 0 : index
    %179 = vector.load %arg2[%c0_146, %178, %c2_147, %c1_148, %c0_149] : memref<1x10x10x10x4xf32, #tpu.memory_space<vmem>>, vector<1x4x8x8x4xf32>
    %180 = vector.shape_cast %179 : vector<1x4x8x8x4xf32> to vector<4x8x8x4xf32>
    %181 = vector.shape_cast %180 : vector<4x8x8x4xf32> to vector<256x4xf32>
    %182 = arith.truncf %181 : vector<256x4xf32> to vector<256x4xbf16>
    %c0_150 = arith.constant 0 : index
    %c100 = arith.constant 100 : index
    %183 = vector.load %arg8[%c0_150, %c100] : memref<256x108xbf16, #tpu.memory_space<vmem>>, vector<256x4xbf16>
    tpu.vector_store %arg8[%c0_150, %c100], %182 {strides = array<i32>} : memref<256x108xbf16, #tpu.memory_space<vmem>>, vector<256x4xbf16>,
    %c2_i32_151 = arith.constant 2 : i32
    %184 = arith.addi %1, %c2_i32_151 : i32
    %c0_152 = arith.constant 0 : index
    %185 = arith.index_cast %184 : i32 to index
    %c2_153 = arith.constant 2 : index
    %c2_154 = arith.constant 2 : index
    %c0_155 = arith.constant 0 : index
    %186 = vector.load %arg2[%c0_152, %185, %c2_153, %c2_154, %c0_155] : memref<1x10x10x10x4xf32, #tpu.memory_space<vmem>>, vector<1x4x8x8x4xf32>
    %187 = vector.shape_cast %186 : vector<1x4x8x8x4xf32> to vector<4x8x8x4xf32>
    %188 = vector.shape_cast %187 : vector<4x8x8x4xf32> to vector<256x4xf32>
    %189 = arith.truncf %188 : vector<256x4xf32> to vector<256x4xbf16>
    %c0_156 = arith.constant 0 : index
    %c104 = arith.constant 104 : index
    %190 = vector.load %arg8[%c0_156, %c104] : memref<256x108xbf16, #tpu.memory_space<vmem>>, vector<256x4xbf16>
    tpu.vector_store %arg8[%c0_156, %c104], %189 {strides = array<i32>} : memref<256x108xbf16, #tpu.memory_space<vmem>>, vector<256x4xbf16>,
    %c0_157 = arith.constant 0 : index
    %c0_158 = arith.constant 0 : index
    %191 = vector.load %arg8[%c0_157, %c0_158] : memref<256x108xbf16, #tpu.memory_space<vmem>>, vector<256x108xbf16>
    %c0_159 = arith.constant 0 : index
    %c0_160 = arith.constant 0 : index
    %192 = vector.load %arg3[%c0_159, %c0_160] : memref<108x8xbf16, #tpu.memory_space<vmem>>, vector<108x8xbf16>
    %cst = arith.constant dense<0.000000e+00> : vector<256x8xf32>
    %193 = tpu.matmul %191, %192, %cst {dimension_numbers = #tpu.dot_dimension_numbers<[1], [0], [0], [1], [0, 0, 1, 1], [], []>} : vector<256x108xbf16>, vector<108x8xbf16>, vector<256x8xf32> -> vector<256x8xf32>
    %c0_161 = arith.constant 0 : index
    %c0_162 = arith.constant 0 : index
    %194 = vector.load %arg4[%c0_161, %c0_162] : memref<1x8xf32, #tpu.memory_space<vmem>>, vector<1x8xf32>
    %195 = vector.broadcast %194 : vector<1x8xf32> to vector<256x8xf32>
    %196 = arith.addf %193, %195 : vector<256x8xf32>
    %197 = vector.shape_cast %196 : vector<256x8xf32> to vector<4x8x8x8xf32>
    %c0_163 = arith.constant 0 : index
    %c0_164 = arith.constant 0 : index
    %c0_165 = arith.constant 0 : index
    %c0_166 = arith.constant 0 : index
    %c0_167 = arith.constant 0 : index
    %198 = vector.load %arg5[%c0_163, %c0_164, %c0_165, %c0_166, %c0_167] : memref<1x4x8x8x8xf32, #tpu.memory_space<vmem>>, vector<1x4x8x8x8xf32>
    %199 = vector.shape_cast %198 : vector<1x4x8x8x8xf32> to vector<4x8x8x8xf32>
    %200 = vector.shape_cast %197 : vector<4x8x8x8xf32> to vector<1x4x8x8x8xf32>
    tpu.vector_store %arg5[%c0_163, %c0_164, %c0_165, %c0_166, %c0_167], %200 {strides = array<i32>} : memref<1x4x8x8x8xf32, #tpu.memory_space<vmem>>, vector<1x4x8x8x8xf32>,
    %cst_168 = arith.constant dense<0.000000e+00> : vector<8xf32>
    %201 = vector.multi_reduction <add>, %196, %cst_168 [0] : vector<256x8xf32> to vector<8xf32>
    %202 = vector.shape_cast %201 : vector<8xf32> to vector<1x8xf32>
    %c0_169 = arith.constant 0 : index
    %c0_170 = arith.constant 0 : index
    %c0_171 = arith.constant 0 : index
    %c0_172 = arith.constant 0 : index
    %203 = vector.load %arg6[%c0_169, %c0_170, %c0_171, %c0_172] : memref<1x1x1x8xf32, #tpu.memory_space<vmem>>, vector<1x1x1x8xf32>
    %204 = vector.shape_cast %203 : vector<1x1x1x8xf32> to vector<1x8xf32>
    %205 = vector.shape_cast %202 : vector<1x8xf32> to vector<1x1x1x8xf32>
    tpu.vector_store %arg6[%c0_169, %c0_170, %c0_171, %c0_172], %205 {strides = array<i32>} : memref<1x1x1x8xf32, #tpu.memory_space<vmem>>, vector<1x1x1x8xf32>,
    %206 = arith.mulf %196, %196 : vector<256x8xf32>
    %cst_173 = arith.constant dense<0.000000e+00> : vector<8xf32>
    %207 = vector.multi_reduction <add>, %206, %cst_173 [0] : vector<256x8xf32> to vector<8xf32>
    %208 = vector.shape_cast %207 : vector<8xf32> to vector<1x8xf32>
    %c0_174 = arith.constant 0 : index
    %c0_175 = arith.constant 0 : index
    %c0_176 = arith.constant 0 : index
    %c0_177 = arith.constant 0 : index
    %209 = vector.load %arg7[%c0_174, %c0_175, %c0_176, %c0_177] : memref<1x1x1x8xf32, #tpu.memory_space<vmem>>, vector<1x1x1x8xf32>
    %210 = vector.shape_cast %209 : vector<1x1x1x8xf32> to vector<1x8xf32>
    %211 = vector.shape_cast %208 : vector<1x8xf32> to vector<1x1x1x8xf32>
    tpu.vector_store %arg7[%c0_174, %c0_175, %c0_176, %c0_177], %211 {strides = array<i32>} : memref<1x1x1x8xf32, #tpu.memory_space<vmem>>, vector<1x1x1x8xf32>,
    return
  }
  func.func @transform_0(%arg0: i32, %arg1: i32) -> (i32, i32, i32, i32, i32) {
    %c0_i32 = arith.constant 0 : i32
    %c0_i32_0 = arith.constant 0 : i32
    %c0_i32_1 = arith.constant 0 : i32
    %c0_i32_2 = arith.constant 0 : i32
    %c0_i32_3 = arith.constant 0 : i32
    return %arg0, %c0_i32, %c0_i32_0, %c0_i32_1, %c0_i32_2 : i32, i32, i32, i32, i32
  }
  func.func @transform_1(%arg0: i32, %arg1: i32) -> (i32, i32) {
    %c0_i32 = arith.constant 0 : i32
    %c0_i32_0 = arith.constant 0 : i32
    %c0_i32_1 = arith.constant 0 : i32
    return %c0_i32, %c0_i32_0 : i32, i32
  }
  func.func @transform_2(%arg0: i32, %arg1: i32) -> (i32, i32) {
    %c0_i32 = arith.constant 0 : i32
    %c0_i32_0 = arith.constant 0 : i32
    %c0_i32_1 = arith.constant 0 : i32
    return %c0_i32, %c0_i32_0 : i32, i32
  }
  func.func @transform_3(%arg0: i32, %arg1: i32) -> (i32, i32, i32, i32, i32) {
    %c0_i32 = arith.constant 0 : i32
    %c0_i32_0 = arith.constant 0 : i32
    %c0_i32_1 = arith.constant 0 : i32
    %c0_i32_2 = arith.constant 0 : i32
    return %arg0, %arg1, %c0_i32, %c0_i32_0, %c0_i32_1 : i32, i32, i32, i32, i32
  }
  func.func @transform_4(%arg0: i32, %arg1: i32) -> (i32, i32, i32, i32) {
    %c0_i32 = arith.constant 0 : i32
    %c0_i32_0 = arith.constant 0 : i32
    %c0_i32_1 = arith.constant 0 : i32
    return %arg0, %arg1, %c0_i32, %c0_i32_0 : i32, i32, i32, i32
  }
  func.func @transform_5(%arg0: i32, %arg1: i32) -> (i32, i32, i32, i32) {
    %c0_i32 = arith.constant 0 : i32
    %c0_i32_0 = arith.constant 0 : i32
    %c0_i32_1 = arith.constant 0 : i32
    return %arg0, %arg1, %c0_i32, %c0_i32_0 : i32, i32, i32, i32
  }
}

</mosaic_0001>

<llo_original>
// kernel: tpu_custom_call.1
$region0: #{tpu_custom_call.1}
  #allocation0 [shape = 'u32[]', space=smem, size = 0x4, offset = 0x4, fixed_abs, tag = 'smem constant byte address 0x4 - core index']
  #allocation1 [shape = 'u32[144,128]{1,0:T(1,128)}', space=vmem, size = 0x12000, scoped, tag = 'internal scratch']
  #allocation2 [shape = 'bf16[256,108]{1,0:T(16,128)(2,1)}', space=vmem, size = 0x10000, scoped, tag = 'scratch operand']
  %s0 = inlined_call_operand.vmem [shape: f32[2,10,10,10,4], index: 0, kind: input, shape index: {}]
  %s1 = inlined_call_operand.vmem [shape: bf16[108,8], index: 1, kind: input, shape index: {}]
  %s2 = inlined_call_operand.vmem [shape: f32[1,8], index: 2, kind: input, shape index: {}]
  %s3 = inlined_call_operand.hbm [shape: f32[2,8,8,8,8], index: 3, kind: output, shape index: {0}]
  %s4 = inlined_call_operand.hbm [shape: f32[2,2,1,8], index: 4, kind: output, shape index: {1}]
  %s5 = inlined_call_operand.hbm [shape: f32[2,2,1,8], index: 5, kind: output, shape index: {2}]
  %6 = xla_tuple %s3, %s4, %s5
  %s7 = sld [smem:[#allocation0]]
  $region61: #{tpu_custom_call.1} parent=0
    _
  %s9 = ssub.s32 1, %s7
  %s10 = scalar_select 0, %s9, %s7
  $region1: #{tpu_custom_call.1} parent=0
    #allocation3 [shape = 'u8[262144]{0}', space=vmem, size = 0x40000, scoped, tag = 'output window, operand 0']
    #allocation4 [shape = 's32[2]{0}', space=sflag, size = 0x8, scoped, tag = 'scoped memory for tpu_custom_call.1']
    #allocation5 [shape = 'u8[1024]{0}', space=vmem, size = 0x400, scoped, tag = 'output window, operand 1']
    #allocation6 [shape = 's32[2]{0}', space=sflag, size = 0x8, scoped, tag = 'scoped memory for tpu_custom_call.1']
    #allocation7 [shape = 'u8[1024]{0}', space=vmem, size = 0x400, scoped, tag = 'output window, operand 2']
    %11 = vsyncpa [#allocation4], 0
    %s12 = scalar_lea.sflag [#allocation4], 1
    %13 = vsyncpa %s12, 0
    %14 = vsyncpa [#allocation6], 0
    %s15 = scalar_lea.sflag [#allocation6], 1
    %16 = vsyncpa %s15, 0
    loop: start=0, step=1, limit=6
    $region2: #{tpu_custom_call.1} parent=1 // loop_pre_header
      _
    $region3: #{tpu_custom_call.1} parent=1 // loop_header
      %s18 = sphi 0, %s22
      %p19 = scmp.ge.s32.totalorder %s18, 6
      %s25 = sphi 0, %s37
      %s26 = sphi 0, %s33
      %s27 = sphi 0, %s25
      %s28 = sphi 0, %s26
      %s29 = sphi 0, %s27
      %s30 = sphi 0, %s28
      %s40 = sphi 0, %s42
      %s43 = sphi 0, %s40
      %s44 = sphi 0, %s43
      %s60 = sphi 0, %s44
      %s64 = sphi 0, %s64
      %s66 = sphi 0, %s64
      %s67 = sphi 0, %s66
      %s81 = sphi 0, %s67
      %s85 = sphi 0, %s85
      %s87 = sphi 0, %s85
      %s88 = sphi 0, %s87
      %s102 = sphi 0, %s88
      %s110 = sphi 0, %s112
      %s113 = sphi 0, %s110
      %s114 = sphi 0, %s113
      %s130 = sphi 0, %s114
      %s138 = sphi 0, %s140
      %s141 = sphi 0, %s138
      %s142 = sphi 0, %s141
      %s158 = sphi 0, %s142
      %s166 = sphi 0, %s168
      %s169 = sphi 0, %s166
      %s170 = sphi 0, %s169
      %s186 = sphi 0, %s170
    $region4: #{tpu_custom_call.1} parent=1 // loop_header_branch
      %21 = sbr.rel (%p19) target = $region8
    $region5: #{tpu_custom_call.1} parent=1 // loop_body
      %s23 = ssub.s32 %s18, 1
      %s24 = ssub.s32 %s18, 2
      %s31 = sadd.s32 1, %s26
      %p32 = scmp.ge.s32.totalorder %s31, 2
      %s33 = scalar_select %p32, 0, %s31
      %s34 = sadd.s32 1, %s25
      %s35 = scalar_select %p32, %s34, %s25
      %p36 = scmp.ge.s32.totalorder %s35, 2
      %s37 = scalar_select %p36, 0, %s35
      %s38 = ssub.s32 %s25, %s37
      %p39 = scmp.eq.s32.totalorder %s38, 0
      %s41 = sadd.s32 %s40, 1
      %s42 = scalar_select %p39, %s40, %s41
      %p45 = pneg %p39
      %p46 = scmp.eq.s32.totalorder %s18, 3
      %p47 = por %p45, %p46
      %p48 = scmp.ne.s32.totalorder %s40, %s43
      %p49 = scmp.eq.s32.totalorder %s18, 0
      %p50 = por %p48, %p49
      %p51 = scmp.ne.s32.totalorder %s40, %s43
      %p52 = scmp.eq.s32.totalorder %s23, 3
      %p53 = por %p51, %p52
      %p54 = scmp.ne.s32.totalorder %s43, %s44
      %p55 = scmp.eq.s32.totalorder %s23, 0
      %p56 = por %p54, %p55
      %p57 = scmp.ne.s32.totalorder %s43, %s44
      %p58 = scmp.eq.s32.totalorder %s24, 3
      %p59 = por %p57, %p58
      %p61 = scmp.ne.s32.totalorder %s44, %s60
      %p62 = scmp.eq.s32.totalorder %s24, 0
      %p63 = por %p61, %p62
      %s65 = sadd.s32 %s64, 1
      %p68 = scmp.eq.s32.totalorder %s18, 3
      %p69 = scmp.ne.s32.totalorder %s64, %s66
      %p70 = scmp.eq.s32.totalorder %s18, 0
      %p71 = por %p69, %p70
      %p72 = scmp.ne.s32.totalorder %s64, %s66
      %p73 = scmp.eq.s32.totalorder %s23, 3
      %p74 = por %p72, %p73
      %p75 = scmp.ne.s32.totalorder %s66, %s67
      %p76 = scmp.eq.s32.totalorder %s23, 0
      %p77 = por %p75, %p76
      %p78 = scmp.ne.s32.totalorder %s66, %s67
      %p79 = scmp.eq.s32.totalorder %s24, 3
      %p80 = por %p78, %p79
      %p82 = scmp.ne.s32.totalorder %s67, %s81
      %p83 = scmp.eq.s32.totalorder %s24, 0
      %p84 = por %p82, %p83
      %s86 = sadd.s32 %s85, 1
      %p89 = scmp.eq.s32.totalorder %s18, 3
      %p90 = scmp.ne.s32.totalorder %s85, %s87
      %p91 = scmp.eq.s32.totalorder %s18, 0
      %p92 = por %p90, %p91
      %p93 = scmp.ne.s32.totalorder %s85, %s87
      %p94 = scmp.eq.s32.totalorder %s23, 3
      %p95 = por %p93, %p94
      %p96 = scmp.ne.s32.totalorder %s87, %s88
      %p97 = scmp.eq.s32.totalorder %s23, 0
      %p98 = por %p96, %p97
      %p99 = scmp.ne.s32.totalorder %s87, %s88
      %p100 = scmp.eq.s32.totalorder %s24, 3
      %p101 = por %p99, %p100
      %p103 = scmp.ne.s32.totalorder %s88, %s102
      %p104 = scmp.eq.s32.totalorder %s24, 0
      %p105 = por %p103, %p104
      %s106 = ssub.s32 %s25, %s37
      %s107 = ssub.s32 %s26, %s33
      %s108 = sor.u32 %s106, %s107
      %p109 = scmp.eq.s32.totalorder %s108, 0
      %s111 = sadd.s32 %s110, 1
      %s112 = scalar_select %p109, %s110, %s111
      %p115 = pneg %p109
      %p116 = scmp.eq.s32.totalorder %s18, 3
      %p117 = por %p115, %p116
      %p118 = scmp.ne.s32.totalorder %s110, %s113
      %p119 = scmp.eq.s32.totalorder %s18, 0
      %p120 = por %p118, %p119
      %p121 = scmp.ne.s32.totalorder %s110, %s113
      %p122 = scmp.eq.s32.totalorder %s23, 3
      %p123 = por %p121, %p122
      %p124 = scmp.ne.s32.totalorder %s113, %s114
      %p125 = scmp.eq.s32.totalorder %s23, 0
      %p126 = por %p124, %p125
      %p127 = scmp.ne.s32.totalorder %s113, %s114
      %p128 = scmp.eq.s32.totalorder %s24, 3
      %p129 = por %p127, %p128
      %p131 = scmp.ne.s32.totalorder %s114, %s130
      %p132 = scmp.eq.s32.totalorder %s24, 0
      %p133 = por %p131, %p132
      %s134 = ssub.s32 %s25, %s37
      %s135 = ssub.s32 %s26, %s33
      %s136 = sor.u32 %s134, %s135
      %p137 = scmp.eq.s32.totalorder %s136, 0
      %s139 = sadd.s32 %s138, 1
      %s140 = scalar_select %p137, %s138, %s139
      %p143 = pneg %p137
      %p144 = scmp.eq.s32.totalorder %s18, 3
      %p145 = por %p143, %p144
      %p146 = scmp.ne.s32.totalorder %s138, %s141
      %p147 = scmp.eq.s32.totalorder %s18, 0
      %p148 = por %p146, %p147
      %p149 = scmp.ne.s32.totalorder %s138, %s141
      %p150 = scmp.eq.s32.totalorder %s23, 3
      %p151 = por %p149, %p150
      %p152 = scmp.ne.s32.totalorder %s141, %s142
      %p153 = scmp.eq.s32.totalorder %s23, 0
      %p154 = por %p152, %p153
      %p155 = scmp.ne.s32.totalorder %s141, %s142
      %p156 = scmp.eq.s32.totalorder %s24, 3
      %p157 = por %p155, %p156
      %p159 = scmp.ne.s32.totalorder %s142, %s158
      %p160 = scmp.eq.s32.totalorder %s24, 0
      %p161 = por %p159, %p160
      %s162 = ssub.s32 %s25, %s37
      %s163 = ssub.s32 %s26, %s33
      %s164 = sor.u32 %s162, %s163
      %p165 = scmp.eq.s32.totalorder %s164, 0
      %s167 = sadd.s32 %s166, 1
      %s168 = scalar_select %p165, %s166, %s167
      %p171 = pneg %p165
      %p172 = scmp.eq.s32.totalorder %s18, 3
      %p173 = por %p171, %p172
      %p174 = scmp.ne.s32.totalorder %s166, %s169
      %p175 = scmp.eq.s32.totalorder %s18, 0
      %p176 = por %p174, %p175
      %p177 = scmp.ne.s32.totalorder %s166, %s169
      %p178 = scmp.eq.s32.totalorder %s23, 3
      %p179 = por %p177, %p178
      %p180 = scmp.ne.s32.totalorder %s169, %s170
      %p181 = scmp.eq.s32.totalorder %s23, 0
      %p182 = por %p180, %p181
      %p183 = scmp.ne.s32.totalorder %s169, %s170
      %p184 = scmp.eq.s32.totalorder %s24, 3
      %p185 = por %p183, %p184
      %p187 = scmp.ne.s32.totalorder %s170, %s186
      %p188 = scmp.eq.s32.totalorder %s24, 0
      %p189 = por %p187, %p188
      %p190 = scmp.le.s32.totalorder 1, %s18
      %p191 = scmp.lt.s32.totalorder %s18, 5
      %p192 = pnand %p190, %p191
      %p193 = pneg %p192
      // Predicated region
      $region9: #{tpu_custom_call.1} parent=5 // pred_check
        _
      $region10: #{tpu_custom_call.1} parent=5 // pred_check_branch
        %195 = sbr.rel (%p192) target = $region12
      $region11: #{tpu_custom_call.1} parent=5 // pred_region
        %s196 = ssub.s32 %s18, 1
        // Predicated region
        $region13: #{tpu_custom_call.1} parent=11 // pred_check
          %p197 = pneg %p77
        $region14: #{tpu_custom_call.1} parent=11 // pred_check_branch
          %199 = sbr.rel (%p197) target = $region16
        $region15: #{tpu_custom_call.1} parent=11 // pred_region
          _
        $region16: #{tpu_custom_call.1} parent=11 // pred_fallthru
          _
        // Predicated region
        $region17: #{tpu_custom_call.1} parent=11 // pred_check
          %p200 = pneg %p98
        $region18: #{tpu_custom_call.1} parent=11 // pred_check_branch
          %202 = sbr.rel (%p200) target = $region20
        $region19: #{tpu_custom_call.1} parent=11 // pred_region
          _
        $region20: #{tpu_custom_call.1} parent=11 // pred_fallthru
          _
      $region12: #{tpu_custom_call.1} parent=5 // pred_fallthru
        _
      %p203 = scmp.lt.s32.totalorder %s18, 4
      // Predicated region
      $region21: #{tpu_custom_call.1} parent=5 // pred_check
        %p204 = pneg %p203
      $region22: #{tpu_custom_call.1} parent=5 // pred_check_branch
        %206 = sbr.rel (%p204) target = $region24
      $region23: #{tpu_custom_call.1} parent=5 // pred_region
        // Predicated region
        $region25: #{tpu_custom_call.1} parent=23 // pred_check
          %p207 = pneg %p50
        $region26: #{tpu_custom_call.1} parent=23 // pred_check_branch
          %209 = sbr.rel (%p207) target = $region28
        $region27: #{tpu_custom_call.1} parent=23 // pred_region
          %p210 = scmp.lt.s32.totalorder %s25, 1
          %s211 = scalar_select %p210, %s25, 1
          %s212 = smul.addr %s211, 200
          %s213 = smul.addr %s212, 8
          %s214 = scalar_lea.vmem %s0, %s213
        $region28: #{tpu_custom_call.1} parent=23 // pred_fallthru
          _
      $region24: #{tpu_custom_call.1} parent=5 // pred_fallthru
        _
      %p215 = scmp.le.s32.totalorder 1, %s18
      %p216 = scmp.lt.s32.totalorder %s18, 5
      %p217 = pnand %p215, %p216
      %p218 = pneg %p217
      // Predicated region
      $region29: #{tpu_custom_call.1} parent=5 // pred_check
        _
      $region30: #{tpu_custom_call.1} parent=5 // pred_check_branch
        %220 = sbr.rel (%p217) target = $region32
      $region31: #{tpu_custom_call.1} parent=5 // pred_region
        %s221 = ssub.s32 %s18, 1
        %p222 = scmp.lt.s32.totalorder %s27, 1
        %s223 = scalar_select %p222, %s27, 1
        %s224 = smul.addr %s223, 200
        %s225 = smul.addr %s224, 8
        %s226 = scalar_lea.vmem %s0, %s225
        %p227 = pneg %p56
        %p228 = pneg %p53
        %p229 = pneg %p77
        %p230 = pneg %p74
        %p231 = pneg %p98
        %p232 = pneg %p95
        %p233 = pneg %p126
        %p234 = pneg %p123
        %s235 = sand.u32 %s113, 1
        %s236 = scalar_lea.sflag [#allocation4], %s235
        %s237 = sand.u32 %s113, 1
        %s238 = smul.addr %s237, 256
        %s239 = scalar_lea.vmem [#allocation3], %s238
        %p240 = pneg %p154
        %p241 = pneg %p151
        %s242 = sand.u32 %s23, 1
        %s243 = scalar_lea.sflag [#allocation6], %s242
        %s244 = sand.u32 %s141, 1
        %s245 = scalar_lea.vmem [#allocation5], %s244
        %p246 = pneg %p182
        %p247 = pneg %p179
        %s248 = sand.u32 %s23, 1
        %s249 = scalar_lea.sflag [#allocation6], %s248
        %s250 = sand.u32 %s169, 1
        %s251 = scalar_lea.vmem [#allocation7], %s250
        %p252 = scmp.lt.s32.totalorder %s27, 1
        %s253 = scalar_select %p252, %s27, 1
        %s254 = smul.addr %s253, 200
        %s255 = smul.addr %s254, 8
        %s256 = scalar_lea.vmem %s0, %s255
        %s257 = smul.u32 4, %s28
        %s259 = smul.u32 %s28, 4
        %s260 = smul.u32 %s259, 160
        %s261 = scalar_lea.vmem %s256, %s260
        %v262 = vld [vmem:[%s261] sm:$0xff]
        %v263 = vld [vmem:[%s261 + $0x10] sm:$0xff]
        %v264 = vld [vmem:[%s261 + $0x20] sm:$0xff]
        %v265 = vld [vmem:[%s261 + $0x30] sm:$0xff]
        %v266 = vld [vmem:[%s261 + $0x40] sm:$0xff]
        %v267 = vld [vmem:[%s261 + $0x50] sm:$0xff]
        %v268 = vld [vmem:[%s261 + $0x60] sm:$0xff]
        %v269 = vld [vmem:[%s261 + $0x70] sm:$0xff]
        %v270 = vld [vmem:[%s261 + $0xa0] sm:$0xff]
        %v271 = vld [vmem:[%s261 + $0xb0] sm:$0xff]
        %v272 = vld [vmem:[%s261 + $0xc0] sm:$0xff]
        %v273 = vld [vmem:[%s261 + $0xd0] sm:$0xff]
        %v274 = vld [vmem:[%s261 + $0xe0] sm:$0xff]
        %v275 = vld [vmem:[%s261 + $0xf0] sm:$0xff]
        %v276 = vld [vmem:[%s261 + $0x100] sm:$0xff]
        %v277 = vld [vmem:[%s261 + $0x110] sm:$0xff]
        %v278 = vld [vmem:[%s261 + $0x140] sm:$0xff]
        %v279 = vld [vmem:[%s261 + $0x150] sm:$0xff]
        %v280 = vld [vmem:[%s261 + $0x160] sm:$0xff]
        %v281 = vld [vmem:[%s261 + $0x170] sm:$0xff]
        %v282 = vld [vmem:[%s261 + $0x180] sm:$0xff]
        %v283 = vld [vmem:[%s261 + $0x190] sm:$0xff]
        %v284 = vld [vmem:[%s261 + $0x1a0] sm:$0xff]
        %v285 = vld [vmem:[%s261 + $0x1b0] sm:$0xff]
        %v286 = vld [vmem:[%s261 + $0x1e0] sm:$0xff]
        %v287 = vld [vmem:[%s261 + $0x1f0] sm:$0xff]
        %v288 = vld [vmem:[%s261 + $0x200] sm:$0xff]
        %v289 = vld [vmem:[%s261 + $0x210] sm:$0xff]
        %v290 = vld [vmem:[%s261 + $0x220] sm:$0xff]
        %v291 = vld [vmem:[%s261 + $0x230] sm:$0xff]
        %v292 = vld [vmem:[%s261 + $0x240] sm:$0xff]
        %v293 = vld [vmem:[%s261 + $0x250] sm:$0xff]
        %v294 = vpack.c.bf16 %v263, %v262
        %v295 = vpack.c.bf16 %v265, %v264
        %v296 = vpack.c.bf16 %v267, %v266
        %v297 = vpack.c.bf16 %v269, %v268
        %v298 = vpack.c.bf16 %v271, %v270
        %v299 = vpack.c.bf16 %v273, %v272
        %v300 = vpack.c.bf16 %v275, %v274
        %v301 = vpack.c.bf16 %v277, %v276
        %v302 = vpack.c.bf16 %v279, %v278
        %v303 = vpack.c.bf16 %v281, %v280
        %v304 = vpack.c.bf16 %v283, %v282
        %v305 = vpack.c.bf16 %v285, %v284
        %v306 = vpack.c.bf16 %v287, %v286
        %v307 = vpack.c.bf16 %v289, %v288
        %v308 = vpack.c.bf16 %v291, %v290
        %v309 = vpack.c.bf16 %v293, %v292
        %vm310 = vcmask 31744
        %311 = vst.msk [vmem:[#allocation2] sm:$0xff] %vm310, %v294
        %312 = vst.msk [vmem:[#allocation2 + $0x8] sm:$0xff] %vm310, %v295
        %313 = vst.msk [vmem:[#allocation2 + $0x10] sm:$0xff] %vm310, %v296
        %314 = vst.msk [vmem:[#allocation2 + $0x18] sm:$0xff] %vm310, %v297
        %315 = vst.msk [vmem:[#allocation2 + $0x20] sm:$0xff] %vm310, %v298
        %316 = vst.msk [vmem:[#allocation2 + $0x28] sm:$0xff] %vm310, %v299
        %317 = vst.msk [vmem:[#allocation2 + $0x30] sm:$0xff] %vm310, %v300
        %318 = vst.msk [vmem:[#allocation2 + $0x38] sm:$0xff] %vm310, %v301
        %319 = vst.msk [vmem:[#allocation2 + $0x40] sm:$0xff] %vm310, %v302
        %320 = vst.msk [vmem:[#allocation2 + $0x48] sm:$0xff] %vm310, %v303
        %321 = vst.msk [vmem:[#allocation2 + $0x50] sm:$0xff] %vm310, %v304
        %322 = vst.msk [vmem:[#allocation2 + $0x58] sm:$0xff] %vm310, %v305
        %323 = vst.msk [vmem:[#allocation2 + $0x60] sm:$0xff] %vm310, %v306
        %324 = vst.msk [vmem:[#allocation2 + $0x68] sm:$0xff] %vm310, %v307
        %325 = vst.msk [vmem:[#allocation2 + $0x70] sm:$0xff] %vm310, %v308
        %326 = vst.msk [vmem:[#allocation2 + $0x78] sm:$0xff] %vm310, %v309
        %v327 = vld [vmem:[%s261 + $0x1] sm:$0xff]
        %v328 = vld [vmem:[%s261 + $0x11] sm:$0xff]
        %v329 = vld [vmem:[%s261 + $0x21] sm:$0xff]
        %v330 = vld [vmem:[%s261 + $0x31] sm:$0xff]
        %v331 = vld [vmem:[%s261 + $0x41] sm:$0xff]
        %v332 = vld [vmem:[%s261 + $0x51] sm:$0xff]
        %v333 = vld [vmem:[%s261 + $0x61] sm:$0xff]
        %v334 = vld [vmem:[%s261 + $0x71] sm:$0xff]
        %v335 = vld [vmem:[%s261 + $0xa1] sm:$0xff]
        %v336 = vld [vmem:[%s261 + $0xb1] sm:$0xff]
        %v337 = vld [vmem:[%s261 + $0xc1] sm:$0xff]
        %v338 = vld [vmem:[%s261 + $0xd1] sm:$0xff]
        %v339 = vld [vmem:[%s261 + $0xe1] sm:$0xff]
        %v340 = vld [vmem:[%s261 + $0xf1] sm:$0xff]
        %v341 = vld [vmem:[%s261 + $0x101] sm:$0xff]
        %v342 = vld [vmem:[%s261 + $0x111] sm:$0xff]
        %v343 = vld [vmem:[%s261 + $0x141] sm:$0xff]
        %v344 = vld [vmem:[%s261 + $0x151] sm:$0xff]
        %v345 = vld [vmem:[%s261 + $0x161] sm:$0xff]
        %v346 = vld [vmem:[%s261 + $0x171] sm:$0xff]
        %v347 = vld [vmem:[%s261 + $0x181] sm:$0xff]
        %v348 = vld [vmem:[%s261 + $0x191] sm:$0xff]
        %v349 = vld [vmem:[%s261 + $0x1a1] sm:$0xff]
        %v350 = vld [vmem:[%s261 + $0x1b1] sm:$0xff]
        %v351 = vld [vmem:[%s261 + $0x1e1] sm:$0xff]
        %v352 = vld [vmem:[%s261 + $0x1f1] sm:$0xff]
        %v353 = vld [vmem:[%s261 + $0x201] sm:$0xff]
        %v354 = vld [vmem:[%s261 + $0x211] sm:$0xff]
        %v355 = vld [vmem:[%s261 + $0x221] sm:$0xff]
        %v356 = vld [vmem:[%s261 + $0x231] sm:$0xff]
        %v357 = vld [vmem:[%s261 + $0x241] sm:$0xff]
        %v358 = vld [vmem:[%s261 + $0x251] sm:$0xff]
        %v359 = vpack.c.bf16 %v328, %v327
        %v360 = vpack.c.bf16 %v330, %v329
        %v361 = vpack.c.bf16 %v332, %v331
        %v362 = vpack.c.bf16 %v334, %v333
        %v363 = vpack.c.bf16 %v336, %v335
        %v364 = vpack.c.bf16 %v338, %v337
        %v365 = vpack.c.bf16 %v340, %v339
        %v366 = vpack.c.bf16 %v342, %v341
        %v367 = vpack.c.bf16 %v344, %v343
        %v368 = vpack.c.bf16 %v346, %v345
        %v369 = vpack.c.bf16 %v348, %v347
        %v370 = vpack.c.bf16 %v350, %v349
        %v371 = vpack.c.bf16 %v352, %v351
        %v372 = vpack.c.bf16 %v354, %v353
        %v373 = vpack.c.bf16 %v356, %v355
        %v374 = vpack.c.bf16 %v358, %v357
        %391 = vrot.lane.b32.xlu0 %v359, 4
        %v392 = vpop.permute.xlu0 %391
        %393 = vrot.lane.b32.xlu0 %v360, 4
        %v394 = vpop.permute.xlu0 %393
        %395 = vrot.lane.b32.xlu0 %v361, 4
        %v396 = vpop.permute.xlu0 %395
        %397 = vrot.lane.b32.xlu0 %v362, 4
        %v398 = vpop.permute.xlu0 %397
        %399 = vrot.lane.b32.xlu0 %v363, 4
        %v400 = vpop.permute.xlu0 %399
        %401 = vrot.lane.b32.xlu0 %v364, 4
        %v402 = vpop.permute.xlu0 %401
        %403 = vrot.lane.b32.xlu0 %v365, 4
        %v404 = vpop.permute.xlu0 %403
        %405 = vrot.lane.b32.xlu0 %v366, 4
        %v406 = vpop.permute.xlu0 %405
        %407 = vrot.lane.b32.xlu0 %v367, 4
        %v408 = vpop.permute.xlu0 %407
        %409 = vrot.lane.b32.xlu0 %v368, 4
        %v410 = vpop.permute.xlu0 %409
        %411 = vrot.lane.b32.xlu0 %v369, 4
        %v412 = vpop.permute.xlu0 %411
        %413 = vrot.lane.b32.xlu0 %v370, 4
        %v414 = vpop.permute.xlu0 %413
        %415 = vrot.lane.b32.xlu0 %v371, 4
        %v416 = vpop.permute.xlu0 %415
        %417 = vrot.lane.b32.xlu0 %v372, 4
        %v418 = vpop.permute.xlu0 %417
        %419 = vrot.lane.b32.xlu0 %v373, 4
        %v420 = vpop.permute.xlu0 %419
        %421 = vrot.lane.b32.xlu0 %v374, 4
        %v422 = vpop.permute.xlu0 %421
        %vm439 = vcmask 64544
        %440 = vst.msk [vmem:[#allocation2] sm:$0xff] %vm439, %v392
        %441 = vst.msk [vmem:[#allocation2 + $0x8] sm:$0xff] %vm439, %v394
        %442 = vst.msk [vmem:[#allocation2 + $0x10] sm:$0xff] %vm439, %v396
        %443 = vst.msk [vmem:[#allocation2 + $0x18] sm:$0xff] %vm439, %v398
        %444 = vst.msk [vmem:[#allocation2 + $0x20] sm:$0xff] %vm439, %v400
        %445 = vst.msk [vmem:[#allocation2 + $0x28] sm:$0xff] %vm439, %v402
        %446 = vst.msk [vmem:[#allocation2 + $0x30] sm:$0xff] %vm439, %v404
        %447 = vst.msk [vmem:[#allocation2 + $0x38] sm:$0xff] %vm439, %v406
        %448 = vst.msk [vmem:[#allocation2 + $0x40] sm:$0xff] %vm439, %v408
        %449 = vst.msk [vmem:[#allocation2 + $0x48] sm:$0xff] %vm439, %v410
        %450 = vst.msk [vmem:[#allocation2 + $0x50] sm:$0xff] %vm439, %v412
        %451 = vst.msk [vmem:[#allocation2 + $0x58] sm:$0xff] %vm439, %v414
        %452 = vst.msk [vmem:[#allocation2 + $0x60] sm:$0xff] %vm439, %v416
        %453 = vst.msk [vmem:[#allocation2 + $0x68] sm:$0xff] %vm439, %v418
        %454 = vst.msk [vmem:[#allocation2 + $0x70] sm:$0xff] %vm439, %v420
        %455 = vst.msk [vmem:[#allocation2 + $0x78] sm:$0xff] %vm439, %v422
        %v456 = vld [vmem:[%s261 + $0x2] sm:$0xff]
        %v457 = vld [vmem:[%s261 + $0x12] sm:$0xff]
        %v458 = vld [vmem:[%s261 + $0x22] sm:$0xff]
        %v459 = vld [vmem:[%s261 + $0x32] sm:$0xff]
        %v460 = vld [vmem:[%s261 + $0x42] sm:$0xff]
        %v461 = vld [vmem:[%s261 + $0x52] sm:$0xff]
        %v462 = vld [vmem:[%s261 + $0x62] sm:$0xff]
        %v463 = vld [vmem:[%s261 + $0x72] sm:$0xff]
        %v464 = vld [vmem:[%s261 + $0xa2] sm:$0xff]
        %v465 = vld [vmem:[%s261 + $0xb2] sm:$0xff]
        %v466 = vld [vmem:[%s261 + $0xc2] sm:$0xff]
        %v467 = vld [vmem:[%s261 + $0xd2] sm:$0xff]
        %v468 = vld [vmem:[%s261 + $0xe2] sm:$0xff]
        %v469 = vld [vmem:[%s261 + $0xf2] sm:$0xff]
        %v470 = vld [vmem:[%s261 + $0x102] sm:$0xff]
        %v471 = vld [vmem:[%s261 + $0x112] sm:$0xff]
        %v472 = vld [vmem:[%s261 + $0x142] sm:$0xff]
        %v473 = vld [vmem:[%s261 + $0x152] sm:$0xff]
        %v474 = vld [vmem:[%s261 + $0x162] sm:$0xff]
        %v475 = vld [vmem:[%s261 + $0x172] sm:$0xff]
        %v476 = vld [vmem:[%s261 + $0x182] sm:$0xff]
        %v477 = vld [vmem:[%s261 + $0x192] sm:$0xff]
        %v478 = vld [vmem:[%s261 + $0x1a2] sm:$0xff]
        %v479 = vld [vmem:[%s261 + $0x1b2] sm:$0xff]
        %v480 = vld [vmem:[%s261 + $0x1e2] sm:$0xff]
        %v481 = vld [vmem:[%s261 + $0x1f2] sm:$0xff]
        %v482 = vld [vmem:[%s261 + $0x202] sm:$0xff]
        %v483 = vld [vmem:[%s261 + $0x212] sm:$0xff]
        %v484 = vld [vmem:[%s261 + $0x222] sm:$0xff]
        %v485 = vld [vmem:[%s261 + $0x232] sm:$0xff]
        %v486 = vld [vmem:[%s261 + $0x242] sm:$0xff]
        %v487 = vld [vmem:[%s261 + $0x252] sm:$0xff]
        %v488 = vpack.c.bf16 %v457, %v456
        %v489 = vpack.c.bf16 %v459, %v458
        %v490 = vpack.c.bf16 %v461, %v460
        %v491 = vpack.c.bf16 %v463, %v462
        %v492 = vpack.c.bf16 %v465, %v464
        %v493 = vpack.c.bf16 %v467, %v466
        %v494 = vpack.c.bf16 %v469, %v468
        %v495 = vpack.c.bf16 %v471, %v470
        %v496 = vpack.c.bf16 %v473, %v472
        %v497 = vpack.c.bf16 %v475, %v474
        %v498 = vpack.c.bf16 %v477, %v476
        %v499 = vpack.c.bf16 %v479, %v478
        %v500 = vpack.c.bf16 %v481, %v480
        %v501 = vpack.c.bf16 %v483, %v482
        %v502 = vpack.c.bf16 %v485, %v484
        %v503 = vpack.c.bf16 %v487, %v486
        %520 = vrot.lane.b32.xlu0 %v488, 8
        %v521 = vpop.permute.xlu0 %520
        %522 = vrot.lane.b32.xlu0 %v489, 8
        %v523 = vpop.permute.xlu0 %522
        %524 = vrot.lane.b32.xlu0 %v490, 8
        %v525 = vpop.permute.xlu0 %524
        %526 = vrot.lane.b32.xlu0 %v491, 8
        %v527 = vpop.permute.xlu0 %526
        %528 = vrot.lane.b32.xlu0 %v492, 8
        %v529 = vpop.permute.xlu0 %528
        %530 = vrot.lane.b32.xlu0 %v493, 8
        %v531 = vpop.permute.xlu0 %530
        %532 = vrot.lane.b32.xlu0 %v494, 8
        %v533 = vpop.permute.xlu0 %532
        %534 = vrot.lane.b32.xlu0 %v495, 8
        %v535 = vpop.permute.xlu0 %534
        %536 = vrot.lane.b32.xlu0 %v496, 8
        %v537 = vpop.permute.xlu0 %536
        %538 = vrot.lane.b32.xlu0 %v497, 8
        %v539 = vpop.permute.xlu0 %538
        %540 = vrot.lane.b32.xlu0 %v498, 8
        %v541 = vpop.permute.xlu0 %540
        %542 = vrot.lane.b32.xlu0 %v499, 8
        %v543 = vpop.permute.xlu0 %542
        %544 = vrot.lane.b32.xlu0 %v500, 8
        %v545 = vpop.permute.xlu0 %544
        %546 = vrot.lane.b32.xlu0 %v501, 8
        %v547 = vpop.permute.xlu0 %546
        %548 = vrot.lane.b32.xlu0 %v502, 8
        %v549 = vpop.permute.xlu0 %548
        %550 = vrot.lane.b32.xlu0 %v503, 8
        %v551 = vpop.permute.xlu0 %550
        %vm568 = vcmask 97344
        %569 = vst.msk [vmem:[#allocation2] sm:$0xff] %vm568, %v521
        %570 = vst.msk [vmem:[#allocation2 + $0x8] sm:$0xff] %vm568, %v523
        %571 = vst.msk [vmem:[#allocation2 + $0x10] sm:$0xff] %vm568, %v525
        %572 = vst.msk [vmem:[#allocation2 + $0x18] sm:$0xff] %vm568, %v527
        %573 = vst.msk [vmem:[#allocation2 + $0x20] sm:$0xff] %vm568, %v529
        %574 = vst.msk [vmem:[#allocation2 + $0x28] sm:$0xff] %vm568, %v531
        %575 = vst.msk [vmem:[#allocation2 + $0x30] sm:$0xff] %vm568, %v533
        %576 = vst.msk [vmem:[#allocation2 + $0x38] sm:$0xff] %vm568, %v535
        %577 = vst.msk [vmem:[#allocation2 + $0x40] sm:$0xff] %vm568, %v537
        %578 = vst.msk [vmem:[#allocation2 + $0x48] sm:$0xff] %vm568, %v539
        %579 = vst.msk [vmem:[#allocation2 + $0x50] sm:$0xff] %vm568, %v541
        %580 = vst.msk [vmem:[#allocation2 + $0x58] sm:$0xff] %vm568, %v543
        %581 = vst.msk [vmem:[#allocation2 + $0x60] sm:$0xff] %vm568, %v545
        %582 = vst.msk [vmem:[#allocation2 + $0x68] sm:$0xff] %vm568, %v547
        %583 = vst.msk [vmem:[#allocation2 + $0x70] sm:$0xff] %vm568, %v549
        %584 = vst.msk [vmem:[#allocation2 + $0x78] sm:$0xff] %vm568, %v551
        %s585 = sadd.s32 16, %s260
        %s586 = scalar_lea.vmem %s256, %s585
        %v587 = vld [vmem:[%s586] sm:$0xff]
        %v588 = vld [vmem:[%s586 + $0x10] sm:$0xff]
        %v589 = vld [vmem:[%s586 + $0x20] sm:$0xff]
        %v590 = vld [vmem:[%s586 + $0x30] sm:$0xff]
        %v591 = vld [vmem:[%s586 + $0x40] sm:$0xff]
        %v592 = vld [vmem:[%s586 + $0x50] sm:$0xff]
        %v593 = vld [vmem:[%s586 + $0x60] sm:$0xff]
        %v594 = vld [vmem:[%s586 + $0x70] sm:$0xff]
        %v595 = vld [vmem:[%s586 + $0xa0] sm:$0xff]
        %v596 = vld [vmem:[%s586 + $0xb0] sm:$0xff]
        %v597 = vld [vmem:[%s586 + $0xc0] sm:$0xff]
        %v598 = vld [vmem:[%s586 + $0xd0] sm:$0xff]
        %v599 = vld [vmem:[%s586 + $0xe0] sm:$0xff]
        %v600 = vld [vmem:[%s586 + $0xf0] sm:$0xff]
        %v601 = vld [vmem:[%s586 + $0x100] sm:$0xff]
        %v602 = vld [vmem:[%s586 + $0x110] sm:$0xff]
        %v603 = vld [vmem:[%s586 + $0x140] sm:$0xff]
        %v604 = vld [vmem:[%s586 + $0x150] sm:$0xff]
        %v605 = vld [vmem:[%s586 + $0x160] sm:$0xff]
        %v606 = vld [vmem:[%s586 + $0x170] sm:$0xff]
        %v607 = vld [vmem:[%s586 + $0x180] sm:$0xff]
        %v608 = vld [vmem:[%s586 + $0x190] sm:$0xff]
        %v609 = vld [vmem:[%s586 + $0x1a0] sm:$0xff]
        %v610 = vld [vmem:[%s586 + $0x1b0] sm:$0xff]
        %v611 = vld [vmem:[%s586 + $0x1e0] sm:$0xff]
        %v612 = vld [vmem:[%s586 + $0x1f0] sm:$0xff]
        %v613 = vld [vmem:[%s586 + $0x200] sm:$0xff]
        %v614 = vld [vmem:[%s586 + $0x210] sm:$0xff]
        %v615 = vld [vmem:[%s586 + $0x220] sm:$0xff]
        %v616 = vld [vmem:[%s586 + $0x230] sm:$0xff]
        %v617 = vld [vmem:[%s586 + $0x240] sm:$0xff]
        %v618 = vld [vmem:[%s586 + $0x250] sm:$0xff]
        %v619 = vpack.c.bf16 %v588, %v587
        %v620 = vpack.c.bf16 %v590, %v589
        %v621 = vpack.c.bf16 %v592, %v591
        %v622 = vpack.c.bf16 %v594, %v593
        %v623 = vpack.c.bf16 %v596, %v595
        %v624 = vpack.c.bf16 %v598, %v597
        %v625 = vpack.c.bf16 %v600, %v599
        %v626 = vpack.c.bf16 %v602, %v601
        %v627 = vpack.c.bf16 %v604, %v603
        %v628 = vpack.c.bf16 %v606, %v605
        %v629 = vpack.c.bf16 %v608, %v607
        %v630 = vpack.c.bf16 %v610, %v609
        %v631 = vpack.c.bf16 %v612, %v611
        %v632 = vpack.c.bf16 %v614, %v613
        %v633 = vpack.c.bf16 %v616, %v615
        %v634 = vpack.c.bf16 %v618, %v617
        %651 = vrot.lane.b32.xlu0 %v619, 12
        %v652 = vpop.permute.xlu0 %651
        %653 = vrot.lane.b32.xlu0 %v620, 12
        %v654 = vpop.permute.xlu0 %653
        %655 = vrot.lane.b32.xlu0 %v621, 12
        %v656 = vpop.permute.xlu0 %655
        %657 = vrot.lane.b32.xlu0 %v622, 12
        %v658 = vpop.permute.xlu0 %657
        %659 = vrot.lane.b32.xlu0 %v623, 12
        %v660 = vpop.permute.xlu0 %659
        %661 = vrot.lane.b32.xlu0 %v624, 12
        %v662 = vpop.permute.xlu0 %661
        %663 = vrot.lane.b32.xlu0 %v625, 12
        %v664 = vpop.permute.xlu0 %663
        %665 = vrot.lane.b32.xlu0 %v626, 12
        %v666 = vpop.permute.xlu0 %665
        %667 = vrot.lane.b32.xlu0 %v627, 12
        %v668 = vpop.permute.xlu0 %667
        %669 = vrot.lane.b32.xlu0 %v628, 12
        %v670 = vpop.permute.xlu0 %669
        %671 = vrot.lane.b32.xlu0 %v629, 12
        %v672 = vpop.permute.xlu0 %671
        %673 = vrot.lane.b32.xlu0 %v630, 12
        %v674 = vpop.permute.xlu0 %673
        %675 = vrot.lane.b32.xlu0 %v631, 12
        %v676 = vpop.permute.xlu0 %675
        %677 = vrot.lane.b32.xlu0 %v632, 12
        %v678 = vpop.permute.xlu0 %677
        %679 = vrot.lane.b32.xlu0 %v633, 12
        %v680 = vpop.permute.xlu0 %679
        %681 = vrot.lane.b32.xlu0 %v634, 12
        %v682 = vpop.permute.xlu0 %681
        %vm699 = vcmask 130144
        %700 = vst.msk [vmem:[#allocation2] sm:$0xff] %vm699, %v652
        %701 = vst.msk [vmem:[#allocation2 + $0x8] sm:$0xff] %vm699, %v654
        %702 = vst.msk [vmem:[#allocation2 + $0x10] sm:$0xff] %vm699, %v656
        %703 = vst.msk [vmem:[#allocation2 + $0x18] sm:$0xff] %vm699, %v658
        %704 = vst.msk [vmem:[#allocation2 + $0x20] sm:$0xff] %vm699, %v660
        %705 = vst.msk [vmem:[#allocation2 + $0x28] sm:$0xff] %vm699, %v662
        %706 = vst.msk [vmem:[#allocation2 + $0x30] sm:$0xff] %vm699, %v664
        %707 = vst.msk [vmem:[#allocation2 + $0x38] sm:$0xff] %vm699, %v666
        %708 = vst.msk [vmem:[#allocation2 + $0x40] sm:$0xff] %vm699, %v668
        %709 = vst.msk [vmem:[#allocation2 + $0x48] sm:$0xff] %vm699, %v670
        %710 = vst.msk [vmem:[#allocation2 + $0x50] sm:$0xff] %vm699, %v672
        %711 = vst.msk [vmem:[#allocation2 + $0x58] sm:$0xff] %vm699, %v674
        %712 = vst.msk [vmem:[#allocation2 + $0x60] sm:$0xff] %vm699, %v676
        %713 = vst.msk [vmem:[#allocation2 + $0x68] sm:$0xff] %vm699, %v678
        %714 = vst.msk [vmem:[#allocation2 + $0x70] sm:$0xff] %vm699, %v680
        %715 = vst.msk [vmem:[#allocation2 + $0x78] sm:$0xff] %vm699, %v682
        %v716 = vld [vmem:[%s586 + $0x1] sm:$0xff]
        %v717 = vld [vmem:[%s586 + $0x11] sm:$0xff]
        %v718 = vld [vmem:[%s586 + $0x21] sm:$0xff]
        %v719 = vld [vmem:[%s586 + $0x31] sm:$0xff]
        %v720 = vld [vmem:[%s586 + $0x41] sm:$0xff]
        %v721 = vld [vmem:[%s586 + $0x51] sm:$0xff]
        %v722 = vld [vmem:[%s586 + $0x61] sm:$0xff]
        %v723 = vld [vmem:[%s586 + $0x71] sm:$0xff]
        %v724 = vld [vmem:[%s586 + $0xa1] sm:$0xff]
        %v725 = vld [vmem:[%s586 + $0xb1] sm:$0xff]
        %v726 = vld [vmem:[%s586 + $0xc1] sm:$0xff]
        %v727 = vld [vmem:[%s586 + $0xd1] sm:$0xff]
        %v728 = vld [vmem:[%s586 + $0xe1] sm:$0xff]
        %v729 = vld [vmem:[%s586 + $0xf1] sm:$0xff]
        %v730 = vld [vmem:[%s586 + $0x101] sm:$0xff]
        %v731 = vld [vmem:[%s586 + $0x111] sm:$0xff]
        %v732 = vld [vmem:[%s586 + $0x141] sm:$0xff]
        %v733 = vld [vmem:[%s586 + $0x151] sm:$0xff]
        %v734 = vld [vmem:[%s586 + $0x161] sm:$0xff]
        %v735 = vld [vmem:[%s586 + $0x171] sm:$0xff]
        %v736 = vld [vmem:[%s586 + $0x181] sm:$0xff]
        %v737 = vld [vmem:[%s586 + $0x191] sm:$0xff]
        %v738 = vld [vmem:[%s586 + $0x1a1] sm:$0xff]
        %v739 = vld [vmem:[%s586 + $0x1b1] sm:$0xff]
        %v740 = vld [vmem:[%s586 + $0x1e1] sm:$0xff]
        %v741 = vld [vmem:[%s586 + $0x1f1] sm:$0xff]
        %v742 = vld [vmem:[%s586 + $0x201] sm:$0xff]
        %v743 = vld [vmem:[%s586 + $0x211] sm:$0xff]
        %v744 = vld [vmem:[%s586 + $0x221] sm:$0xff]
        %v745 = vld [vmem:[%s586 + $0x231] sm:$0xff]
        %v746 = vld [vmem:[%s586 + $0x241] sm:$0xff]
        %v747 = vld [vmem:[%s586 + $0x251] sm:$0xff]
        %v748 = vpack.c.bf16 %v717, %v716
        %v749 = vpack.c.bf16 %v719, %v718
        %v750 = vpack.c.bf16 %v721, %v720
        %v751 = vpack.c.bf16 %v723, %v722
        %v752 = vpack.c.bf16 %v725, %v724
        %v753 = vpack.c.bf16 %v727, %v726
        %v754 = vpack.c.bf16 %v729, %v728
        %v755 = vpack.c.bf16 %v731, %v730
        %v756 = vpack.c.bf16 %v733, %v732
        %v757 = vpack.c.bf16 %v735, %v734
        %v758 = vpack.c.bf16 %v737, %v736
        %v759 = vpack.c.bf16 %v739, %v738
        %v760 = vpack.c.bf16 %v741, %v740
        %v761 = vpack.c.bf16 %v743, %v742
        %v762 = vpack.c.bf16 %v745, %v744
        %v763 = vpack.c.bf16 %v747, %v746
        %780 = vrot.lane.b32.xlu0 %v748, 16
        %v781 = vpop.permute.xlu0 %780
        %782 = vrot.lane.b32.xlu0 %v749, 16
        %v783 = vpop.permute.xlu0 %782
        %784 = vrot.lane.b32.xlu0 %v750, 16
        %v785 = vpop.permute.xlu0 %784
        %786 = vrot.lane.b32.xlu0 %v751, 16
        %v787 = vpop.permute.xlu0 %786
        %788 = vrot.lane.b32.xlu0 %v752, 16
        %v789 = vpop.permute.xlu0 %788
        %790 = vrot.lane.b32.xlu0 %v753, 16
        %v791 = vpop.permute.xlu0 %790
        %792 = vrot.lane.b32.xlu0 %v754, 16
        %v793 = vpop.permute.xlu0 %792
        %794 = vrot.lane.b32.xlu0 %v755, 16
        %v795 = vpop.permute.xlu0 %794
        %796 = vrot.lane.b32.xlu0 %v756, 16
        %v797 = vpop.permute.xlu0 %796
        %798 = vrot.lane.b32.xlu0 %v757, 16
        %v799 = vpop.permute.xlu0 %798
        %800 = vrot.lane.b32.xlu0 %v758, 16
        %v801 = vpop.permute.xlu0 %800
        %802 = vrot.lane.b32.xlu0 %v759, 16
        %v803 = vpop.permute.xlu0 %802
        %804 = vrot.lane.b32.xlu0 %v760, 16
        %v805 = vpop.permute.xlu0 %804
        %806 = vrot.lane.b32.xlu0 %v761, 16
        %v807 = vpop.permute.xlu0 %806
        %808 = vrot.lane.b32.xlu0 %v762, 16
        %v809 = vpop.permute.xlu0 %808
        %810 = vrot.lane.b32.xlu0 %v763, 16
        %v811 = vpop.permute.xlu0 %810
        %vm828 = vcmask 162944
        %829 = vst.msk [vmem:[#allocation2] sm:$0xff] %vm828, %v781
        %830 = vst.msk [vmem:[#allocation2 + $0x8] sm:$0xff] %vm828, %v783
        %831 = vst.msk [vmem:[#allocation2 + $0x10] sm:$0xff] %vm828, %v785
        %832 = vst.msk [vmem:[#allocation2 + $0x18] sm:$0xff] %vm828, %v787
        %833 = vst.msk [vmem:[#allocation2 + $0x20] sm:$0xff] %vm828, %v789
        %834 = vst.msk [vmem:[#allocation2 + $0x28] sm:$0xff] %vm828, %v791
        %835 = vst.msk [vmem:[#allocation2 + $0x30] sm:$0xff] %vm828, %v793
        %836 = vst.msk [vmem:[#allocation2 + $0x38] sm:$0xff] %vm828, %v795
        %837 = vst.msk [vmem:[#allocation2 + $0x40] sm:$0xff] %vm828, %v797
        %838 = vst.msk [vmem:[#allocation2 + $0x48] sm:$0xff] %vm828, %v799
        %839 = vst.msk [vmem:[#allocation2 + $0x50] sm:$0xff] %vm828, %v801
        %840 = vst.msk [vmem:[#allocation2 + $0x58] sm:$0xff] %vm828, %v803
        %841 = vst.msk [vmem:[#allocation2 + $0x60] sm:$0xff] %vm828, %v805
        %842 = vst.msk [vmem:[#allocation2 + $0x68] sm:$0xff] %vm828, %v807
        %843 = vst.msk [vmem:[#allocation2 + $0x70] sm:$0xff] %vm828, %v809
        %844 = vst.msk [vmem:[#allocation2 + $0x78] sm:$0xff] %vm828, %v811
        %v845 = vld [vmem:[%s586 + $0x2] sm:$0xff]
        %v846 = vld [vmem:[%s586 + $0x12] sm:$0xff]
        %v847 = vld [vmem:[%s586 + $0x22] sm:$0xff]
        %v848 = vld [vmem:[%s586 + $0x32] sm:$0xff]
        %v849 = vld [vmem:[%s586 + $0x42] sm:$0xff]
        %v850 = vld [vmem:[%s586 + $0x52] sm:$0xff]
        %v851 = vld [vmem:[%s586 + $0x62] sm:$0xff]
        %v852 = vld [vmem:[%s586 + $0x72] sm:$0xff]
        %v853 = vld [vmem:[%s586 + $0xa2] sm:$0xff]
        %v854 = vld [vmem:[%s586 + $0xb2] sm:$0xff]
        %v855 = vld [vmem:[%s586 + $0xc2] sm:$0xff]
        %v856 = vld [vmem:[%s586 + $0xd2] sm:$0xff]
        %v857 = vld [vmem:[%s586 + $0xe2] sm:$0xff]
        %v858 = vld [vmem:[%s586 + $0xf2] sm:$0xff]
        %v859 = vld [vmem:[%s586 + $0x102] sm:$0xff]
        %v860 = vld [vmem:[%s586 + $0x112] sm:$0xff]
        %v861 = vld [vmem:[%s586 + $0x142] sm:$0xff]
        %v862 = vld [vmem:[%s586 + $0x152] sm:$0xff]
        %v863 = vld [vmem:[%s586 + $0x162] sm:$0xff]
        %v864 = vld [vmem:[%s586 + $0x172] sm:$0xff]
        %v865 = vld [vmem:[%s586 + $0x182] sm:$0xff]
        %v866 = vld [vmem:[%s586 + $0x192] sm:$0xff]
        %v867 = vld [vmem:[%s586 + $0x1a2] sm:$0xff]
        %v868 = vld [vmem:[%s586 + $0x1b2] sm:$0xff]
        %v869 = vld [vmem:[%s586 + $0x1e2] sm:$0xff]
        %v870 = vld [vmem:[%s586 + $0x1f2] sm:$0xff]
        %v871 = vld [vmem:[%s586 + $0x202] sm:$0xff]
        %v872 = vld [vmem:[%s586 + $0x212] sm:$0xff]
        %v873 = vld [vmem:[%s586 + $0x222] sm:$0xff]
        %v874 = vld [vmem:[%s586 + $0x232] sm:$0xff]
        %v875 = vld [vmem:[%s586 + $0x242] sm:$0xff]
        %v876 = vld [vmem:[%s586 + $0x252] sm:$0xff]
        %v877 = vpack.c.bf16 %v846, %v845
        %v878 = vpack.c.bf16 %v848, %v847
        %v879 = vpack.c.bf16 %v850, %v849
        %v880 = vpack.c.bf16 %v852, %v851
        %v881 = vpack.c.bf16 %v854, %v853
        %v882 = vpack.c.bf16 %v856, %v855
        %v883 = vpack.c.bf16 %v858, %v857
        %v884 = vpack.c.bf16 %v860, %v859
        %v885 = vpack.c.bf16 %v862, %v861
        %v886 = vpack.c.bf16 %v864, %v863
        %v887 = vpack.c.bf16 %v866, %v865
        %v888 = vpack.c.bf16 %v868, %v867
        %v889 = vpack.c.bf16 %v870, %v869
        %v890 = vpack.c.bf16 %v872, %v871
        %v891 = vpack.c.bf16 %v874, %v873
        %v892 = vpack.c.bf16 %v876, %v875
        %909 = vrot.lane.b32.xlu0 %v877, 20
        %v910 = vpop.permute.xlu0 %909
        %911 = vrot.lane.b32.xlu0 %v878, 20
        %v912 = vpop.permute.xlu0 %911
        %913 = vrot.lane.b32.xlu0 %v879, 20
        %v914 = vpop.permute.xlu0 %913
        %915 = vrot.lane.b32.xlu0 %v880, 20
        %v916 = vpop.permute.xlu0 %915
        %917 = vrot.lane.b32.xlu0 %v881, 20
        %v918 = vpop.permute.xlu0 %917
        %919 = vrot.lane.b32.xlu0 %v882, 20
        %v920 = vpop.permute.xlu0 %919
        %921 = vrot.lane.b32.xlu0 %v883, 20
        %v922 = vpop.permute.xlu0 %921
        %923 = vrot.lane.b32.xlu0 %v884, 20
        %v924 = vpop.permute.xlu0 %923
        %925 = vrot.lane.b32.xlu0 %v885, 20
        %v926 = vpop.permute.xlu0 %925
        %927 = vrot.lane.b32.xlu0 %v886, 20
        %v928 = vpop.permute.xlu0 %927
        %929 = vrot.lane.b32.xlu0 %v887, 20
        %v930 = vpop.permute.xlu0 %929
        %931 = vrot.lane.b32.xlu0 %v888, 20
        %v932 = vpop.permute.xlu0 %931
        %933 = vrot.lane.b32.xlu0 %v889, 20
        %v934 = vpop.permute.xlu0 %933
        %935 = vrot.lane.b32.xlu0 %v890, 20
        %v936 = vpop.permute.xlu0 %935
        %937 = vrot.lane.b32.xlu0 %v891, 20
        %v938 = vpop.permute.xlu0 %937
        %939 = vrot.lane.b32.xlu0 %v892, 20
        %v940 = vpop.permute.xlu0 %939
        %vm957 = vcmask 195744
        %958 = vst.msk [vmem:[#allocation2] sm:$0xff] %vm957, %v910
        %959 = vst.msk [vmem:[#allocation2 + $0x8] sm:$0xff] %vm957, %v912
        %960 = vst.msk [vmem:[#allocation2 + $0x10] sm:$0xff] %vm957, %v914
        %961 = vst.msk [vmem:[#allocation2 + $0x18] sm:$0xff] %vm957, %v916
        %962 = vst.msk [vmem:[#allocation2 + $0x20] sm:$0xff] %vm957, %v918
        %963 = vst.msk [vmem:[#allocation2 + $0x28] sm:$0xff] %vm957, %v920
        %964 = vst.msk [vmem:[#allocation2 + $0x30] sm:$0xff] %vm957, %v922
        %965 = vst.msk [vmem:[#allocation2 + $0x38] sm:$0xff] %vm957, %v924
        %966 = vst.msk [vmem:[#allocation2 + $0x40] sm:$0xff] %vm957, %v926
        %967 = vst.msk [vmem:[#allocation2 + $0x48] sm:$0xff] %vm957, %v928
        %968 = vst.msk [vmem:[#allocation2 + $0x50] sm:$0xff] %vm957, %v930
        %969 = vst.msk [vmem:[#allocation2 + $0x58] sm:$0xff] %vm957, %v932
        %970 = vst.msk [vmem:[#allocation2 + $0x60] sm:$0xff] %vm957, %v934
        %971 = vst.msk [vmem:[#allocation2 + $0x68] sm:$0xff] %vm957, %v936
        %972 = vst.msk [vmem:[#allocation2 + $0x70] sm:$0xff] %vm957, %v938
        %973 = vst.msk [vmem:[#allocation2 + $0x78] sm:$0xff] %vm957, %v940
        %s974 = sadd.s32 32, %s260
        %s975 = scalar_lea.vmem %s256, %s974
        %v976 = vld [vmem:[%s975] sm:$0xff]
        %v977 = vld [vmem:[%s975 + $0x10] sm:$0xff]
        %v978 = vld [vmem:[%s975 + $0x20] sm:$0xff]
        %v979 = vld [vmem:[%s975 + $0x30] sm:$0xff]
        %v980 = vld [vmem:[%s975 + $0x40] sm:$0xff]
        %v981 = vld [vmem:[%s975 + $0x50] sm:$0xff]
        %v982 = vld [vmem:[%s975 + $0x60] sm:$0xff]
        %v983 = vld [vmem:[%s975 + $0x70] sm:$0xff]
        %v984 = vld [vmem:[%s975 + $0xa0] sm:$0xff]
        %v985 = vld [vmem:[%s975 + $0xb0] sm:$0xff]
        %v986 = vld [vmem:[%s975 + $0xc0] sm:$0xff]
        %v987 = vld [vmem:[%s975 + $0xd0] sm:$0xff]
        %v988 = vld [vmem:[%s975 + $0xe0] sm:$0xff]
        %v989 = vld [vmem:[%s975 + $0xf0] sm:$0xff]
        %v990 = vld [vmem:[%s975 + $0x100] sm:$0xff]
        %v991 = vld [vmem:[%s975 + $0x110] sm:$0xff]
        %v992 = vld [vmem:[%s975 + $0x140] sm:$0xff]
        %v993 = vld [vmem:[%s975 + $0x150] sm:$0xff]
        %v994 = vld [vmem:[%s975 + $0x160] sm:$0xff]
        %v995 = vld [vmem:[%s975 + $0x170] sm:$0xff]
        %v996 = vld [vmem:[%s975 + $0x180] sm:$0xff]
        %v997 = vld [vmem:[%s975 + $0x190] sm:$0xff]
        %v998 = vld [vmem:[%s975 + $0x1a0] sm:$0xff]
        %v999 = vld [vmem:[%s975 + $0x1b0] sm:$0xff]
        %v1000 = vld [vmem:[%s975 + $0x1e0] sm:$0xff]
        %v1001 = vld [vmem:[%s975 + $0x1f0] sm:$0xff]
        %v1002 = vld [vmem:[%s975 + $0x200] sm:$0xff]
        %v1003 = vld [vmem:[%s975 + $0x210] sm:$0xff]
        %v1004 = vld [vmem:[%s975 + $0x220] sm:$0xff]
        %v1005 = vld [vmem:[%s975 + $0x230] sm:$0xff]
        %v1006 = vld [vmem:[%s975 + $0x240] sm:$0xff]
        %v1007 = vld [vmem:[%s975 + $0x250] sm:$0xff]
        %v1008 = vpack.c.bf16 %v977, %v976
        %v1009 = vpack.c.bf16 %v979, %v978
        %v1010 = vpack.c.bf16 %v981, %v980
        %v1011 = vpack.c.bf16 %v983, %v982
        %v1012 = vpack.c.bf16 %v985, %v984
        %v1013 = vpack.c.bf16 %v987, %v986
        %v1014 = vpack.c.bf16 %v989, %v988
        %v1015 = vpack.c.bf16 %v991, %v990
        %v1016 = vpack.c.bf16 %v993, %v992
        %v1017 = vpack.c.bf16 %v995, %v994
        %v1018 = vpack.c.bf16 %v997, %v996
        %v1019 = vpack.c.bf16 %v999, %v998
        %v1020 = vpack.c.bf16 %v1001, %v1000
        %v1021 = vpack.c.bf16 %v1003, %v1002
        %v1022 = vpack.c.bf16 %v1005, %v1004
        %v1023 = vpack.c.bf16 %v1007, %v1006
        %1040 = vrot.lane.b32.xlu0 %v1008, 24
        %v1041 = vpop.permute.xlu0 %1040
        %1042 = vrot.lane.b32.xlu0 %v1009, 24
        %v1043 = vpop.permute.xlu0 %1042
        %1044 = vrot.lane.b32.xlu0 %v1010, 24
        %v1045 = vpop.permute.xlu0 %1044
        %1046 = vrot.lane.b32.xlu0 %v1011, 24
        %v1047 = vpop.permute.xlu0 %1046
        %1048 = vrot.lane.b32.xlu0 %v1012, 24
        %v1049 = vpop.permute.xlu0 %1048
        %1050 = vrot.lane.b32.xlu0 %v1013, 24
        %v1051 = vpop.permute.xlu0 %1050
        %1052 = vrot.lane.b32.xlu0 %v1014, 24
        %v1053 = vpop.permute.xlu0 %1052
        %1054 = vrot.lane.b32.xlu0 %v1015, 24
        %v1055 = vpop.permute.xlu0 %1054
        %1056 = vrot.lane.b32.xlu0 %v1016, 24
        %v1057 = vpop.permute.xlu0 %1056
        %1058 = vrot.lane.b32.xlu0 %v1017, 24
        %v1059 = vpop.permute.xlu0 %1058
        %1060 = vrot.lane.b32.xlu0 %v1018, 24
        %v1061 = vpop.permute.xlu0 %1060
        %1062 = vrot.lane.b32.xlu0 %v1019, 24
        %v1063 = vpop.permute.xlu0 %1062
        %1064 = vrot.lane.b32.xlu0 %v1020, 24
        %v1065 = vpop.permute.xlu0 %1064
        %1066 = vrot.lane.b32.xlu0 %v1021, 24
        %v1067 = vpop.permute.xlu0 %1066
        %1068 = vrot.lane.b32.xlu0 %v1022, 24
        %v1069 = vpop.permute.xlu0 %1068
        %1070 = vrot.lane.b32.xlu0 %v1023, 24
        %v1071 = vpop.permute.xlu0 %1070
        %vm1088 = vcmask 228544
        %1089 = vst.msk [vmem:[#allocation2] sm:$0xff] %vm1088, %v1041
        %1090 = vst.msk [vmem:[#allocation2 + $0x8] sm:$0xff] %vm1088, %v1043
        %1091 = vst.msk [vmem:[#allocation2 + $0x10] sm:$0xff] %vm1088, %v1045
        %1092 = vst.msk [vmem:[#allocation2 + $0x18] sm:$0xff] %vm1088, %v1047
        %1093 = vst.msk [vmem:[#allocation2 + $0x20] sm:$0xff] %vm1088, %v1049
        %1094 = vst.msk [vmem:[#allocation2 + $0x28] sm:$0xff] %vm1088, %v1051
        %1095 = vst.msk [vmem:[#allocation2 + $0x30] sm:$0xff] %vm1088, %v1053
        %1096 = vst.msk [vmem:[#allocation2 + $0x38] sm:$0xff] %vm1088, %v1055
        %1097 = vst.msk [vmem:[#allocation2 + $0x40] sm:$0xff] %vm1088, %v1057
        %1098 = vst.msk [vmem:[#allocation2 + $0x48] sm:$0xff] %vm1088, %v1059
        %1099 = vst.msk [vmem:[#allocation2 + $0x50] sm:$0xff] %vm1088, %v1061
        %1100 = vst.msk [vmem:[#allocation2 + $0x58] sm:$0xff] %vm1088, %v1063
        %1101 = vst.msk [vmem:[#allocation2 + $0x60] sm:$0xff] %vm1088, %v1065
        %1102 = vst.msk [vmem:[#allocation2 + $0x68] sm:$0xff] %vm1088, %v1067
        %1103 = vst.msk [vmem:[#allocation2 + $0x70] sm:$0xff] %vm1088, %v1069
        %1104 = vst.msk [vmem:[#allocation2 + $0x78] sm:$0xff] %vm1088, %v1071
        %v1105 = vld [vmem:[%s975 + $0x1] sm:$0xff]
        %v1106 = vld [vmem:[%s975 + $0x11] sm:$0xff]
        %v1107 = vld [vmem:[%s975 + $0x21] sm:$0xff]
        %v1108 = vld [vmem:[%s975 + $0x31] sm:$0xff]
        %v1109 = vld [vmem:[%s975 + $0x41] sm:$0xff]
        %v1110 = vld [vmem:[%s975 + $0x51] sm:$0xff]
        %v1111 = vld [vmem:[%s975 + $0x61] sm:$0xff]
        %v1112 = vld [vmem:[%s975 + $0x71] sm:$0xff]
        %v1113 = vld [vmem:[%s975 + $0xa1] sm:$0xff]
        %v1114 = vld [vmem:[%s975 + $0xb1] sm:$0xff]
        %v1115 = vld [vmem:[%s975 + $0xc1] sm:$0xff]
        %v1116 = vld [vmem:[%s975 + $0xd1] sm:$0xff]
        %v1117 = vld [vmem:[%s975 + $0xe1] sm:$0xff]
        %v1118 = vld [vmem:[%s975 + $0xf1] sm:$0xff]
        %v1119 = vld [vmem:[%s975 + $0x101] sm:$0xff]
        %v1120 = vld [vmem:[%s975 + $0x111] sm:$0xff]
        %v1121 = vld [vmem:[%s975 + $0x141] sm:$0xff]
        %v1122 = vld [vmem:[%s975 + $0x151] sm:$0xff]
        %v1123 = vld [vmem:[%s975 + $0x161] sm:$0xff]
        %v1124 = vld [vmem:[%s975 + $0x171] sm:$0xff]
        %v1125 = vld [vmem:[%s975 + $0x181] sm:$0xff]
        %v1126 = vld [vmem:[%s975 + $0x191] sm:$0xff]
        %v1127 = vld [vmem:[%s975 + $0x1a1] sm:$0xff]
        %v1128 = vld [vmem:[%s975 + $0x1b1] sm:$0xff]
        %v1129 = vld [vmem:[%s975 + $0x1e1] sm:$0xff]
        %v1130 = vld [vmem:[%s975 + $0x1f1] sm:$0xff]
        %v1131 = vld [vmem:[%s975 + $0x201] sm:$0xff]
        %v1132 = vld [vmem:[%s975 + $0x211] sm:$0xff]
        %v1133 = vld [vmem:[%s975 + $0x221] sm:$0xff]
        %v1134 = vld [vmem:[%s975 + $0x231] sm:$0xff]
        %v1135 = vld [vmem:[%s975 + $0x241] sm:$0xff]
        %v1136 = vld [vmem:[%s975 + $0x251] sm:$0xff]
        %v1137 = vpack.c.bf16 %v1106, %v1105
        %v1138 = vpack.c.bf16 %v1108, %v1107
        %v1139 = vpack.c.bf16 %v1110, %v1109
        %v1140 = vpack.c.bf16 %v1112, %v1111
        %v1141 = vpack.c.bf16 %v1114, %v1113
        %v1142 = vpack.c.bf16 %v1116, %v1115
        %v1143 = vpack.c.bf16 %v1118, %v1117
        %v1144 = vpack.c.bf16 %v1120, %v1119
        %v1145 = vpack.c.bf16 %v1122, %v1121
        %v1146 = vpack.c.bf16 %v1124, %v1123
        %v1147 = vpack.c.bf16 %v1126, %v1125
        %v1148 = vpack.c.bf16 %v1128, %v1127
        %v1149 = vpack.c.bf16 %v1130, %v1129
        %v1150 = vpack.c.bf16 %v1132, %v1131
        %v1151 = vpack.c.bf16 %v1134, %v1133
        %v1152 = vpack.c.bf16 %v1136, %v1135
        %1169 = vrot.lane.b32.xlu0 %v1137, 28
        %v1170 = vpop.permute.xlu0 %1169
        %1171 = vrot.lane.b32.xlu0 %v1138, 28
        %v1172 = vpop.permute.xlu0 %1171
        %1173 = vrot.lane.b32.xlu0 %v1139, 28
        %v1174 = vpop.permute.xlu0 %1173
        %1175 = vrot.lane.b32.xlu0 %v1140, 28
        %v1176 = vpop.permute.xlu0 %1175
        %1177 = vrot.lane.b32.xlu0 %v1141, 28
        %v1178 = vpop.permute.xlu0 %1177
        %1179 = vrot.lane.b32.xlu0 %v1142, 28
        %v1180 = vpop.permute.xlu0 %1179
        %1181 = vrot.lane.b32.xlu0 %v1143, 28
        %v1182 = vpop.permute.xlu0 %1181
        %1183 = vrot.lane.b32.xlu0 %v1144, 28
        %v1184 = vpop.permute.xlu0 %1183
        %1185 = vrot.lane.b32.xlu0 %v1145, 28
        %v1186 = vpop.permute.xlu0 %1185
        %1187 = vrot.lane.b32.xlu0 %v1146, 28
        %v1188 = vpop.permute.xlu0 %1187
        %1189 = vrot.lane.b32.xlu0 %v1147, 28
        %v1190 = vpop.permute.xlu0 %1189
        %1191 = vrot.lane.b32.xlu0 %v1148, 28
        %v1192 = vpop.permute.xlu0 %1191
        %1193 = vrot.lane.b32.xlu0 %v1149, 28
        %v1194 = vpop.permute.xlu0 %1193
        %1195 = vrot.lane.b32.xlu0 %v1150, 28
        %v1196 = vpop.permute.xlu0 %1195
        %1197 = vrot.lane.b32.xlu0 %v1151, 28
        %v1198 = vpop.permute.xlu0 %1197
        %1199 = vrot.lane.b32.xlu0 %v1152, 28
        %v1200 = vpop.permute.xlu0 %1199
        %vm1217 = vcmask 261344
        %1218 = vst.msk [vmem:[#allocation2] sm:$0xff] %vm1217, %v1170
        %1219 = vst.msk [vmem:[#allocation2 + $0x8] sm:$0xff] %vm1217, %v1172
        %1220 = vst.msk [vmem:[#allocation2 + $0x10] sm:$0xff] %vm1217, %v1174
        %1221 = vst.msk [vmem:[#allocation2 + $0x18] sm:$0xff] %vm1217, %v1176
        %1222 = vst.msk [vmem:[#allocation2 + $0x20] sm:$0xff] %vm1217, %v1178
        %1223 = vst.msk [vmem:[#allocation2 + $0x28] sm:$0xff] %vm1217, %v1180
        %1224 = vst.msk [vmem:[#allocation2 + $0x30] sm:$0xff] %vm1217, %v1182
        %1225 = vst.msk [vmem:[#allocation2 + $0x38] sm:$0xff] %vm1217, %v1184
        %1226 = vst.msk [vmem:[#allocation2 + $0x40] sm:$0xff] %vm1217, %v1186
        %1227 = vst.msk [vmem:[#allocation2 + $0x48] sm:$0xff] %vm1217, %v1188
        %1228 = vst.msk [vmem:[#allocation2 + $0x50] sm:$0xff] %vm1217, %v1190
        %1229 = vst.msk [vmem:[#allocation2 + $0x58] sm:$0xff] %vm1217, %v1192
        %1230 = vst.msk [vmem:[#allocation2 + $0x60] sm:$0xff] %vm1217, %v1194
        %1231 = vst.msk [vmem:[#allocation2 + $0x68] sm:$0xff] %vm1217, %v1196
        %1232 = vst.msk [vmem:[#allocation2 + $0x70] sm:$0xff] %vm1217, %v1198
        %1233 = vst.msk [vmem:[#allocation2 + $0x78] sm:$0xff] %vm1217, %v1200
        %v1234 = vld [vmem:[%s975 + $0x2] sm:$0xff]
        %v1235 = vld [vmem:[%s975 + $0x12] sm:$0xff]
        %v1236 = vld [vmem:[%s975 + $0x22] sm:$0xff]
        %v1237 = vld [vmem:[%s975 + $0x32] sm:$0xff]
        %v1238 = vld [vmem:[%s975 + $0x42] sm:$0xff]
        %v1239 = vld [vmem:[%s975 + $0x52] sm:$0xff]
        %v1240 = vld [vmem:[%s975 + $0x62] sm:$0xff]
        %v1241 = vld [vmem:[%s975 + $0x72] sm:$0xff]
        %v1242 = vld [vmem:[%s975 + $0xa2] sm:$0xff]
        %v1243 = vld [vmem:[%s975 + $0xb2] sm:$0xff]
        %v1244 = vld [vmem:[%s975 + $0xc2] sm:$0xff]
        %v1245 = vld [vmem:[%s975 + $0xd2] sm:$0xff]
        %v1246 = vld [vmem:[%s975 + $0xe2] sm:$0xff]
        %v1247 = vld [vmem:[%s975 + $0xf2] sm:$0xff]
        %v1248 = vld [vmem:[%s975 + $0x102] sm:$0xff]
        %v1249 = vld [vmem:[%s975 + $0x112] sm:$0xff]
        %v1250 = vld [vmem:[%s975 + $0x142] sm:$0xff]
        %v1251 = vld [vmem:[%s975 + $0x152] sm:$0xff]
        %v1252 = vld [vmem:[%s975 + $0x162] sm:$0xff]
        %v1253 = vld [vmem:[%s975 + $0x172] sm:$0xff]
        %v1254 = vld [vmem:[%s975 + $0x182] sm:$0xff]
        %v1255 = vld [vmem:[%s975 + $0x192] sm:$0xff]
        %v1256 = vld [vmem:[%s975 + $0x1a2] sm:$0xff]
        %v1257 = vld [vmem:[%s975 + $0x1b2] sm:$0xff]
        %v1258 = vld [vmem:[%s975 + $0x1e2] sm:$0xff]
        %v1259 = vld [vmem:[%s975 + $0x1f2] sm:$0xff]
        %v1260 = vld [vmem:[%s975 + $0x202] sm:$0xff]
        %v1261 = vld [vmem:[%s975 + $0x212] sm:$0xff]
        %v1262 = vld [vmem:[%s975 + $0x222] sm:$0xff]
        %v1263 = vld [vmem:[%s975 + $0x232] sm:$0xff]
        %v1264 = vld [vmem:[%s975 + $0x242] sm:$0xff]
        %v1265 = vld [vmem:[%s975 + $0x252] sm:$0xff]
        %v1266 = vpack.c.bf16 %v1235, %v1234
        %v1267 = vpack.c.bf16 %v1237, %v1236
        %v1268 = vpack.c.bf16 %v1239, %v1238
        %v1269 = vpack.c.bf16 %v1241, %v1240
        %v1270 = vpack.c.bf16 %v1243, %v1242
        %v1271 = vpack.c.bf16 %v1245, %v1244
        %v1272 = vpack.c.bf16 %v1247, %v1246
        %v1273 = vpack.c.bf16 %v1249, %v1248
        %v1274 = vpack.c.bf16 %v1251, %v1250
        %v1275 = vpack.c.bf16 %v1253, %v1252
        %v1276 = vpack.c.bf16 %v1255, %v1254
        %v1277 = vpack.c.bf16 %v1257, %v1256
        %v1278 = vpack.c.bf16 %v1259, %v1258
        %v1279 = vpack.c.bf16 %v1261, %v1260
        %v1280 = vpack.c.bf16 %v1263, %v1262
        %v1281 = vpack.c.bf16 %v1265, %v1264
        %1298 = vrot.lane.b32.xlu0 %v1266, 32
        %v1299 = vpop.permute.xlu0 %1298
        %1300 = vrot.lane.b32.xlu0 %v1267, 32
        %v1301 = vpop.permute.xlu0 %1300
        %1302 = vrot.lane.b32.xlu0 %v1268, 32
        %v1303 = vpop.permute.xlu0 %1302
        %1304 = vrot.lane.b32.xlu0 %v1269, 32
        %v1305 = vpop.permute.xlu0 %1304
        %1306 = vrot.lane.b32.xlu0 %v1270, 32
        %v1307 = vpop.permute.xlu0 %1306
        %1308 = vrot.lane.b32.xlu0 %v1271, 32
        %v1309 = vpop.permute.xlu0 %1308
        %1310 = vrot.lane.b32.xlu0 %v1272, 32
        %v1311 = vpop.permute.xlu0 %1310
        %1312 = vrot.lane.b32.xlu0 %v1273, 32
        %v1313 = vpop.permute.xlu0 %1312
        %1314 = vrot.lane.b32.xlu0 %v1274, 32
        %v1315 = vpop.permute.xlu0 %1314
        %1316 = vrot.lane.b32.xlu0 %v1275, 32
        %v1317 = vpop.permute.xlu0 %1316
        %1318 = vrot.lane.b32.xlu0 %v1276, 32
        %v1319 = vpop.permute.xlu0 %1318
        %1320 = vrot.lane.b32.xlu0 %v1277, 32
        %v1321 = vpop.permute.xlu0 %1320
        %1322 = vrot.lane.b32.xlu0 %v1278, 32
        %v1323 = vpop.permute.xlu0 %1322
        %1324 = vrot.lane.b32.xlu0 %v1279, 32
        %v1325 = vpop.permute.xlu0 %1324
        %1326 = vrot.lane.b32.xlu0 %v1280, 32
        %v1327 = vpop.permute.xlu0 %1326
        %1328 = vrot.lane.b32.xlu0 %v1281, 32
        %v1329 = vpop.permute.xlu0 %1328
        %vm1346 = vcmask 294144
        %1347 = vst.msk [vmem:[#allocation2] sm:$0xff] %vm1346, %v1299
        %1348 = vst.msk [vmem:[#allocation2 + $0x8] sm:$0xff] %vm1346, %v1301
        %1349 = vst.msk [vmem:[#allocation2 + $0x10] sm:$0xff] %vm1346, %v1303
        %1350 = vst.msk [vmem:[#allocation2 + $0x18] sm:$0xff] %vm1346, %v1305
        %1351 = vst.msk [vmem:[#allocation2 + $0x20] sm:$0xff] %vm1346, %v1307
        %1352 = vst.msk [vmem:[#allocation2 + $0x28] sm:$0xff] %vm1346, %v1309
        %1353 = vst.msk [vmem:[#allocation2 + $0x30] sm:$0xff] %vm1346, %v1311
        %1354 = vst.msk [vmem:[#allocation2 + $0x38] sm:$0xff] %vm1346, %v1313
        %1355 = vst.msk [vmem:[#allocation2 + $0x40] sm:$0xff] %vm1346, %v1315
        %1356 = vst.msk [vmem:[#allocation2 + $0x48] sm:$0xff] %vm1346, %v1317
        %1357 = vst.msk [vmem:[#allocation2 + $0x50] sm:$0xff] %vm1346, %v1319
        %1358 = vst.msk [vmem:[#allocation2 + $0x58] sm:$0xff] %vm1346, %v1321
        %1359 = vst.msk [vmem:[#allocation2 + $0x60] sm:$0xff] %vm1346, %v1323
        %1360 = vst.msk [vmem:[#allocation2 + $0x68] sm:$0xff] %vm1346, %v1325
        %1361 = vst.msk [vmem:[#allocation2 + $0x70] sm:$0xff] %vm1346, %v1327
        %1362 = vst.msk [vmem:[#allocation2 + $0x78] sm:$0xff] %vm1346, %v1329
        %s1363 = sadd.s32 %s259, 1
        %s1364 = smul.u32 %s1363, 160
        %s1365 = scalar_lea.vmem %s256, %s1364
        %v1366 = vld [vmem:[%s1365] sm:$0xff]
        %v1367 = vld [vmem:[%s1365 + $0x10] sm:$0xff]
        %v1368 = vld [vmem:[%s1365 + $0x20] sm:$0xff]
        %v1369 = vld [vmem:[%s1365 + $0x30] sm:$0xff]
        %v1370 = vld [vmem:[%s1365 + $0x40] sm:$0xff]
        %v1371 = vld [vmem:[%s1365 + $0x50] sm:$0xff]
        %v1372 = vld [vmem:[%s1365 + $0x60] sm:$0xff]
        %v1373 = vld [vmem:[%s1365 + $0x70] sm:$0xff]
        %v1374 = vld [vmem:[%s1365 + $0xa0] sm:$0xff]
        %v1375 = vld [vmem:[%s1365 + $0xb0] sm:$0xff]
        %v1376 = vld [vmem:[%s1365 + $0xc0] sm:$0xff]
        %v1377 = vld [vmem:[%s1365 + $0xd0] sm:$0xff]
        %v1378 = vld [vmem:[%s1365 + $0xe0] sm:$0xff]
        %v1379 = vld [vmem:[%s1365 + $0xf0] sm:$0xff]
        %v1380 = vld [vmem:[%s1365 + $0x100] sm:$0xff]
        %v1381 = vld [vmem:[%s1365 + $0x110] sm:$0xff]
        %v1382 = vld [vmem:[%s1365 + $0x140] sm:$0xff]
        %v1383 = vld [vmem:[%s1365 + $0x150] sm:$0xff]
        %v1384 = vld [vmem:[%s1365 + $0x160] sm:$0xff]
        %v1385 = vld [vmem:[%s1365 + $0x170] sm:$0xff]
        %v1386 = vld [vmem:[%s1365 + $0x180] sm:$0xff]
        %v1387 = vld [vmem:[%s1365 + $0x190] sm:$0xff]
        %v1388 = vld [vmem:[%s1365 + $0x1a0] sm:$0xff]
        %v1389 = vld [vmem:[%s1365 + $0x1b0] sm:$0xff]
        %v1390 = vld [vmem:[%s1365 + $0x1e0] sm:$0xff]
        %v1391 = vld [vmem:[%s1365 + $0x1f0] sm:$0xff]
        %v1392 = vld [vmem:[%s1365 + $0x200] sm:$0xff]
        %v1393 = vld [vmem:[%s1365 + $0x210] sm:$0xff]
        %v1394 = vld [vmem:[%s1365 + $0x220] sm:$0xff]
        %v1395 = vld [vmem:[%s1365 + $0x230] sm:$0xff]
        %v1396 = vld [vmem:[%s1365 + $0x240] sm:$0xff]
        %v1397 = vld [vmem:[%s1365 + $0x250] sm:$0xff]
        %v1398 = vpack.c.bf16 %v1367, %v1366
        %v1399 = vpack.c.bf16 %v1369, %v1368
        %v1400 = vpack.c.bf16 %v1371, %v1370
        %v1401 = vpack.c.bf16 %v1373, %v1372
        %v1402 = vpack.c.bf16 %v1375, %v1374
        %v1403 = vpack.c.bf16 %v1377, %v1376
        %v1404 = vpack.c.bf16 %v1379, %v1378
        %v1405 = vpack.c.bf16 %v1381, %v1380
        %v1406 = vpack.c.bf16 %v1383, %v1382
        %v1407 = vpack.c.bf16 %v1385, %v1384
        %v1408 = vpack.c.bf16 %v1387, %v1386
        %v1409 = vpack.c.bf16 %v1389, %v1388
        %v1410 = vpack.c.bf16 %v1391, %v1390
        %v1411 = vpack.c.bf16 %v1393, %v1392
        %v1412 = vpack.c.bf16 %v1395, %v1394
        %v1413 = vpack.c.bf16 %v1397, %v1396
        %1430 = vrot.lane.b32.xlu0 %v1398, 36
        %v1431 = vpop.permute.xlu0 %1430
        %1432 = vrot.lane.b32.xlu0 %v1399, 36
        %v1433 = vpop.permute.xlu0 %1432
        %1434 = vrot.lane.b32.xlu0 %v1400, 36
        %v1435 = vpop.permute.xlu0 %1434
        %1436 = vrot.lane.b32.xlu0 %v1401, 36
        %v1437 = vpop.permute.xlu0 %1436
        %1438 = vrot.lane.b32.xlu0 %v1402, 36
        %v1439 = vpop.permute.xlu0 %1438
        %1440 = vrot.lane.b32.xlu0 %v1403, 36
        %v1441 = vpop.permute.xlu0 %1440
        %1442 = vrot.lane.b32.xlu0 %v1404, 36
        %v1443 = vpop.permute.xlu0 %1442
        %1444 = vrot.lane.b32.xlu0 %v1405, 36
        %v1445 = vpop.permute.xlu0 %1444
        %1446 = vrot.lane.b32.xlu0 %v1406, 36
        %v1447 = vpop.permute.xlu0 %1446
        %1448 = vrot.lane.b32.xlu0 %v1407, 36
        %v1449 = vpop.permute.xlu0 %1448
        %1450 = vrot.lane.b32.xlu0 %v1408, 36
        %v1451 = vpop.permute.xlu0 %1450
        %1452 = vrot.lane.b32.xlu0 %v1409, 36
        %v1453 = vpop.permute.xlu0 %1452
        %1454 = vrot.lane.b32.xlu0 %v1410, 36
        %v1455 = vpop.permute.xlu0 %1454
        %1456 = vrot.lane.b32.xlu0 %v1411, 36
        %v1457 = vpop.permute.xlu0 %1456
        %1458 = vrot.lane.b32.xlu0 %v1412, 36
        %v1459 = vpop.permute.xlu0 %1458
        %1460 = vrot.lane.b32.xlu0 %v1413, 36
        %v1461 = vpop.permute.xlu0 %1460
        %vm1478 = vcmask 326944
        %1479 = vst.msk [vmem:[#allocation2] sm:$0xff] %vm1478, %v1431
        %1480 = vst.msk [vmem:[#allocation2 + $0x8] sm:$0xff] %vm1478, %v1433
        %1481 = vst.msk [vmem:[#allocation2 + $0x10] sm:$0xff] %vm1478, %v1435
        %1482 = vst.msk [vmem:[#allocation2 + $0x18] sm:$0xff] %vm1478, %v1437
        %1483 = vst.msk [vmem:[#allocation2 + $0x20] sm:$0xff] %vm1478, %v1439
        %1484 = vst.msk [vmem:[#allocation2 + $0x28] sm:$0xff] %vm1478, %v1441
        %1485 = vst.msk [vmem:[#allocation2 + $0x30] sm:$0xff] %vm1478, %v1443
        %1486 = vst.msk [vmem:[#allocation2 + $0x38] sm:$0xff] %vm1478, %v1445
        %1487 = vst.msk [vmem:[#allocation2 + $0x40] sm:$0xff] %vm1478, %v1447
        %1488 = vst.msk [vmem:[#allocation2 + $0x48] sm:$0xff] %vm1478, %v1449
        %1489 = vst.msk [vmem:[#allocation2 + $0x50] sm:$0xff] %vm1478, %v1451
        %1490 = vst.msk [vmem:[#allocation2 + $0x58] sm:$0xff] %vm1478, %v1453
        %1491 = vst.msk [vmem:[#allocation2 + $0x60] sm:$0xff] %vm1478, %v1455
        %1492 = vst.msk [vmem:[#allocation2 + $0x68] sm:$0xff] %vm1478, %v1457
        %1493 = vst.msk [vmem:[#allocation2 + $0x70] sm:$0xff] %vm1478, %v1459
        %1494 = vst.msk [vmem:[#allocation2 + $0x78] sm:$0xff] %vm1478, %v1461
        %v1495 = vld [vmem:[%s1365 + $0x1] sm:$0xff]
        %v1496 = vld [vmem:[%s1365 + $0x11] sm:$0xff]
        %v1497 = vld [vmem:[%s1365 + $0x21] sm:$0xff]
        %v1498 = vld [vmem:[%s1365 + $0x31] sm:$0xff]
        %v1499 = vld [vmem:[%s1365 + $0x41] sm:$0xff]
        %v1500 = vld [vmem:[%s1365 + $0x51] sm:$0xff]
        %v1501 = vld [vmem:[%s1365 + $0x61] sm:$0xff]
        %v1502 = vld [vmem:[%s1365 + $0x71] sm:$0xff]
        %v1503 = vld [vmem:[%s1365 + $0xa1] sm:$0xff]
        %v1504 = vld [vmem:[%s1365 + $0xb1] sm:$0xff]
        %v1505 = vld [vmem:[%s1365 + $0xc1] sm:$0xff]
        %v1506 = vld [vmem:[%s1365 + $0xd1] sm:$0xff]
        %v1507 = vld [vmem:[%s1365 + $0xe1] sm:$0xff]
        %v1508 = vld [vmem:[%s1365 + $0xf1] sm:$0xff]
        %v1509 = vld [vmem:[%s1365 + $0x101] sm:$0xff]
        %v1510 = vld [vmem:[%s1365 + $0x111] sm:$0xff]
        %v1511 = vld [vmem:[%s1365 + $0x141] sm:$0xff]
        %v1512 = vld [vmem:[%s1365 + $0x151] sm:$0xff]
        %v1513 = vld [vmem:[%s1365 + $0x161] sm:$0xff]
        %v1514 = vld [vmem:[%s1365 + $0x171] sm:$0xff]
        %v1515 = vld [vmem:[%s1365 + $0x181] sm:$0xff]
        %v1516 = vld [vmem:[%s1365 + $0x191] sm:$0xff]
        %v1517 = vld [vmem:[%s1365 + $0x1a1] sm:$0xff]
        %v1518 = vld [vmem:[%s1365 + $0x1b1] sm:$0xff]
        %v1519 = vld [vmem:[%s1365 + $0x1e1] sm:$0xff]
        %v1520 = vld [vmem:[%s1365 + $0x1f1] sm:$0xff]
        %v1521 = vld [vmem:[%s1365 + $0x201] sm:$0xff]
        %v1522 = vld [vmem:[%s1365 + $0x211] sm:$0xff]
        %v1523 = vld [vmem:[%s1365 + $0x221] sm:$0xff]
        %v1524 = vld [vmem:[%s1365 + $0x231] sm:$0xff]
        %v1525 = vld [vmem:[%s1365 + $0x241] sm:$0xff]
        %v1526 = vld [vmem:[%s1365 + $0x251] sm:$0xff]
        %v1527 = vpack.c.bf16 %v1496, %v1495
        %v1528 = vpack.c.bf16 %v1498, %v1497
        %v1529 = vpack.c.bf16 %v1500, %v1499
        %v1530 = vpack.c.bf16 %v1502, %v1501
        %v1531 = vpack.c.bf16 %v1504, %v1503
        %v1532 = vpack.c.bf16 %v1506, %v1505
        %v1533 = vpack.c.bf16 %v1508, %v1507
        %v1534 = vpack.c.bf16 %v1510, %v1509
        %v1535 = vpack.c.bf16 %v1512, %v1511
        %v1536 = vpack.c.bf16 %v1514, %v1513
        %v1537 = vpack.c.bf16 %v1516, %v1515
        %v1538 = vpack.c.bf16 %v1518, %v1517
        %v1539 = vpack.c.bf16 %v1520, %v1519
        %v1540 = vpack.c.bf16 %v1522, %v1521
        %v1541 = vpack.c.bf16 %v1524, %v1523
        %v1542 = vpack.c.bf16 %v1526, %v1525
        %1559 = vrot.lane.b32.xlu0 %v1527, 40
        %v1560 = vpop.permute.xlu0 %1559
        %1561 = vrot.lane.b32.xlu0 %v1528, 40
        %v1562 = vpop.permute.xlu0 %1561
        %1563 = vrot.lane.b32.xlu0 %v1529, 40
        %v1564 = vpop.permute.xlu0 %1563
        %1565 = vrot.lane.b32.xlu0 %v1530, 40
        %v1566 = vpop.permute.xlu0 %1565
        %1567 = vrot.lane.b32.xlu0 %v1531, 40
        %v1568 = vpop.permute.xlu0 %1567
        %1569 = vrot.lane.b32.xlu0 %v1532, 40
        %v1570 = vpop.permute.xlu0 %1569
        %1571 = vrot.lane.b32.xlu0 %v1533, 40
        %v1572 = vpop.permute.xlu0 %1571
        %1573 = vrot.lane.b32.xlu0 %v1534, 40
        %v1574 = vpop.permute.xlu0 %1573
        %1575 = vrot.lane.b32.xlu0 %v1535, 40
        %v1576 = vpop.permute.xlu0 %1575
        %1577 = vrot.lane.b32.xlu0 %v1536, 40
        %v1578 = vpop.permute.xlu0 %1577
        %1579 = vrot.lane.b32.xlu0 %v1537, 40
        %v1580 = vpop.permute.xlu0 %1579
        %1581 = vrot.lane.b32.xlu0 %v1538, 40
        %v1582 = vpop.permute.xlu0 %1581
        %1583 = vrot.lane.b32.xlu0 %v1539, 40
        %v1584 = vpop.permute.xlu0 %1583
        %1585 = vrot.lane.b32.xlu0 %v1540, 40
        %v1586 = vpop.permute.xlu0 %1585
        %1587 = vrot.lane.b32.xlu0 %v1541, 40
        %v1588 = vpop.permute.xlu0 %1587
        %1589 = vrot.lane.b32.xlu0 %v1542, 40
        %v1590 = vpop.permute.xlu0 %1589
        %vm1607 = vcmask 359744
        %1608 = vst.msk [vmem:[#allocation2] sm:$0xff] %vm1607, %v1560
        %1609 = vst.msk [vmem:[#allocation2 + $0x8] sm:$0xff] %vm1607, %v1562
        %1610 = vst.msk [vmem:[#allocation2 + $0x10] sm:$0xff] %vm1607, %v1564
        %1611 = vst.msk [vmem:[#allocation2 + $0x18] sm:$0xff] %vm1607, %v1566
        %1612 = vst.msk [vmem:[#allocation2 + $0x20] sm:$0xff] %vm1607, %v1568
        %1613 = vst.msk [vmem:[#allocation2 + $0x28] sm:$0xff] %vm1607, %v1570
        %1614 = vst.msk [vmem:[#allocation2 + $0x30] sm:$0xff] %vm1607, %v1572
        %1615 = vst.msk [vmem:[#allocation2 + $0x38] sm:$0xff] %vm1607, %v1574
        %1616 = vst.msk [vmem:[#allocation2 + $0x40] sm:$0xff] %vm1607, %v1576
        %1617 = vst.msk [vmem:[#allocation2 + $0x48] sm:$0xff] %vm1607, %v1578
        %1618 = vst.msk [vmem:[#allocation2 + $0x50] sm:$0xff] %vm1607, %v1580
        %1619 = vst.msk [vmem:[#allocation2 + $0x58] sm:$0xff] %vm1607, %v1582
        %1620 = vst.msk [vmem:[#allocation2 + $0x60] sm:$0xff] %vm1607, %v1584
        %1621 = vst.msk [vmem:[#allocation2 + $0x68] sm:$0xff] %vm1607, %v1586
        %1622 = vst.msk [vmem:[#allocation2 + $0x70] sm:$0xff] %vm1607, %v1588
        %1623 = vst.msk [vmem:[#allocation2 + $0x78] sm:$0xff] %vm1607, %v1590
        %v1624 = vld [vmem:[%s1365 + $0x2] sm:$0xff]
        %v1625 = vld [vmem:[%s1365 + $0x12] sm:$0xff]
        %v1626 = vld [vmem:[%s1365 + $0x22] sm:$0xff]
        %v1627 = vld [vmem:[%s1365 + $0x32] sm:$0xff]
        %v1628 = vld [vmem:[%s1365 + $0x42] sm:$0xff]
        %v1629 = vld [vmem:[%s1365 + $0x52] sm:$0xff]
        %v1630 = vld [vmem:[%s1365 + $0x62] sm:$0xff]
        %v1631 = vld [vmem:[%s1365 + $0x72] sm:$0xff]
        %v1632 = vld [vmem:[%s1365 + $0xa2] sm:$0xff]
        %v1633 = vld [vmem:[%s1365 + $0xb2] sm:$0xff]
        %v1634 = vld [vmem:[%s1365 + $0xc2] sm:$0xff]
        %v1635 = vld [vmem:[%s1365 + $0xd2] sm:$0xff]
        %v1636 = vld [vmem:[%s1365 + $0xe2] sm:$0xff]
        %v1637 = vld [vmem:[%s1365 + $0xf2] sm:$0xff]
        %v1638 = vld [vmem:[%s1365 + $0x102] sm:$0xff]
        %v1639 = vld [vmem:[%s1365 + $0x112] sm:$0xff]
        %v1640 = vld [vmem:[%s1365 + $0x142] sm:$0xff]
        %v1641 = vld [vmem:[%s1365 + $0x152] sm:$0xff]
        %v1642 = vld [vmem:[%s1365 + $0x162] sm:$0xff]
        %v1643 = vld [vmem:[%s1365 + $0x172] sm:$0xff]
        %v1644 = vld [vmem:[%s1365 + $0x182] sm:$0xff]
        %v1645 = vld [vmem:[%s1365 + $0x192] sm:$0xff]
        %v1646 = vld [vmem:[%s1365 + $0x1a2] sm:$0xff]
        %v1647 = vld [vmem:[%s1365 + $0x1b2] sm:$0xff]
        %v1648 = vld [vmem:[%s1365 + $0x1e2] sm:$0xff]
        %v1649 = vld [vmem:[%s1365 + $0x1f2] sm:$0xff]
        %v1650 = vld [vmem:[%s1365 + $0x202] sm:$0xff]
        %v1651 = vld [vmem:[%s1365 + $0x212] sm:$0xff]
        %v1652 = vld [vmem:[%s1365 + $0x222] sm:$0xff]
        %v1653 = vld [vmem:[%s1365 + $0x232] sm:$0xff]
        %v1654 = vld [vmem:[%s1365 + $0x242] sm:$0xff]
        %v1655 = vld [vmem:[%s1365 + $0x252] sm:$0xff]
        %v1656 = vpack.c.bf16 %v1625, %v1624
        %v1657 = vpack.c.bf16 %v1627, %v1626
        %v1658 = vpack.c.bf16 %v1629, %v1628
        %v1659 = vpack.c.bf16 %v1631, %v1630
        %v1660 = vpack.c.bf16 %v1633, %v1632
        %v1661 = vpack.c.bf16 %v1635, %v1634
        %v1662 = vpack.c.bf16 %v1637, %v1636
        %v1663 = vpack.c.bf16 %v1639, %v1638
        %v1664 = vpack.c.bf16 %v1641, %v1640
        %v1665 = vpack.c.bf16 %v1643, %v1642
        %v1666 = vpack.c.bf16 %v1645, %v1644
        %v1667 = vpack.c.bf16 %v1647, %v1646
        %v1668 = vpack.c.bf16 %v1649, %v1648
        %v1669 = vpack.c.bf16 %v1651, %v1650
        %v1670 = vpack.c.bf16 %v1653, %v1652
        %v1671 = vpack.c.bf16 %v1655, %v1654
        %1688 = vrot.lane.b32.xlu0 %v1656, 44
        %v1689 = vpop.permute.xlu0 %1688
        %1690 = vrot.lane.b32.xlu0 %v1657, 44
        %v1691 = vpop.permute.xlu0 %1690
        %1692 = vrot.lane.b32.xlu0 %v1658, 44
        %v1693 = vpop.permute.xlu0 %1692
        %1694 = vrot.lane.b32.xlu0 %v1659, 44
        %v1695 = vpop.permute.xlu0 %1694
        %1696 = vrot.lane.b32.xlu0 %v1660, 44
        %v1697 = vpop.permute.xlu0 %1696
        %1698 = vrot.lane.b32.xlu0 %v1661, 44
        %v1699 = vpop.permute.xlu0 %1698
        %1700 = vrot.lane.b32.xlu0 %v1662, 44
        %v1701 = vpop.permute.xlu0 %1700
        %1702 = vrot.lane.b32.xlu0 %v1663, 44
        %v1703 = vpop.permute.xlu0 %1702
        %1704 = vrot.lane.b32.xlu0 %v1664, 44
        %v1705 = vpop.permute.xlu0 %1704
        %1706 = vrot.lane.b32.xlu0 %v1665, 44
        %v1707 = vpop.permute.xlu0 %1706
        %1708 = vrot.lane.b32.xlu0 %v1666, 44
        %v1709 = vpop.permute.xlu0 %1708
        %1710 = vrot.lane.b32.xlu0 %v1667, 44
        %v1711 = vpop.permute.xlu0 %1710
        %1712 = vrot.lane.b32.xlu0 %v1668, 44
        %v1713 = vpop.permute.xlu0 %1712
        %1714 = vrot.lane.b32.xlu0 %v1669, 44
        %v1715 = vpop.permute.xlu0 %1714
        %1716 = vrot.lane.b32.xlu0 %v1670, 44
        %v1717 = vpop.permute.xlu0 %1716
        %1718 = vrot.lane.b32.xlu0 %v1671, 44
        %v1719 = vpop.permute.xlu0 %1718
        %vm1736 = vcmask 392544
        %1737 = vst.msk [vmem:[#allocation2] sm:$0xff] %vm1736, %v1689
        %1738 = vst.msk [vmem:[#allocation2 + $0x8] sm:$0xff] %vm1736, %v1691
        %1739 = vst.msk [vmem:[#allocation2 + $0x10] sm:$0xff] %vm1736, %v1693
        %1740 = vst.msk [vmem:[#allocation2 + $0x18] sm:$0xff] %vm1736, %v1695
        %1741 = vst.msk [vmem:[#allocation2 + $0x20] sm:$0xff] %vm1736, %v1697
        %1742 = vst.msk [vmem:[#allocation2 + $0x28] sm:$0xff] %vm1736, %v1699
        %1743 = vst.msk [vmem:[#allocation2 + $0x30] sm:$0xff] %vm1736, %v1701
        %1744 = vst.msk [vmem:[#allocation2 + $0x38] sm:$0xff] %vm1736, %v1703
        %1745 = vst.msk [vmem:[#allocation2 + $0x40] sm:$0xff] %vm1736, %v1705
        %1746 = vst.msk [vmem:[#allocation2 + $0x48] sm:$0xff] %vm1736, %v1707
        %1747 = vst.msk [vmem:[#allocation2 + $0x50] sm:$0xff] %vm1736, %v1709
        %1748 = vst.msk [vmem:[#allocation2 + $0x58] sm:$0xff] %vm1736, %v1711
        %1749 = vst.msk [vmem:[#allocation2 + $0x60] sm:$0xff] %vm1736, %v1713
        %1750 = vst.msk [vmem:[#allocation2 + $0x68] sm:$0xff] %vm1736, %v1715
        %1751 = vst.msk [vmem:[#allocation2 + $0x70] sm:$0xff] %vm1736, %v1717
        %1752 = vst.msk [vmem:[#allocation2 + $0x78] sm:$0xff] %vm1736, %v1719
        %s1753 = sadd.s32 16, %s1364
        %s1754 = scalar_lea.vmem %s256, %s1753
        %v1755 = vld [vmem:[%s1754] sm:$0xff]
        %v1756 = vld [vmem:[%s1754 + $0x10] sm:$0xff]
        %v1757 = vld [vmem:[%s1754 + $0x20] sm:$0xff]
        %v1758 = vld [vmem:[%s1754 + $0x30] sm:$0xff]
        %v1759 = vld [vmem:[%s1754 + $0x40] sm:$0xff]
        %v1760 = vld [vmem:[%s1754 + $0x50] sm:$0xff]
        %v1761 = vld [vmem:[%s1754 + $0x60] sm:$0xff]
        %v1762 = vld [vmem:[%s1754 + $0x70] sm:$0xff]
        %v1763 = vld [vmem:[%s1754 + $0xa0] sm:$0xff]
        %v1764 = vld [vmem:[%s1754 + $0xb0] sm:$0xff]
        %v1765 = vld [vmem:[%s1754 + $0xc0] sm:$0xff]
        %v1766 = vld [vmem:[%s1754 + $0xd0] sm:$0xff]
        %v1767 = vld [vmem:[%s1754 + $0xe0] sm:$0xff]
        %v1768 = vld [vmem:[%s1754 + $0xf0] sm:$0xff]
        %v1769 = vld [vmem:[%s1754 + $0x100] sm:$0xff]
        %v1770 = vld [vmem:[%s1754 + $0x110] sm:$0xff]
        %v1771 = vld [vmem:[%s1754 + $0x140] sm:$0xff]
        %v1772 = vld [vmem:[%s1754 + $0x150] sm:$0xff]
        %v1773 = vld [vmem:[%s1754 + $0x160] sm:$0xff]
        %v1774 = vld [vmem:[%s1754 + $0x170] sm:$0xff]
        %v1775 = vld [vmem:[%s1754 + $0x180] sm:$0xff]
        %v1776 = vld [vmem:[%s1754 + $0x190] sm:$0xff]
        %v1777 = vld [vmem:[%s1754 + $0x1a0] sm:$0xff]
        %v1778 = vld [vmem:[%s1754 + $0x1b0] sm:$0xff]
        %v1779 = vld [vmem:[%s1754 + $0x1e0] sm:$0xff]
        %v1780 = vld [vmem:[%s1754 + $0x1f0] sm:$0xff]
        %v1781 = vld [vmem:[%s1754 + $0x200] sm:$0xff]
        %v1782 = vld [vmem:[%s1754 + $0x210] sm:$0xff]
        %v1783 = vld [vmem:[%s1754 + $0x220] sm:$0xff]
        %v1784 = vld [vmem:[%s1754 + $0x230] sm:$0xff]
        %v1785 = vld [vmem:[%s1754 + $0x240] sm:$0xff]
        %v1786 = vld [vmem:[%s1754 + $0x250] sm:$0xff]
        %v1787 = vpack.c.bf16 %v1756, %v1755
        %v1788 = vpack.c.bf16 %v1758, %v1757
        %v1789 = vpack.c.bf16 %v1760, %v1759
        %v1790 = vpack.c.bf16 %v1762, %v1761
        %v1791 = vpack.c.bf16 %v1764, %v1763
        %v1792 = vpack.c.bf16 %v1766, %v1765
        %v1793 = vpack.c.bf16 %v1768, %v1767
        %v1794 = vpack.c.bf16 %v1770, %v1769
        %v1795 = vpack.c.bf16 %v1772, %v1771
        %v1796 = vpack.c.bf16 %v1774, %v1773
        %v1797 = vpack.c.bf16 %v1776, %v1775
        %v1798 = vpack.c.bf16 %v1778, %v1777
        %v1799 = vpack.c.bf16 %v1780, %v1779
        %v1800 = vpack.c.bf16 %v1782, %v1781
        %v1801 = vpack.c.bf16 %v1784, %v1783
        %v1802 = vpack.c.bf16 %v1786, %v1785
        %1819 = vrot.lane.b32.xlu0 %v1787, 48
        %v1820 = vpop.permute.xlu0 %1819
        %1821 = vrot.lane.b32.xlu0 %v1788, 48
        %v1822 = vpop.permute.xlu0 %1821
        %1823 = vrot.lane.b32.xlu0 %v1789, 48
        %v1824 = vpop.permute.xlu0 %1823
        %1825 = vrot.lane.b32.xlu0 %v1790, 48
        %v1826 = vpop.permute.xlu0 %1825
        %1827 = vrot.lane.b32.xlu0 %v1791, 48
        %v1828 = vpop.permute.xlu0 %1827
        %1829 = vrot.lane.b32.xlu0 %v1792, 48
        %v1830 = vpop.permute.xlu0 %1829
        %1831 = vrot.lane.b32.xlu0 %v1793, 48
        %v1832 = vpop.permute.xlu0 %1831
        %1833 = vrot.lane.b32.xlu0 %v1794, 48
        %v1834 = vpop.permute.xlu0 %1833
        %1835 = vrot.lane.b32.xlu0 %v1795, 48
        %v1836 = vpop.permute.xlu0 %1835
        %1837 = vrot.lane.b32.xlu0 %v1796, 48
        %v1838 = vpop.permute.xlu0 %1837
        %1839 = vrot.lane.b32.xlu0 %v1797, 48
        %v1840 = vpop.permute.xlu0 %1839
        %1841 = vrot.lane.b32.xlu0 %v1798, 48
        %v1842 = vpop.permute.xlu0 %1841
        %1843 = vrot.lane.b32.xlu0 %v1799, 48
        %v1844 = vpop.permute.xlu0 %1843
        %1845 = vrot.lane.b32.xlu0 %v1800, 48
        %v1846 = vpop.permute.xlu0 %1845
        %1847 = vrot.lane.b32.xlu0 %v1801, 48
        %v1848 = vpop.permute.xlu0 %1847
        %1849 = vrot.lane.b32.xlu0 %v1802, 48
        %v1850 = vpop.permute.xlu0 %1849
        %vm1867 = vcmask 425344
        %1868 = vst.msk [vmem:[#allocation2] sm:$0xff] %vm1867, %v1820
        %1869 = vst.msk [vmem:[#allocation2 + $0x8] sm:$0xff] %vm1867, %v1822
        %1870 = vst.msk [vmem:[#allocation2 + $0x10] sm:$0xff] %vm1867, %v1824
        %1871 = vst.msk [vmem:[#allocation2 + $0x18] sm:$0xff] %vm1867, %v1826
        %1872 = vst.msk [vmem:[#allocation2 + $0x20] sm:$0xff] %vm1867, %v1828
        %1873 = vst.msk [vmem:[#allocation2 + $0x28] sm:$0xff] %vm1867, %v1830
        %1874 = vst.msk [vmem:[#allocation2 + $0x30] sm:$0xff] %vm1867, %v1832
        %1875 = vst.msk [vmem:[#allocation2 + $0x38] sm:$0xff] %vm1867, %v1834
        %1876 = vst.msk [vmem:[#allocation2 + $0x40] sm:$0xff] %vm1867, %v1836
        %1877 = vst.msk [vmem:[#allocation2 + $0x48] sm:$0xff] %vm1867, %v1838
        %1878 = vst.msk [vmem:[#allocation2 + $0x50] sm:$0xff] %vm1867, %v1840
        %1879 = vst.msk [vmem:[#allocation2 + $0x58] sm:$0xff] %vm1867, %v1842
        %1880 = vst.msk [vmem:[#allocation2 + $0x60] sm:$0xff] %vm1867, %v1844
        %1881 = vst.msk [vmem:[#allocation2 + $0x68] sm:$0xff] %vm1867, %v1846
        %1882 = vst.msk [vmem:[#allocation2 + $0x70] sm:$0xff] %vm1867, %v1848
        %1883 = vst.msk [vmem:[#allocation2 + $0x78] sm:$0xff] %vm1867, %v1850
        %v1884 = vld [vmem:[%s1754 + $0x1] sm:$0xff]
        %v1885 = vld [vmem:[%s1754 + $0x11] sm:$0xff]
        %v1886 = vld [vmem:[%s1754 + $0x21] sm:$0xff]
        %v1887 = vld [vmem:[%s1754 + $0x31] sm:$0xff]
        %v1888 = vld [vmem:[%s1754 + $0x41] sm:$0xff]
        %v1889 = vld [vmem:[%s1754 + $0x51] sm:$0xff]
        %v1890 = vld [vmem:[%s1754 + $0x61] sm:$0xff]
        %v1891 = vld [vmem:[%s1754 + $0x71] sm:$0xff]
        %v1892 = vld [vmem:[%s1754 + $0xa1] sm:$0xff]
        %v1893 = vld [vmem:[%s1754 + $0xb1] sm:$0xff]
        %v1894 = vld [vmem:[%s1754 + $0xc1] sm:$0xff]
        %v1895 = vld [vmem:[%s1754 + $0xd1] sm:$0xff]
        %v1896 = vld [vmem:[%s1754 + $0xe1] sm:$0xff]
        %v1897 = vld [vmem:[%s1754 + $0xf1] sm:$0xff]
        %v1898 = vld [vmem:[%s1754 + $0x101] sm:$0xff]
        %v1899 = vld [vmem:[%s1754 + $0x111] sm:$0xff]
        %v1900 = vld [vmem:[%s1754 + $0x141] sm:$0xff]
        %v1901 = vld [vmem:[%s1754 + $0x151] sm:$0xff]
        %v1902 = vld [vmem:[%s1754 + $0x161] sm:$0xff]
        %v1903 = vld [vmem:[%s1754 + $0x171] sm:$0xff]
        %v1904 = vld [vmem:[%s1754 + $0x181] sm:$0xff]
        %v1905 = vld [vmem:[%s1754 + $0x191] sm:$0xff]
        %v1906 = vld [vmem:[%s1754 + $0x1a1] sm:$0xff]
        %v1907 = vld [vmem:[%s1754 + $0x1b1] sm:$0xff]
        %v1908 = vld [vmem:[%s1754 + $0x1e1] sm:$0xff]
        %v1909 = vld [vmem:[%s1754 + $0x1f1] sm:$0xff]
        %v1910 = vld [vmem:[%s1754 + $0x201] sm:$0xff]
        %v1911 = vld [vmem:[%s1754 + $0x211] sm:$0xff]
        %v1912 = vld [vmem:[%s1754 + $0x221] sm:$0xff]
        %v1913 = vld [vmem:[%s1754 + $0x231] sm:$0xff]
        %v1914 = vld [vmem:[%s1754 + $0x241] sm:$0xff]
        %v1915 = vld [vmem:[%s1754 + $0x251] sm:$0xff]
        %v1916 = vpack.c.bf16 %v1885, %v1884
        %v1917 = vpack.c.bf16 %v1887, %v1886
        %v1918 = vpack.c.bf16 %v1889, %v1888
        %v1919 = vpack.c.bf16 %v1891, %v1890
        %v1920 = vpack.c.bf16 %v1893, %v1892
        %v1921 = vpack.c.bf16 %v1895, %v1894
        %v1922 = vpack.c.bf16 %v1897, %v1896
        %v1923 = vpack.c.bf16 %v1899, %v1898
        %v1924 = vpack.c.bf16 %v1901, %v1900
        %v1925 = vpack.c.bf16 %v1903, %v1902
        %v1926 = vpack.c.bf16 %v1905, %v1904
        %v1927 = vpack.c.bf16 %v1907, %v1906
        %v1928 = vpack.c.bf16 %v1909, %v1908
        %v1929 = vpack.c.bf16 %v1911, %v1910
        %v1930 = vpack.c.bf16 %v1913, %v1912
        %v1931 = vpack.c.bf16 %v1915, %v1914
        %1948 = vrot.lane.b32.xlu0 %v1916, 52
        %v1949 = vpop.permute.xlu0 %1948
        %1950 = vrot.lane.b32.xlu0 %v1917, 52
        %v1951 = vpop.permute.xlu0 %1950
        %1952 = vrot.lane.b32.xlu0 %v1918, 52
        %v1953 = vpop.permute.xlu0 %1952
        %1954 = vrot.lane.b32.xlu0 %v1919, 52
        %v1955 = vpop.permute.xlu0 %1954
        %1956 = vrot.lane.b32.xlu0 %v1920, 52
        %v1957 = vpop.permute.xlu0 %1956
        %1958 = vrot.lane.b32.xlu0 %v1921, 52
        %v1959 = vpop.permute.xlu0 %1958
        %1960 = vrot.lane.b32.xlu0 %v1922, 52
        %v1961 = vpop.permute.xlu0 %1960
        %1962 = vrot.lane.b32.xlu0 %v1923, 52
        %v1963 = vpop.permute.xlu0 %1962
        %1964 = vrot.lane.b32.xlu0 %v1924, 52
        %v1965 = vpop.permute.xlu0 %1964
        %1966 = vrot.lane.b32.xlu0 %v1925, 52
        %v1967 = vpop.permute.xlu0 %1966
        %1968 = vrot.lane.b32.xlu0 %v1926, 52
        %v1969 = vpop.permute.xlu0 %1968
        %1970 = vrot.lane.b32.xlu0 %v1927, 52
        %v1971 = vpop.permute.xlu0 %1970
        %1972 = vrot.lane.b32.xlu0 %v1928, 52
        %v1973 = vpop.permute.xlu0 %1972
        %1974 = vrot.lane.b32.xlu0 %v1929, 52
        %v1975 = vpop.permute.xlu0 %1974
        %1976 = vrot.lane.b32.xlu0 %v1930, 52
        %v1977 = vpop.permute.xlu0 %1976
        %1978 = vrot.lane.b32.xlu0 %v1931, 52
        %v1979 = vpop.permute.xlu0 %1978
        %vm1996 = vcmask 458144
        %1997 = vst.msk [vmem:[#allocation2] sm:$0xff] %vm1996, %v1949
        %1998 = vst.msk [vmem:[#allocation2 + $0x8] sm:$0xff] %vm1996, %v1951
        %1999 = vst.msk [vmem:[#allocation2 + $0x10] sm:$0xff] %vm1996, %v1953
        %2000 = vst.msk [vmem:[#allocation2 + $0x18] sm:$0xff] %vm1996, %v1955
        %2001 = vst.msk [vmem:[#allocation2 + $0x20] sm:$0xff] %vm1996, %v1957
        %2002 = vst.msk [vmem:[#allocation2 + $0x28] sm:$0xff] %vm1996, %v1959
        %2003 = vst.msk [vmem:[#allocation2 + $0x30] sm:$0xff] %vm1996, %v1961
        %2004 = vst.msk [vmem:[#allocation2 + $0x38] sm:$0xff] %vm1996, %v1963
        %2005 = vst.msk [vmem:[#allocation2 + $0x40] sm:$0xff] %vm1996, %v1965
        %2006 = vst.msk [vmem:[#allocation2 + $0x48] sm:$0xff] %vm1996, %v1967
        %2007 = vst.msk [vmem:[#allocation2 + $0x50] sm:$0xff] %vm1996, %v1969
        %2008 = vst.msk [vmem:[#allocation2 + $0x58] sm:$0xff] %vm1996, %v1971
        %2009 = vst.msk [vmem:[#allocation2 + $0x60] sm:$0xff] %vm1996, %v1973
        %2010 = vst.msk [vmem:[#allocation2 + $0x68] sm:$0xff] %vm1996, %v1975
        %2011 = vst.msk [vmem:[#allocation2 + $0x70] sm:$0xff] %vm1996, %v1977
        %2012 = vst.msk [vmem:[#allocation2 + $0x78] sm:$0xff] %vm1996, %v1979
        %v2013 = vld [vmem:[%s1754 + $0x2] sm:$0xff]
        %v2014 = vld [vmem:[%s1754 + $0x12] sm:$0xff]
        %v2015 = vld [vmem:[%s1754 + $0x22] sm:$0xff]
        %v2016 = vld [vmem:[%s1754 + $0x32] sm:$0xff]
        %v2017 = vld [vmem:[%s1754 + $0x42] sm:$0xff]
        %v2018 = vld [vmem:[%s1754 + $0x52] sm:$0xff]
        %v2019 = vld [vmem:[%s1754 + $0x62] sm:$0xff]
        %v2020 = vld [vmem:[%s1754 + $0x72] sm:$0xff]
        %v2021 = vld [vmem:[%s1754 + $0xa2] sm:$0xff]
        %v2022 = vld [vmem:[%s1754 + $0xb2] sm:$0xff]
        %v2023 = vld [vmem:[%s1754 + $0xc2] sm:$0xff]
        %v2024 = vld [vmem:[%s1754 + $0xd2] sm:$0xff]
        %v2025 = vld [vmem:[%s1754 + $0xe2] sm:$0xff]
        %v2026 = vld [vmem:[%s1754 + $0xf2] sm:$0xff]
        %v2027 = vld [vmem:[%s1754 + $0x102] sm:$0xff]
        %v2028 = vld [vmem:[%s1754 + $0x112] sm:$0xff]
        %v2029 = vld [vmem:[%s1754 + $0x142] sm:$0xff]
        %v2030 = vld [vmem:[%s1754 + $0x152] sm:$0xff]
        %v2031 = vld [vmem:[%s1754 + $0x162] sm:$0xff]
        %v2032 = vld [vmem:[%s1754 + $0x172] sm:$0xff]
        %v2033 = vld [vmem:[%s1754 + $0x182] sm:$0xff]
        %v2034 = vld [vmem:[%s1754 + $0x192] sm:$0xff]
        %v2035 = vld [vmem:[%s1754 + $0x1a2] sm:$0xff]
        %v2036 = vld [vmem:[%s1754 + $0x1b2] sm:$0xff]
        %v2037 = vld [vmem:[%s1754 + $0x1e2] sm:$0xff]
        %v2038 = vld [vmem:[%s1754 + $0x1f2] sm:$0xff]
        %v2039 = vld [vmem:[%s1754 + $0x202] sm:$0xff]
        %v2040 = vld [vmem:[%s1754 + $0x212] sm:$0xff]
        %v2041 = vld [vmem:[%s1754 + $0x222] sm:$0xff]
        %v2042 = vld [vmem:[%s1754 + $0x232] sm:$0xff]
        %v2043 = vld [vmem:[%s1754 + $0x242] sm:$0xff]
        %v2044 = vld [vmem:[%s1754 + $0x252] sm:$0xff]
        %v2045 = vpack.c.bf16 %v2014, %v2013
        %v2046 = vpack.c.bf16 %v2016, %v2015
        %v2047 = vpack.c.bf16 %v2018, %v2017
        %v2048 = vpack.c.bf16 %v2020, %v2019
        %v2049 = vpack.c.bf16 %v2022, %v2021
        %v2050 = vpack.c.bf16 %v2024, %v2023
        %v2051 = vpack.c.bf16 %v2026, %v2025
        %v2052 = vpack.c.bf16 %v2028, %v2027
        %v2053 = vpack.c.bf16 %v2030, %v2029
        %v2054 = vpack.c.bf16 %v2032, %v2031
        %v2055 = vpack.c.bf16 %v2034, %v2033
        %v2056 = vpack.c.bf16 %v2036, %v2035
        %v2057 = vpack.c.bf16 %v2038, %v2037
        %v2058 = vpack.c.bf16 %v2040, %v2039
        %v2059 = vpack.c.bf16 %v2042, %v2041
        %v2060 = vpack.c.bf16 %v2044, %v2043
        %2077 = vrot.lane.b32.xlu0 %v2045, 56
        %v2078 = vpop.permute.xlu0 %2077
        %2079 = vrot.lane.b32.xlu0 %v2046, 56
        %v2080 = vpop.permute.xlu0 %2079
        %2081 = vrot.lane.b32.xlu0 %v2047, 56
        %v2082 = vpop.permute.xlu0 %2081
        %2083 = vrot.lane.b32.xlu0 %v2048, 56
        %v2084 = vpop.permute.xlu0 %2083
        %2085 = vrot.lane.b32.xlu0 %v2049, 56
        %v2086 = vpop.permute.xlu0 %2085
        %2087 = vrot.lane.b32.xlu0 %v2050, 56
        %v2088 = vpop.permute.xlu0 %2087
        %2089 = vrot.lane.b32.xlu0 %v2051, 56
        %v2090 = vpop.permute.xlu0 %2089
        %2091 = vrot.lane.b32.xlu0 %v2052, 56
        %v2092 = vpop.permute.xlu0 %2091
        %2093 = vrot.lane.b32.xlu0 %v2053, 56
        %v2094 = vpop.permute.xlu0 %2093
        %2095 = vrot.lane.b32.xlu0 %v2054, 56
        %v2096 = vpop.permute.xlu0 %2095
        %2097 = vrot.lane.b32.xlu0 %v2055, 56
        %v2098 = vpop.permute.xlu0 %2097
        %2099 = vrot.lane.b32.xlu0 %v2056, 56
        %v2100 = vpop.permute.xlu0 %2099
        %2101 = vrot.lane.b32.xlu0 %v2057, 56
        %v2102 = vpop.permute.xlu0 %2101
        %2103 = vrot.lane.b32.xlu0 %v2058, 56
        %v2104 = vpop.permute.xlu0 %2103
        %2105 = vrot.lane.b32.xlu0 %v2059, 56
        %v2106 = vpop.permute.xlu0 %2105
        %2107 = vrot.lane.b32.xlu0 %v2060, 56
        %v2108 = vpop.permute.xlu0 %2107
        %vm2125 = vcmask 490944
        %2126 = vst.msk [vmem:[#allocation2] sm:$0xff] %vm2125, %v2078
        %2127 = vst.msk [vmem:[#allocation2 + $0x8] sm:$0xff] %vm2125, %v2080
        %2128 = vst.msk [vmem:[#allocation2 + $0x10] sm:$0xff] %vm2125, %v2082
        %2129 = vst.msk [vmem:[#allocation2 + $0x18] sm:$0xff] %vm2125, %v2084
        %2130 = vst.msk [vmem:[#allocation2 + $0x20] sm:$0xff] %vm2125, %v2086
        %2131 = vst.msk [vmem:[#allocation2 + $0x28] sm:$0xff] %vm2125, %v2088
        %2132 = vst.msk [vmem:[#allocation2 + $0x30] sm:$0xff] %vm2125, %v2090
        %2133 = vst.msk [vmem:[#allocation2 + $0x38] sm:$0xff] %vm2125, %v2092
        %2134 = vst.msk [vmem:[#allocation2 + $0x40] sm:$0xff] %vm2125, %v2094
        %2135 = vst.msk [vmem:[#allocation2 + $0x48] sm:$0xff] %vm2125, %v2096
        %2136 = vst.msk [vmem:[#allocation2 + $0x50] sm:$0xff] %vm2125, %v2098
        %2137 = vst.msk [vmem:[#allocation2 + $0x58] sm:$0xff] %vm2125, %v2100
        %2138 = vst.msk [vmem:[#allocation2 + $0x60] sm:$0xff] %vm2125, %v2102
        %2139 = vst.msk [vmem:[#allocation2 + $0x68] sm:$0xff] %vm2125, %v2104
        %2140 = vst.msk [vmem:[#allocation2 + $0x70] sm:$0xff] %vm2125, %v2106
        %2141 = vst.msk [vmem:[#allocation2 + $0x78] sm:$0xff] %vm2125, %v2108
        %s2142 = sadd.s32 32, %s1364
        %s2143 = scalar_lea.vmem %s256, %s2142
        %v2144 = vld [vmem:[%s2143] sm:$0xff]
        %v2145 = vld [vmem:[%s2143 + $0x10] sm:$0xff]
        %v2146 = vld [vmem:[%s2143 + $0x20] sm:$0xff]
        %v2147 = vld [vmem:[%s2143 + $0x30] sm:$0xff]
        %v2148 = vld [vmem:[%s2143 + $0x40] sm:$0xff]
        %v2149 = vld [vmem:[%s2143 + $0x50] sm:$0xff]
        %v2150 = vld [vmem:[%s2143 + $0x60] sm:$0xff]
        %v2151 = vld [vmem:[%s2143 + $0x70] sm:$0xff]
        %v2152 = vld [vmem:[%s2143 + $0xa0] sm:$0xff]
        %v2153 = vld [vmem:[%s2143 + $0xb0] sm:$0xff]
        %v2154 = vld [vmem:[%s2143 + $0xc0] sm:$0xff]
        %v2155 = vld [vmem:[%s2143 + $0xd0] sm:$0xff]
        %v2156 = vld [vmem:[%s2143 + $0xe0] sm:$0xff]
        %v2157 = vld [vmem:[%s2143 + $0xf0] sm:$0xff]
        %v2158 = vld [vmem:[%s2143 + $0x100] sm:$0xff]
        %v2159 = vld [vmem:[%s2143 + $0x110] sm:$0xff]
        %v2160 = vld [vmem:[%s2143 + $0x140] sm:$0xff]
        %v2161 = vld [vmem:[%s2143 + $0x150] sm:$0xff]
        %v2162 = vld [vmem:[%s2143 + $0x160] sm:$0xff]
        %v2163 = vld [vmem:[%s2143 + $0x170] sm:$0xff]
        %v2164 = vld [vmem:[%s2143 + $0x180] sm:$0xff]
        %v2165 = vld [vmem:[%s2143 + $0x190] sm:$0xff]
        %v2166 = vld [vmem:[%s2143 + $0x1a0] sm:$0xff]
        %v2167 = vld [vmem:[%s2143 + $0x1b0] sm:$0xff]
        %v2168 = vld [vmem:[%s2143 + $0x1e0] sm:$0xff]
        %v2169 = vld [vmem:[%s2143 + $0x1f0] sm:$0xff]
        %v2170 = vld [vmem:[%s2143 + $0x200] sm:$0xff]
        %v2171 = vld [vmem:[%s2143 + $0x210] sm:$0xff]
        %v2172 = vld [vmem:[%s2143 + $0x220] sm:$0xff]
        %v2173 = vld [vmem:[%s2143 + $0x230] sm:$0xff]
        %v2174 = vld [vmem:[%s2143 + $0x240] sm:$0xff]
        %v2175 = vld [vmem:[%s2143 + $0x250] sm:$0xff]
        %v2176 = vpack.c.bf16 %v2145, %v2144
        %v2177 = vpack.c.bf16 %v2147, %v2146
        %v2178 = vpack.c.bf16 %v2149, %v2148
        %v2179 = vpack.c.bf16 %v2151, %v2150
        %v2180 = vpack.c.bf16 %v2153, %v2152
        %v2181 = vpack.c.bf16 %v2155, %v2154
        %v2182 = vpack.c.bf16 %v2157, %v2156
        %v2183 = vpack.c.bf16 %v2159, %v2158
        %v2184 = vpack.c.bf16 %v2161, %v2160
        %v2185 = vpack.c.bf16 %v2163, %v2162
        %v2186 = vpack.c.bf16 %v2165, %v2164
        %v2187 = vpack.c.bf16 %v2167, %v2166
        %v2188 = vpack.c.bf16 %v2169, %v2168
        %v2189 = vpack.c.bf16 %v2171, %v2170
        %v2190 = vpack.c.bf16 %v2173, %v2172
        %v2191 = vpack.c.bf16 %v2175, %v2174
        %2208 = vrot.lane.b32.xlu0 %v2176, 60
        %v2209 = vpop.permute.xlu0 %2208
        %2210 = vrot.lane.b32.xlu0 %v2177, 60
        %v2211 = vpop.permute.xlu0 %2210
        %2212 = vrot.lane.b32.xlu0 %v2178, 60
        %v2213 = vpop.permute.xlu0 %2212
        %2214 = vrot.lane.b32.xlu0 %v2179, 60
        %v2215 = vpop.permute.xlu0 %2214
        %2216 = vrot.lane.b32.xlu0 %v2180, 60
        %v2217 = vpop.permute.xlu0 %2216
        %2218 = vrot.lane.b32.xlu0 %v2181, 60
        %v2219 = vpop.permute.xlu0 %2218
        %2220 = vrot.lane.b32.xlu0 %v2182, 60
        %v2221 = vpop.permute.xlu0 %2220
        %2222 = vrot.lane.b32.xlu0 %v2183, 60
        %v2223 = vpop.permute.xlu0 %2222
        %2224 = vrot.lane.b32.xlu0 %v2184, 60
        %v2225 = vpop.permute.xlu0 %2224
        %2226 = vrot.lane.b32.xlu0 %v2185, 60
        %v2227 = vpop.permute.xlu0 %2226
        %2228 = vrot.lane.b32.xlu0 %v2186, 60
        %v2229 = vpop.permute.xlu0 %2228
        %2230 = vrot.lane.b32.xlu0 %v2187, 60
        %v2231 = vpop.permute.xlu0 %2230
        %2232 = vrot.lane.b32.xlu0 %v2188, 60
        %v2233 = vpop.permute.xlu0 %2232
        %2234 = vrot.lane.b32.xlu0 %v2189, 60
        %v2235 = vpop.permute.xlu0 %2234
        %2236 = vrot.lane.b32.xlu0 %v2190, 60
        %v2237 = vpop.permute.xlu0 %2236
        %2238 = vrot.lane.b32.xlu0 %v2191, 60
        %v2239 = vpop.permute.xlu0 %2238
        %vm2256 = vcmask 523744
        %2257 = vst.msk [vmem:[#allocation2] sm:$0xff] %vm2256, %v2209
        %2258 = vst.msk [vmem:[#allocation2 + $0x8] sm:$0xff] %vm2256, %v2211
        %2259 = vst.msk [vmem:[#allocation2 + $0x10] sm:$0xff] %vm2256, %v2213
        %2260 = vst.msk [vmem:[#allocation2 + $0x18] sm:$0xff] %vm2256, %v2215
        %2261 = vst.msk [vmem:[#allocation2 + $0x20] sm:$0xff] %vm2256, %v2217
        %2262 = vst.msk [vmem:[#allocation2 + $0x28] sm:$0xff] %vm2256, %v2219
        %2263 = vst.msk [vmem:[#allocation2 + $0x30] sm:$0xff] %vm2256, %v2221
        %2264 = vst.msk [vmem:[#allocation2 + $0x38] sm:$0xff] %vm2256, %v2223
        %2265 = vst.msk [vmem:[#allocation2 + $0x40] sm:$0xff] %vm2256, %v2225
        %2266 = vst.msk [vmem:[#allocation2 + $0x48] sm:$0xff] %vm2256, %v2227
        %2267 = vst.msk [vmem:[#allocation2 + $0x50] sm:$0xff] %vm2256, %v2229
        %2268 = vst.msk [vmem:[#allocation2 + $0x58] sm:$0xff] %vm2256, %v2231
        %2269 = vst.msk [vmem:[#allocation2 + $0x60] sm:$0xff] %vm2256, %v2233
        %2270 = vst.msk [vmem:[#allocation2 + $0x68] sm:$0xff] %vm2256, %v2235
        %2271 = vst.msk [vmem:[#allocation2 + $0x70] sm:$0xff] %vm2256, %v2237
        %2272 = vst.msk [vmem:[#allocation2 + $0x78] sm:$0xff] %vm2256, %v2239
        %v2273 = vld [vmem:[%s2143 + $0x1] sm:$0xff]
        %v2274 = vld [vmem:[%s2143 + $0x11] sm:$0xff]
        %v2275 = vld [vmem:[%s2143 + $0x21] sm:$0xff]
        %v2276 = vld [vmem:[%s2143 + $0x31] sm:$0xff]
        %v2277 = vld [vmem:[%s2143 + $0x41] sm:$0xff]
        %v2278 = vld [vmem:[%s2143 + $0x51] sm:$0xff]
        %v2279 = vld [vmem:[%s2143 + $0x61] sm:$0xff]
        %v2280 = vld [vmem:[%s2143 + $0x71] sm:$0xff]
        %v2281 = vld [vmem:[%s2143 + $0xa1] sm:$0xff]
        %v2282 = vld [vmem:[%s2143 + $0xb1] sm:$0xff]
        %v2283 = vld [vmem:[%s2143 + $0xc1] sm:$0xff]
        %v2284 = vld [vmem:[%s2143 + $0xd1] sm:$0xff]
        %v2285 = vld [vmem:[%s2143 + $0xe1] sm:$0xff]
        %v2286 = vld [vmem:[%s2143 + $0xf1] sm:$0xff]
        %v2287 = vld [vmem:[%s2143 + $0x101] sm:$0xff]
        %v2288 = vld [vmem:[%s2143 + $0x111] sm:$0xff]
        %v2289 = vld [vmem:[%s2143 + $0x141] sm:$0xff]
        %v2290 = vld [vmem:[%s2143 + $0x151] sm:$0xff]
        %v2291 = vld [vmem:[%s2143 + $0x161] sm:$0xff]
        %v2292 = vld [vmem:[%s2143 + $0x171] sm:$0xff]
        %v2293 = vld [vmem:[%s2143 + $0x181] sm:$0xff]
        %v2294 = vld [vmem:[%s2143 + $0x191] sm:$0xff]
        %v2295 = vld [vmem:[%s2143 + $0x1a1] sm:$0xff]
        %v2296 = vld [vmem:[%s2143 + $0x1b1] sm:$0xff]
        %v2297 = vld [vmem:[%s2143 + $0x1e1] sm:$0xff]
        %v2298 = vld [vmem:[%s2143 + $0x1f1] sm:$0xff]
        %v2299 = vld [vmem:[%s2143 + $0x201] sm:$0xff]
        %v2300 = vld [vmem:[%s2143 + $0x211] sm:$0xff]
        %v2301 = vld [vmem:[%s2143 + $0x221] sm:$0xff]
        %v2302 = vld [vmem:[%s2143 + $0x231] sm:$0xff]
        %v2303 = vld [vmem:[%s2143 + $0x241] sm:$0xff]
        %v2304 = vld [vmem:[%s2143 + $0x251] sm:$0xff]
        %v2305 = vpack.c.bf16 %v2274, %v2273
        %v2306 = vpack.c.bf16 %v2276, %v2275
        %v2307 = vpack.c.bf16 %v2278, %v2277
        %v2308 = vpack.c.bf16 %v2280, %v2279
        %v2309 = vpack.c.bf16 %v2282, %v2281
        %v2310 = vpack.c.bf16 %v2284, %v2283
        %v2311 = vpack.c.bf16 %v2286, %v2285
        %v2312 = vpack.c.bf16 %v2288, %v2287
        %v2313 = vpack.c.bf16 %v2290, %v2289
        %v2314 = vpack.c.bf16 %v2292, %v2291
        %v2315 = vpack.c.bf16 %v2294, %v2293
        %v2316 = vpack.c.bf16 %v2296, %v2295
        %v2317 = vpack.c.bf16 %v2298, %v2297
        %v2318 = vpack.c.bf16 %v2300, %v2299
        %v2319 = vpack.c.bf16 %v2302, %v2301
        %v2320 = vpack.c.bf16 %v2304, %v2303
        %2337 = vrot.lane.b32.xlu0 %v2305, 64
        %v2338 = vpop.permute.xlu0 %2337
        %2339 = vrot.lane.b32.xlu0 %v2306, 64
        %v2340 = vpop.permute.xlu0 %2339
        %2341 = vrot.lane.b32.xlu0 %v2307, 64
        %v2342 = vpop.permute.xlu0 %2341
        %2343 = vrot.lane.b32.xlu0 %v2308, 64
        %v2344 = vpop.permute.xlu0 %2343
        %2345 = vrot.lane.b32.xlu0 %v2309, 64
        %v2346 = vpop.permute.xlu0 %2345
        %2347 = vrot.lane.b32.xlu0 %v2310, 64
        %v2348 = vpop.permute.xlu0 %2347
        %2349 = vrot.lane.b32.xlu0 %v2311, 64
        %v2350 = vpop.permute.xlu0 %2349
        %2351 = vrot.lane.b32.xlu0 %v2312, 64
        %v2352 = vpop.permute.xlu0 %2351
        %2353 = vrot.lane.b32.xlu0 %v2313, 64
        %v2354 = vpop.permute.xlu0 %2353
        %2355 = vrot.lane.b32.xlu0 %v2314, 64
        %v2356 = vpop.permute.xlu0 %2355
        %2357 = vrot.lane.b32.xlu0 %v2315, 64
        %v2358 = vpop.permute.xlu0 %2357
        %2359 = vrot.lane.b32.xlu0 %v2316, 64
        %v2360 = vpop.permute.xlu0 %2359
        %2361 = vrot.lane.b32.xlu0 %v2317, 64
        %v2362 = vpop.permute.xlu0 %2361
        %2363 = vrot.lane.b32.xlu0 %v2318, 64
        %v2364 = vpop.permute.xlu0 %2363
        %2365 = vrot.lane.b32.xlu0 %v2319, 64
        %v2366 = vpop.permute.xlu0 %2365
        %2367 = vrot.lane.b32.xlu0 %v2320, 64
        %v2368 = vpop.permute.xlu0 %2367
        %vm2385 = vcmask 556544
        %2386 = vst.msk [vmem:[#allocation2] sm:$0xff] %vm2385, %v2338
        %2387 = vst.msk [vmem:[#allocation2 + $0x8] sm:$0xff] %vm2385, %v2340
        %2388 = vst.msk [vmem:[#allocation2 + $0x10] sm:$0xff] %vm2385, %v2342
        %2389 = vst.msk [vmem:[#allocation2 + $0x18] sm:$0xff] %vm2385, %v2344
        %2390 = vst.msk [vmem:[#allocation2 + $0x20] sm:$0xff] %vm2385, %v2346
        %2391 = vst.msk [vmem:[#allocation2 + $0x28] sm:$0xff] %vm2385, %v2348
        %2392 = vst.msk [vmem:[#allocation2 + $0x30] sm:$0xff] %vm2385, %v2350
        %2393 = vst.msk [vmem:[#allocation2 + $0x38] sm:$0xff] %vm2385, %v2352
        %2394 = vst.msk [vmem:[#allocation2 + $0x40] sm:$0xff] %vm2385, %v2354
        %2395 = vst.msk [vmem:[#allocation2 + $0x48] sm:$0xff] %vm2385, %v2356
        %2396 = vst.msk [vmem:[#allocation2 + $0x50] sm:$0xff] %vm2385, %v2358
        %2397 = vst.msk [vmem:[#allocation2 + $0x58] sm:$0xff] %vm2385, %v2360
        %2398 = vst.msk [vmem:[#allocation2 + $0x60] sm:$0xff] %vm2385, %v2362
        %2399 = vst.msk [vmem:[#allocation2 + $0x68] sm:$0xff] %vm2385, %v2364
        %2400 = vst.msk [vmem:[#allocation2 + $0x70] sm:$0xff] %vm2385, %v2366
        %2401 = vst.msk [vmem:[#allocation2 + $0x78] sm:$0xff] %vm2385, %v2368
        %v2402 = vld [vmem:[%s2143 + $0x2] sm:$0xff]
        %v2403 = vld [vmem:[%s2143 + $0x12] sm:$0xff]
        %v2404 = vld [vmem:[%s2143 + $0x22] sm:$0xff]
        %v2405 = vld [vmem:[%s2143 + $0x32] sm:$0xff]
        %v2406 = vld [vmem:[%s2143 + $0x42] sm:$0xff]
        %v2407 = vld [vmem:[%s2143 + $0x52] sm:$0xff]
        %v2408 = vld [vmem:[%s2143 + $0x62] sm:$0xff]
        %v2409 = vld [vmem:[%s2143 + $0x72] sm:$0xff]
        %v2410 = vld [vmem:[%s2143 + $0xa2] sm:$0xff]
        %v2411 = vld [vmem:[%s2143 + $0xb2] sm:$0xff]
        %v2412 = vld [vmem:[%s2143 + $0xc2] sm:$0xff]
        %v2413 = vld [vmem:[%s2143 + $0xd2] sm:$0xff]
        %v2414 = vld [vmem:[%s2143 + $0xe2] sm:$0xff]
        %v2415 = vld [vmem:[%s2143 + $0xf2] sm:$0xff]
        %v2416 = vld [vmem:[%s2143 + $0x102] sm:$0xff]
        %v2417 = vld [vmem:[%s2143 + $0x112] sm:$0xff]
        %v2418 = vld [vmem:[%s2143 + $0x142] sm:$0xff]
        %v2419 = vld [vmem:[%s2143 + $0x152] sm:$0xff]
        %v2420 = vld [vmem:[%s2143 + $0x162] sm:$0xff]
        %v2421 = vld [vmem:[%s2143 + $0x172] sm:$0xff]
        %v2422 = vld [vmem:[%s2143 + $0x182] sm:$0xff]
        %v2423 = vld [vmem:[%s2143 + $0x192] sm:$0xff]
        %v2424 = vld [vmem:[%s2143 + $0x1a2] sm:$0xff]
        %v2425 = vld [vmem:[%s2143 + $0x1b2] sm:$0xff]
        %v2426 = vld [vmem:[%s2143 + $0x1e2] sm:$0xff]
        %v2427 = vld [vmem:[%s2143 + $0x1f2] sm:$0xff]
        %v2428 = vld [vmem:[%s2143 + $0x202] sm:$0xff]
        %v2429 = vld [vmem:[%s2143 + $0x212] sm:$0xff]
        %v2430 = vld [vmem:[%s2143 + $0x222] sm:$0xff]
        %v2431 = vld [vmem:[%s2143 + $0x232] sm:$0xff]
        %v2432 = vld [vmem:[%s2143 + $0x242] sm:$0xff]
        %v2433 = vld [vmem:[%s2143 + $0x252] sm:$0xff]
        %v2434 = vpack.c.bf16 %v2403, %v2402
        %v2435 = vpack.c.bf16 %v2405, %v2404
        %v2436 = vpack.c.bf16 %v2407, %v2406
        %v2437 = vpack.c.bf16 %v2409, %v2408
        %v2438 = vpack.c.bf16 %v2411, %v2410
        %v2439 = vpack.c.bf16 %v2413, %v2412
        %v2440 = vpack.c.bf16 %v2415, %v2414
        %v2441 = vpack.c.bf16 %v2417, %v2416
        %v2442 = vpack.c.bf16 %v2419, %v2418
        %v2443 = vpack.c.bf16 %v2421, %v2420
        %v2444 = vpack.c.bf16 %v2423, %v2422
        %v2445 = vpack.c.bf16 %v2425, %v2424
        %v2446 = vpack.c.bf16 %v2427, %v2426
        %v2447 = vpack.c.bf16 %v2429, %v2428
        %v2448 = vpack.c.bf16 %v2431, %v2430
        %v2449 = vpack.c.bf16 %v2433, %v2432
        %2466 = vrot.lane.b32.xlu0 %v2434, 68
        %v2467 = vpop.permute.xlu0 %2466
        %2468 = vrot.lane.b32.xlu0 %v2435, 68
        %v2469 = vpop.permute.xlu0 %2468
        %2470 = vrot.lane.b32.xlu0 %v2436, 68
        %v2471 = vpop.permute.xlu0 %2470
        %2472 = vrot.lane.b32.xlu0 %v2437, 68
        %v2473 = vpop.permute.xlu0 %2472
        %2474 = vrot.lane.b32.xlu0 %v2438, 68
        %v2475 = vpop.permute.xlu0 %2474
        %2476 = vrot.lane.b32.xlu0 %v2439, 68
        %v2477 = vpop.permute.xlu0 %2476
        %2478 = vrot.lane.b32.xlu0 %v2440, 68
        %v2479 = vpop.permute.xlu0 %2478
        %2480 = vrot.lane.b32.xlu0 %v2441, 68
        %v2481 = vpop.permute.xlu0 %2480
        %2482 = vrot.lane.b32.xlu0 %v2442, 68
        %v2483 = vpop.permute.xlu0 %2482
        %2484 = vrot.lane.b32.xlu0 %v2443, 68
        %v2485 = vpop.permute.xlu0 %2484
        %2486 = vrot.lane.b32.xlu0 %v2444, 68
        %v2487 = vpop.permute.xlu0 %2486
        %2488 = vrot.lane.b32.xlu0 %v2445, 68
        %v2489 = vpop.permute.xlu0 %2488
        %2490 = vrot.lane.b32.xlu0 %v2446, 68
        %v2491 = vpop.permute.xlu0 %2490
        %2492 = vrot.lane.b32.xlu0 %v2447, 68
        %v2493 = vpop.permute.xlu0 %2492
        %2494 = vrot.lane.b32.xlu0 %v2448, 68
        %v2495 = vpop.permute.xlu0 %2494
        %2496 = vrot.lane.b32.xlu0 %v2449, 68
        %v2497 = vpop.permute.xlu0 %2496
        %vm2514 = vcmask 589344
        %2515 = vst.msk [vmem:[#allocation2] sm:$0xff] %vm2514, %v2467
        %2516 = vst.msk [vmem:[#allocation2 + $0x8] sm:$0xff] %vm2514, %v2469
        %2517 = vst.msk [vmem:[#allocation2 + $0x10] sm:$0xff] %vm2514, %v2471
        %2518 = vst.msk [vmem:[#allocation2 + $0x18] sm:$0xff] %vm2514, %v2473
        %2519 = vst.msk [vmem:[#allocation2 + $0x20] sm:$0xff] %vm2514, %v2475
        %2520 = vst.msk [vmem:[#allocation2 + $0x28] sm:$0xff] %vm2514, %v2477
        %2521 = vst.msk [vmem:[#allocation2 + $0x30] sm:$0xff] %vm2514, %v2479
        %2522 = vst.msk [vmem:[#allocation2 + $0x38] sm:$0xff] %vm2514, %v2481
        %2523 = vst.msk [vmem:[#allocation2 + $0x40] sm:$0xff] %vm2514, %v2483
        %2524 = vst.msk [vmem:[#allocation2 + $0x48] sm:$0xff] %vm2514, %v2485
        %2525 = vst.msk [vmem:[#allocation2 + $0x50] sm:$0xff] %vm2514, %v2487
        %2526 = vst.msk [vmem:[#allocation2 + $0x58] sm:$0xff] %vm2514, %v2489
        %2527 = vst.msk [vmem:[#allocation2 + $0x60] sm:$0xff] %vm2514, %v2491
        %2528 = vst.msk [vmem:[#allocation2 + $0x68] sm:$0xff] %vm2514, %v2493
        %2529 = vst.msk [vmem:[#allocation2 + $0x70] sm:$0xff] %vm2514, %v2495
        %2530 = vst.msk [vmem:[#allocation2 + $0x78] sm:$0xff] %vm2514, %v2497
        %s2531 = sadd.s32 %s259, 2
        %s2532 = smul.u32 %s2531, 160
        %s2533 = scalar_lea.vmem %s256, %s2532
        %v2534 = vld [vmem:[%s2533] sm:$0xff]
        %v2535 = vld [vmem:[%s2533 + $0x10] sm:$0xff]
        %v2536 = vld [vmem:[%s2533 + $0x20] sm:$0xff]
        %v2537 = vld [vmem:[%s2533 + $0x30] sm:$0xff]
        %v2538 = vld [vmem:[%s2533 + $0x40] sm:$0xff]
        %v2539 = vld [vmem:[%s2533 + $0x50] sm:$0xff]
        %v2540 = vld [vmem:[%s2533 + $0x60] sm:$0xff]
        %v2541 = vld [vmem:[%s2533 + $0x70] sm:$0xff]
        %v2542 = vld [vmem:[%s2533 + $0xa0] sm:$0xff]
        %v2543 = vld [vmem:[%s2533 + $0xb0] sm:$0xff]
        %v2544 = vld [vmem:[%s2533 + $0xc0] sm:$0xff]
        %v2545 = vld [vmem:[%s2533 + $0xd0] sm:$0xff]
        %v2546 = vld [vmem:[%s2533 + $0xe0] sm:$0xff]
        %v2547 = vld [vmem:[%s2533 + $0xf0] sm:$0xff]
        %v2548 = vld [vmem:[%s2533 + $0x100] sm:$0xff]
        %v2549 = vld [vmem:[%s2533 + $0x110] sm:$0xff]
        %v2550 = vld [vmem:[%s2533 + $0x140] sm:$0xff]
        %v2551 = vld [vmem:[%s2533 + $0x150] sm:$0xff]
        %v2552 = vld [vmem:[%s2533 + $0x160] sm:$0xff]
        %v2553 = vld [vmem:[%s2533 + $0x170] sm:$0xff]
        %v2554 = vld [vmem:[%s2533 + $0x180] sm:$0xff]
        %v2555 = vld [vmem:[%s2533 + $0x190] sm:$0xff]
        %v2556 = vld [vmem:[%s2533 + $0x1a0] sm:$0xff]
        %v2557 = vld [vmem:[%s2533 + $0x1b0] sm:$0xff]
        %v2558 = vld [vmem:[%s2533 + $0x1e0] sm:$0xff]
        %v2559 = vld [vmem:[%s2533 + $0x1f0] sm:$0xff]
        %v2560 = vld [vmem:[%s2533 + $0x200] sm:$0xff]
        %v2561 = vld [vmem:[%s2533 + $0x210] sm:$0xff]
        %v2562 = vld [vmem:[%s2533 + $0x220] sm:$0xff]
        %v2563 = vld [vmem:[%s2533 + $0x230] sm:$0xff]
        %v2564 = vld [vmem:[%s2533 + $0x240] sm:$0xff]
        %v2565 = vld [vmem:[%s2533 + $0x250] sm:$0xff]
        %v2566 = vpack.c.bf16 %v2535, %v2534
        %v2567 = vpack.c.bf16 %v2537, %v2536
        %v2568 = vpack.c.bf16 %v2539, %v2538
        %v2569 = vpack.c.bf16 %v2541, %v2540
        %v2570 = vpack.c.bf16 %v2543, %v2542
        %v2571 = vpack.c.bf16 %v2545, %v2544
        %v2572 = vpack.c.bf16 %v2547, %v2546
        %v2573 = vpack.c.bf16 %v2549, %v2548
        %v2574 = vpack.c.bf16 %v2551, %v2550
        %v2575 = vpack.c.bf16 %v2553, %v2552
        %v2576 = vpack.c.bf16 %v2555, %v2554
        %v2577 = vpack.c.bf16 %v2557, %v2556
        %v2578 = vpack.c.bf16 %v2559, %v2558
        %v2579 = vpack.c.bf16 %v2561, %v2560
        %v2580 = vpack.c.bf16 %v2563, %v2562
        %v2581 = vpack.c.bf16 %v2565, %v2564
        %2598 = vrot.lane.b32.xlu0 %v2566, 72
        %v2599 = vpop.permute.xlu0 %2598
        %2600 = vrot.lane.b32.xlu0 %v2567, 72
        %v2601 = vpop.permute.xlu0 %2600
        %2602 = vrot.lane.b32.xlu0 %v2568, 72
        %v2603 = vpop.permute.xlu0 %2602
        %2604 = vrot.lane.b32.xlu0 %v2569, 72
        %v2605 = vpop.permute.xlu0 %2604
        %2606 = vrot.lane.b32.xlu0 %v2570, 72
        %v2607 = vpop.permute.xlu0 %2606
        %2608 = vrot.lane.b32.xlu0 %v2571, 72
        %v2609 = vpop.permute.xlu0 %2608
        %2610 = vrot.lane.b32.xlu0 %v2572, 72
        %v2611 = vpop.permute.xlu0 %2610
        %2612 = vrot.lane.b32.xlu0 %v2573, 72
        %v2613 = vpop.permute.xlu0 %2612
        %2614 = vrot.lane.b32.xlu0 %v2574, 72
        %v2615 = vpop.permute.xlu0 %2614
        %2616 = vrot.lane.b32.xlu0 %v2575, 72
        %v2617 = vpop.permute.xlu0 %2616
        %2618 = vrot.lane.b32.xlu0 %v2576, 72
        %v2619 = vpop.permute.xlu0 %2618
        %2620 = vrot.lane.b32.xlu0 %v2577, 72
        %v2621 = vpop.permute.xlu0 %2620
        %2622 = vrot.lane.b32.xlu0 %v2578, 72
        %v2623 = vpop.permute.xlu0 %2622
        %2624 = vrot.lane.b32.xlu0 %v2579, 72
        %v2625 = vpop.permute.xlu0 %2624
        %2626 = vrot.lane.b32.xlu0 %v2580, 72
        %v2627 = vpop.permute.xlu0 %2626
        %2628 = vrot.lane.b32.xlu0 %v2581, 72
        %v2629 = vpop.permute.xlu0 %2628
        %vm2646 = vcmask 622144
        %2647 = vst.msk [vmem:[#allocation2] sm:$0xff] %vm2646, %v2599
        %2648 = vst.msk [vmem:[#allocation2 + $0x8] sm:$0xff] %vm2646, %v2601
        %2649 = vst.msk [vmem:[#allocation2 + $0x10] sm:$0xff] %vm2646, %v2603
        %2650 = vst.msk [vmem:[#allocation2 + $0x18] sm:$0xff] %vm2646, %v2605
        %2651 = vst.msk [vmem:[#allocation2 + $0x20] sm:$0xff] %vm2646, %v2607
        %2652 = vst.msk [vmem:[#allocation2 + $0x28] sm:$0xff] %vm2646, %v2609
        %2653 = vst.msk [vmem:[#allocation2 + $0x30] sm:$0xff] %vm2646, %v2611
        %2654 = vst.msk [vmem:[#allocation2 + $0x38] sm:$0xff] %vm2646, %v2613
        %2655 = vst.msk [vmem:[#allocation2 + $0x40] sm:$0xff] %vm2646, %v2615
        %2656 = vst.msk [vmem:[#allocation2 + $0x48] sm:$0xff] %vm2646, %v2617
        %2657 = vst.msk [vmem:[#allocation2 + $0x50] sm:$0xff] %vm2646, %v2619
        %2658 = vst.msk [vmem:[#allocation2 + $0x58] sm:$0xff] %vm2646, %v2621
        %2659 = vst.msk [vmem:[#allocation2 + $0x60] sm:$0xff] %vm2646, %v2623
        %2660 = vst.msk [vmem:[#allocation2 + $0x68] sm:$0xff] %vm2646, %v2625
        %2661 = vst.msk [vmem:[#allocation2 + $0x70] sm:$0xff] %vm2646, %v2627
        %2662 = vst.msk [vmem:[#allocation2 + $0x78] sm:$0xff] %vm2646, %v2629
        %v2663 = vld [vmem:[%s2533 + $0x1] sm:$0xff]
        %v2664 = vld [vmem:[%s2533 + $0x11] sm:$0xff]
        %v2665 = vld [vmem:[%s2533 + $0x21] sm:$0xff]
        %v2666 = vld [vmem:[%s2533 + $0x31] sm:$0xff]
        %v2667 = vld [vmem:[%s2533 + $0x41] sm:$0xff]
        %v2668 = vld [vmem:[%s2533 + $0x51] sm:$0xff]
        %v2669 = vld [vmem:[%s2533 + $0x61] sm:$0xff]
        %v2670 = vld [vmem:[%s2533 + $0x71] sm:$0xff]
        %v2671 = vld [vmem:[%s2533 + $0xa1] sm:$0xff]
        %v2672 = vld [vmem:[%s2533 + $0xb1] sm:$0xff]
        %v2673 = vld [vmem:[%s2533 + $0xc1] sm:$0xff]
        %v2674 = vld [vmem:[%s2533 + $0xd1] sm:$0xff]
        %v2675 = vld [vmem:[%s2533 + $0xe1] sm:$0xff]
        %v2676 = vld [vmem:[%s2533 + $0xf1] sm:$0xff]
        %v2677 = vld [vmem:[%s2533 + $0x101] sm:$0xff]
        %v2678 = vld [vmem:[%s2533 + $0x111] sm:$0xff]
        %v2679 = vld [vmem:[%s2533 + $0x141] sm:$0xff]
        %v2680 = vld [vmem:[%s2533 + $0x151] sm:$0xff]
        %v2681 = vld [vmem:[%s2533 + $0x161] sm:$0xff]
        %v2682 = vld [vmem:[%s2533 + $0x171] sm:$0xff]
        %v2683 = vld [vmem:[%s2533 + $0x181] sm:$0xff]
        %v2684 = vld [vmem:[%s2533 + $0x191] sm:$0xff]
        %v2685 = vld [vmem:[%s2533 + $0x1a1] sm:$0xff]
        %v2686 = vld [vmem:[%s2533 + $0x1b1] sm:$0xff]
        %v2687 = vld [vmem:[%s2533 + $0x1e1] sm:$0xff]
        %v2688 = vld [vmem:[%s2533 + $0x1f1] sm:$0xff]
        %v2689 = vld [vmem:[%s2533 + $0x201] sm:$0xff]
        %v2690 = vld [vmem:[%s2533 + $0x211] sm:$0xff]
        %v2691 = vld [vmem:[%s2533 + $0x221] sm:$0xff]
        %v2692 = vld [vmem:[%s2533 + $0x231] sm:$0xff]
        %v2693 = vld [vmem:[%s2533 + $0x241] sm:$0xff]
        %v2694 = vld [vmem:[%s2533 + $0x251] sm:$0xff]
        %v2695 = vpack.c.bf16 %v2664, %v2663
        %v2696 = vpack.c.bf16 %v2666, %v2665
        %v2697 = vpack.c.bf16 %v2668, %v2667
        %v2698 = vpack.c.bf16 %v2670, %v2669
        %v2699 = vpack.c.bf16 %v2672, %v2671
        %v2700 = vpack.c.bf16 %v2674, %v2673
        %v2701 = vpack.c.bf16 %v2676, %v2675
        %v2702 = vpack.c.bf16 %v2678, %v2677
        %v2703 = vpack.c.bf16 %v2680, %v2679
        %v2704 = vpack.c.bf16 %v2682, %v2681
        %v2705 = vpack.c.bf16 %v2684, %v2683
        %v2706 = vpack.c.bf16 %v2686, %v2685
        %v2707 = vpack.c.bf16 %v2688, %v2687
        %v2708 = vpack.c.bf16 %v2690, %v2689
        %v2709 = vpack.c.bf16 %v2692, %v2691
        %v2710 = vpack.c.bf16 %v2694, %v2693
        %2727 = vrot.lane.b32.xlu0 %v2695, 76
        %v2728 = vpop.permute.xlu0 %2727
        %2729 = vrot.lane.b32.xlu0 %v2696, 76
        %v2730 = vpop.permute.xlu0 %2729
        %2731 = vrot.lane.b32.xlu0 %v2697, 76
        %v2732 = vpop.permute.xlu0 %2731
        %2733 = vrot.lane.b32.xlu0 %v2698, 76
        %v2734 = vpop.permute.xlu0 %2733
        %2735 = vrot.lane.b32.xlu0 %v2699, 76
        %v2736 = vpop.permute.xlu0 %2735
        %2737 = vrot.lane.b32.xlu0 %v2700, 76
        %v2738 = vpop.permute.xlu0 %2737
        %2739 = vrot.lane.b32.xlu0 %v2701, 76
        %v2740 = vpop.permute.xlu0 %2739
        %2741 = vrot.lane.b32.xlu0 %v2702, 76
        %v2742 = vpop.permute.xlu0 %2741
        %2743 = vrot.lane.b32.xlu0 %v2703, 76
        %v2744 = vpop.permute.xlu0 %2743
        %2745 = vrot.lane.b32.xlu0 %v2704, 76
        %v2746 = vpop.permute.xlu0 %2745
        %2747 = vrot.lane.b32.xlu0 %v2705, 76
        %v2748 = vpop.permute.xlu0 %2747
        %2749 = vrot.lane.b32.xlu0 %v2706, 76
        %v2750 = vpop.permute.xlu0 %2749
        %2751 = vrot.lane.b32.xlu0 %v2707, 76
        %v2752 = vpop.permute.xlu0 %2751
        %2753 = vrot.lane.b32.xlu0 %v2708, 76
        %v2754 = vpop.permute.xlu0 %2753
        %2755 = vrot.lane.b32.xlu0 %v2709, 76
        %v2756 = vpop.permute.xlu0 %2755
        %2757 = vrot.lane.b32.xlu0 %v2710, 76
        %v2758 = vpop.permute.xlu0 %2757
        %vm2775 = vcmask 654944
        %2776 = vst.msk [vmem:[#allocation2] sm:$0xff] %vm2775, %v2728
        %2777 = vst.msk [vmem:[#allocation2 + $0x8] sm:$0xff] %vm2775, %v2730
        %2778 = vst.msk [vmem:[#allocation2 + $0x10] sm:$0xff] %vm2775, %v2732
        %2779 = vst.msk [vmem:[#allocation2 + $0x18] sm:$0xff] %vm2775, %v2734
        %2780 = vst.msk [vmem:[#allocation2 + $0x20] sm:$0xff] %vm2775, %v2736
        %2781 = vst.msk [vmem:[#allocation2 + $0x28] sm:$0xff] %vm2775, %v2738
        %2782 = vst.msk [vmem:[#allocation2 + $0x30] sm:$0xff] %vm2775, %v2740
        %2783 = vst.msk [vmem:[#allocation2 + $0x38] sm:$0xff] %vm2775, %v2742
        %2784 = vst.msk [vmem:[#allocation2 + $0x40] sm:$0xff] %vm2775, %v2744
        %2785 = vst.msk [vmem:[#allocation2 + $0x48] sm:$0xff] %vm2775, %v2746
        %2786 = vst.msk [vmem:[#allocation2 + $0x50] sm:$0xff] %vm2775, %v2748
        %2787 = vst.msk [vmem:[#allocation2 + $0x58] sm:$0xff] %vm2775, %v2750
        %2788 = vst.msk [vmem:[#allocation2 + $0x60] sm:$0xff] %vm2775, %v2752
        %2789 = vst.msk [vmem:[#allocation2 + $0x68] sm:$0xff] %vm2775, %v2754
        %2790 = vst.msk [vmem:[#allocation2 + $0x70] sm:$0xff] %vm2775, %v2756
        %2791 = vst.msk [vmem:[#allocation2 + $0x78] sm:$0xff] %vm2775, %v2758
        %v2792 = vld [vmem:[%s2533 + $0x2] sm:$0xff]
        %v2793 = vld [vmem:[%s2533 + $0x12] sm:$0xff]
        %v2794 = vld [vmem:[%s2533 + $0x22] sm:$0xff]
        %v2795 = vld [vmem:[%s2533 + $0x32] sm:$0xff]
        %v2796 = vld [vmem:[%s2533 + $0x42] sm:$0xff]
        %v2797 = vld [vmem:[%s2533 + $0x52] sm:$0xff]
        %v2798 = vld [vmem:[%s2533 + $0x62] sm:$0xff]
        %v2799 = vld [vmem:[%s2533 + $0x72] sm:$0xff]
        %v2800 = vld [vmem:[%s2533 + $0xa2] sm:$0xff]
        %v2801 = vld [vmem:[%s2533 + $0xb2] sm:$0xff]
        %v2802 = vld [vmem:[%s2533 + $0xc2] sm:$0xff]
        %v2803 = vld [vmem:[%s2533 + $0xd2] sm:$0xff]
        %v2804 = vld [vmem:[%s2533 + $0xe2] sm:$0xff]
        %v2805 = vld [vmem:[%s2533 + $0xf2] sm:$0xff]
        %v2806 = vld [vmem:[%s2533 + $0x102] sm:$0xff]
        %v2807 = vld [vmem:[%s2533 + $0x112] sm:$0xff]
        %v2808 = vld [vmem:[%s2533 + $0x142] sm:$0xff]
        %v2809 = vld [vmem:[%s2533 + $0x152] sm:$0xff]
        %v2810 = vld [vmem:[%s2533 + $0x162] sm:$0xff]
        %v2811 = vld [vmem:[%s2533 + $0x172] sm:$0xff]
        %v2812 = vld [vmem:[%s2533 + $0x182] sm:$0xff]
        %v2813 = vld [vmem:[%s2533 + $0x192] sm:$0xff]
        %v2814 = vld [vmem:[%s2533 + $0x1a2] sm:$0xff]
        %v2815 = vld [vmem:[%s2533 + $0x1b2] sm:$0xff]
        %v2816 = vld [vmem:[%s2533 + $0x1e2] sm:$0xff]
        %v2817 = vld [vmem:[%s2533 + $0x1f2] sm:$0xff]
        %v2818 = vld [vmem:[%s2533 + $0x202] sm:$0xff]
        %v2819 = vld [vmem:[%s2533 + $0x212] sm:$0xff]
        %v2820 = vld [vmem:[%s2533 + $0x222] sm:$0xff]
        %v2821 = vld [vmem:[%s2533 + $0x232] sm:$0xff]
        %v2822 = vld [vmem:[%s2533 + $0x242] sm:$0xff]
        %v2823 = vld [vmem:[%s2533 + $0x252] sm:$0xff]
        %v2824 = vpack.c.bf16 %v2793, %v2792
        %v2825 = vpack.c.bf16 %v2795, %v2794
        %v2826 = vpack.c.bf16 %v2797, %v2796
        %v2827 = vpack.c.bf16 %v2799, %v2798
        %v2828 = vpack.c.bf16 %v2801, %v2800
        %v2829 = vpack.c.bf16 %v2803, %v2802
        %v2830 = vpack.c.bf16 %v2805, %v2804
        %v2831 = vpack.c.bf16 %v2807, %v2806
        %v2832 = vpack.c.bf16 %v2809, %v2808
        %v2833 = vpack.c.bf16 %v2811, %v2810
        %v2834 = vpack.c.bf16 %v2813, %v2812
        %v2835 = vpack.c.bf16 %v2815, %v2814
        %v2836 = vpack.c.bf16 %v2817, %v2816
        %v2837 = vpack.c.bf16 %v2819, %v2818
        %v2838 = vpack.c.bf16 %v2821, %v2820
        %v2839 = vpack.c.bf16 %v2823, %v2822
        %2856 = vrot.lane.b32.xlu0 %v2824, 80
        %v2857 = vpop.permute.xlu0 %2856
        %2858 = vrot.lane.b32.xlu0 %v2825, 80
        %v2859 = vpop.permute.xlu0 %2858
        %2860 = vrot.lane.b32.xlu0 %v2826, 80
        %v2861 = vpop.permute.xlu0 %2860
        %2862 = vrot.lane.b32.xlu0 %v2827, 80
        %v2863 = vpop.permute.xlu0 %2862
        %2864 = vrot.lane.b32.xlu0 %v2828, 80
        %v2865 = vpop.permute.xlu0 %2864
        %2866 = vrot.lane.b32.xlu0 %v2829, 80
        %v2867 = vpop.permute.xlu0 %2866
        %2868 = vrot.lane.b32.xlu0 %v2830, 80
        %v2869 = vpop.permute.xlu0 %2868
        %2870 = vrot.lane.b32.xlu0 %v2831, 80
        %v2871 = vpop.permute.xlu0 %2870
        %2872 = vrot.lane.b32.xlu0 %v2832, 80
        %v2873 = vpop.permute.xlu0 %2872
        %2874 = vrot.lane.b32.xlu0 %v2833, 80
        %v2875 = vpop.permute.xlu0 %2874
        %2876 = vrot.lane.b32.xlu0 %v2834, 80
        %v2877 = vpop.permute.xlu0 %2876
        %2878 = vrot.lane.b32.xlu0 %v2835, 80
        %v2879 = vpop.permute.xlu0 %2878
        %2880 = vrot.lane.b32.xlu0 %v2836, 80
        %v2881 = vpop.permute.xlu0 %2880
        %2882 = vrot.lane.b32.xlu0 %v2837, 80
        %v2883 = vpop.permute.xlu0 %2882
        %2884 = vrot.lane.b32.xlu0 %v2838, 80
        %v2885 = vpop.permute.xlu0 %2884
        %2886 = vrot.lane.b32.xlu0 %v2839, 80
        %v2887 = vpop.permute.xlu0 %2886
        %vm2904 = vcmask 687744
        %2905 = vst.msk [vmem:[#allocation2] sm:$0xff] %vm2904, %v2857
        %2906 = vst.msk [vmem:[#allocation2 + $0x8] sm:$0xff] %vm2904, %v2859
        %2907 = vst.msk [vmem:[#allocation2 + $0x10] sm:$0xff] %vm2904, %v2861
        %2908 = vst.msk [vmem:[#allocation2 + $0x18] sm:$0xff] %vm2904, %v2863
        %2909 = vst.msk [vmem:[#allocation2 + $0x20] sm:$0xff] %vm2904, %v2865
        %2910 = vst.msk [vmem:[#allocation2 + $0x28] sm:$0xff] %vm2904, %v2867
        %2911 = vst.msk [vmem:[#allocation2 + $0x30] sm:$0xff] %vm2904, %v2869
        %2912 = vst.msk [vmem:[#allocation2 + $0x38] sm:$0xff] %vm2904, %v2871
        %2913 = vst.msk [vmem:[#allocation2 + $0x40] sm:$0xff] %vm2904, %v2873
        %2914 = vst.msk [vmem:[#allocation2 + $0x48] sm:$0xff] %vm2904, %v2875
        %2915 = vst.msk [vmem:[#allocation2 + $0x50] sm:$0xff] %vm2904, %v2877
        %2916 = vst.msk [vmem:[#allocation2 + $0x58] sm:$0xff] %vm2904, %v2879
        %2917 = vst.msk [vmem:[#allocation2 + $0x60] sm:$0xff] %vm2904, %v2881
        %2918 = vst.msk [vmem:[#allocation2 + $0x68] sm:$0xff] %vm2904, %v2883
        %2919 = vst.msk [vmem:[#allocation2 + $0x70] sm:$0xff] %vm2904, %v2885
        %2920 = vst.msk [vmem:[#allocation2 + $0x78] sm:$0xff] %vm2904, %v2887
        %s2921 = sadd.s32 16, %s2532
        %s2922 = scalar_lea.vmem %s256, %s2921
        %v2923 = vld [vmem:[%s2922] sm:$0xff]
        %v2924 = vld [vmem:[%s2922 + $0x10] sm:$0xff]
        %v2925 = vld [vmem:[%s2922 + $0x20] sm:$0xff]
        %v2926 = vld [vmem:[%s2922 + $0x30] sm:$0xff]
        %v2927 = vld [vmem:[%s2922 + $0x40] sm:$0xff]
        %v2928 = vld [vmem:[%s2922 + $0x50] sm:$0xff]
        %v2929 = vld [vmem:[%s2922 + $0x60] sm:$0xff]
        %v2930 = vld [vmem:[%s2922 + $0x70] sm:$0xff]
        %v2931 = vld [vmem:[%s2922 + $0xa0] sm:$0xff]
        %v2932 = vld [vmem:[%s2922 + $0xb0] sm:$0xff]
        %v2933 = vld [vmem:[%s2922 + $0xc0] sm:$0xff]
        %v2934 = vld [vmem:[%s2922 + $0xd0] sm:$0xff]
        %v2935 = vld [vmem:[%s2922 + $0xe0] sm:$0xff]
        %v2936 = vld [vmem:[%s2922 + $0xf0] sm:$0xff]
        %v2937 = vld [vmem:[%s2922 + $0x100] sm:$0xff]
        %v2938 = vld [vmem:[%s2922 + $0x110] sm:$0xff]
        %v2939 = vld [vmem:[%s2922 + $0x140] sm:$0xff]
        %v2940 = vld [vmem:[%s2922 + $0x150] sm:$0xff]
        %v2941 = vld [vmem:[%s2922 + $0x160] sm:$0xff]
        %v2942 = vld [vmem:[%s2922 + $0x170] sm:$0xff]
        %v2943 = vld [vmem:[%s2922 + $0x180] sm:$0xff]
        %v2944 = vld [vmem:[%s2922 + $0x190] sm:$0xff]
        %v2945 = vld [vmem:[%s2922 + $0x1a0] sm:$0xff]
        %v2946 = vld [vmem:[%s2922 + $0x1b0] sm:$0xff]
        %v2947 = vld [vmem:[%s2922 + $0x1e0] sm:$0xff]
        %v2948 = vld [vmem:[%s2922 + $0x1f0] sm:$0xff]
        %v2949 = vld [vmem:[%s2922 + $0x200] sm:$0xff]
        %v2950 = vld [vmem:[%s2922 + $0x210] sm:$0xff]
        %v2951 = vld [vmem:[%s2922 + $0x220] sm:$0xff]
        %v2952 = vld [vmem:[%s2922 + $0x230] sm:$0xff]
        %v2953 = vld [vmem:[%s2922 + $0x240] sm:$0xff]
        %v2954 = vld [vmem:[%s2922 + $0x250] sm:$0xff]
        %v2955 = vpack.c.bf16 %v2924, %v2923
        %v2956 = vpack.c.bf16 %v2926, %v2925
        %v2957 = vpack.c.bf16 %v2928, %v2927
        %v2958 = vpack.c.bf16 %v2930, %v2929
        %v2959 = vpack.c.bf16 %v2932, %v2931
        %v2960 = vpack.c.bf16 %v2934, %v2933
        %v2961 = vpack.c.bf16 %v2936, %v2935
        %v2962 = vpack.c.bf16 %v2938, %v2937
        %v2963 = vpack.c.bf16 %v2940, %v2939
        %v2964 = vpack.c.bf16 %v2942, %v2941
        %v2965 = vpack.c.bf16 %v2944, %v2943
        %v2966 = vpack.c.bf16 %v2946, %v2945
        %v2967 = vpack.c.bf16 %v2948, %v2947
        %v2968 = vpack.c.bf16 %v2950, %v2949
        %v2969 = vpack.c.bf16 %v2952, %v2951
        %v2970 = vpack.c.bf16 %v2954, %v2953
        %2987 = vrot.lane.b32.xlu0 %v2955, 84
        %v2988 = vpop.permute.xlu0 %2987
        %2989 = vrot.lane.b32.xlu0 %v2956, 84
        %v2990 = vpop.permute.xlu0 %2989
        %2991 = vrot.lane.b32.xlu0 %v2957, 84
        %v2992 = vpop.permute.xlu0 %2991
        %2993 = vrot.lane.b32.xlu0 %v2958, 84
        %v2994 = vpop.permute.xlu0 %2993
        %2995 = vrot.lane.b32.xlu0 %v2959, 84
        %v2996 = vpop.permute.xlu0 %2995
        %2997 = vrot.lane.b32.xlu0 %v2960, 84
        %v2998 = vpop.permute.xlu0 %2997
        %2999 = vrot.lane.b32.xlu0 %v2961, 84
        %v3000 = vpop.permute.xlu0 %2999
        %3001 = vrot.lane.b32.xlu0 %v2962, 84
        %v3002 = vpop.permute.xlu0 %3001
        %3003 = vrot.lane.b32.xlu0 %v2963, 84
        %v3004 = vpop.permute.xlu0 %3003
        %3005 = vrot.lane.b32.xlu0 %v2964, 84
        %v3006 = vpop.permute.xlu0 %3005
        %3007 = vrot.lane.b32.xlu0 %v2965, 84
        %v3008 = vpop.permute.xlu0 %3007
        %3009 = vrot.lane.b32.xlu0 %v2966, 84
        %v3010 = vpop.permute.xlu0 %3009
        %3011 = vrot.lane.b32.xlu0 %v2967, 84
        %v3012 = vpop.permute.xlu0 %3011
        %3013 = vrot.lane.b32.xlu0 %v2968, 84
        %v3014 = vpop.permute.xlu0 %3013
        %3015 = vrot.lane.b32.xlu0 %v2969, 84
        %v3016 = vpop.permute.xlu0 %3015
        %3017 = vrot.lane.b32.xlu0 %v2970, 84
        %v3018 = vpop.permute.xlu0 %3017
        %vm3035 = vcmask 720544
        %3036 = vst.msk [vmem:[#allocation2] sm:$0xff] %vm3035, %v2988
        %3037 = vst.msk [vmem:[#allocation2 + $0x8] sm:$0xff] %vm3035, %v2990
        %3038 = vst.msk [vmem:[#allocation2 + $0x10] sm:$0xff] %vm3035, %v2992
        %3039 = vst.msk [vmem:[#allocation2 + $0x18] sm:$0xff] %vm3035, %v2994
        %3040 = vst.msk [vmem:[#allocation2 + $0x20] sm:$0xff] %vm3035, %v2996
        %3041 = vst.msk [vmem:[#allocation2 + $0x28] sm:$0xff] %vm3035, %v2998
        %3042 = vst.msk [vmem:[#allocation2 + $0x30] sm:$0xff] %vm3035, %v3000
        %3043 = vst.msk [vmem:[#allocation2 + $0x38] sm:$0xff] %vm3035, %v3002
        %3044 = vst.msk [vmem:[#allocation2 + $0x40] sm:$0xff] %vm3035, %v3004
        %3045 = vst.msk [vmem:[#allocation2 + $0x48] sm:$0xff] %vm3035, %v3006
        %3046 = vst.msk [vmem:[#allocation2 + $0x50] sm:$0xff] %vm3035, %v3008
        %3047 = vst.msk [vmem:[#allocation2 + $0x58] sm:$0xff] %vm3035, %v3010
        %3048 = vst.msk [vmem:[#allocation2 + $0x60] sm:$0xff] %vm3035, %v3012
        %3049 = vst.msk [vmem:[#allocation2 + $0x68] sm:$0xff] %vm3035, %v3014
        %3050 = vst.msk [vmem:[#allocation2 + $0x70] sm:$0xff] %vm3035, %v3016
        %3051 = vst.msk [vmem:[#allocation2 + $0x78] sm:$0xff] %vm3035, %v3018
        %v3052 = vld [vmem:[%s2922 + $0x1] sm:$0xff]
        %v3053 = vld [vmem:[%s2922 + $0x11] sm:$0xff]
        %v3054 = vld [vmem:[%s2922 + $0x21] sm:$0xff]
        %v3055 = vld [vmem:[%s2922 + $0x31] sm:$0xff]
        %v3056 = vld [vmem:[%s2922 + $0x41] sm:$0xff]
        %v3057 = vld [vmem:[%s2922 + $0x51] sm:$0xff]
        %v3058 = vld [vmem:[%s2922 + $0x61] sm:$0xff]
        %v3059 = vld [vmem:[%s2922 + $0x71] sm:$0xff]
        %v3060 = vld [vmem:[%s2922 + $0xa1] sm:$0xff]
        %v3061 = vld [vmem:[%s2922 + $0xb1] sm:$0xff]
        %v3062 = vld [vmem:[%s2922 + $0xc1] sm:$0xff]
        %v3063 = vld [vmem:[%s2922 + $0xd1] sm:$0xff]
        %v3064 = vld [vmem:[%s2922 + $0xe1] sm:$0xff]
        %v3065 = vld [vmem:[%s2922 + $0xf1] sm:$0xff]
        %v3066 = vld [vmem:[%s2922 + $0x101] sm:$0xff]
        %v3067 = vld [vmem:[%s2922 + $0x111] sm:$0xff]
        %v3068 = vld [vmem:[%s2922 + $0x141] sm:$0xff]
        %v3069 = vld [vmem:[%s2922 + $0x151] sm:$0xff]
        %v3070 = vld [vmem:[%s2922 + $0x161] sm:$0xff]
        %v3071 = vld [vmem:[%s2922 + $0x171] sm:$0xff]
        %v3072 = vld [vmem:[%s2922 + $0x181] sm:$0xff]
        %v3073 = vld [vmem:[%s2922 + $0x191] sm:$0xff]
        %v3074 = vld [vmem:[%s2922 + $0x1a1] sm:$0xff]
        %v3075 = vld [vmem:[%s2922 + $0x1b1] sm:$0xff]
        %v3076 = vld [vmem:[%s2922 + $0x1e1] sm:$0xff]
        %v3077 = vld [vmem:[%s2922 + $0x1f1] sm:$0xff]
        %v3078 = vld [vmem:[%s2922 + $0x201] sm:$0xff]
        %v3079 = vld [vmem:[%s2922 + $0x211] sm:$0xff]
        %v3080 = vld [vmem:[%s2922 + $0x221] sm:$0xff]
        %v3081 = vld [vmem:[%s2922 + $0x231] sm:$0xff]
        %v3082 = vld [vmem:[%s2922 + $0x241] sm:$0xff]
        %v3083 = vld [vmem:[%s2922 + $0x251] sm:$0xff]
        %v3084 = vpack.c.bf16 %v3053, %v3052
        %v3085 = vpack.c.bf16 %v3055, %v3054
        %v3086 = vpack.c.bf16 %v3057, %v3056
        %v3087 = vpack.c.bf16 %v3059, %v3058
        %v3088 = vpack.c.bf16 %v3061, %v3060
        %v3089 = vpack.c.bf16 %v3063, %v3062
        %v3090 = vpack.c.bf16 %v3065, %v3064
        %v3091 = vpack.c.bf16 %v3067, %v3066
        %v3092 = vpack.c.bf16 %v3069, %v3068
        %v3093 = vpack.c.bf16 %v3071, %v3070
        %v3094 = vpack.c.bf16 %v3073, %v3072
        %v3095 = vpack.c.bf16 %v3075, %v3074
        %v3096 = vpack.c.bf16 %v3077, %v3076
        %v3097 = vpack.c.bf16 %v3079, %v3078
        %v3098 = vpack.c.bf16 %v3081, %v3080
        %v3099 = vpack.c.bf16 %v3083, %v3082
        %3116 = vrot.lane.b32.xlu0 %v3084, 88
        %v3117 = vpop.permute.xlu0 %3116
        %3118 = vrot.lane.b32.xlu0 %v3085, 88
        %v3119 = vpop.permute.xlu0 %3118
        %3120 = vrot.lane.b32.xlu0 %v3086, 88
        %v3121 = vpop.permute.xlu0 %3120
        %3122 = vrot.lane.b32.xlu0 %v3087, 88
        %v3123 = vpop.permute.xlu0 %3122
        %3124 = vrot.lane.b32.xlu0 %v3088, 88
        %v3125 = vpop.permute.xlu0 %3124
        %3126 = vrot.lane.b32.xlu0 %v3089, 88
        %v3127 = vpop.permute.xlu0 %3126
        %3128 = vrot.lane.b32.xlu0 %v3090, 88
        %v3129 = vpop.permute.xlu0 %3128
        %3130 = vrot.lane.b32.xlu0 %v3091, 88
        %v3131 = vpop.permute.xlu0 %3130
        %3132 = vrot.lane.b32.xlu0 %v3092, 88
        %v3133 = vpop.permute.xlu0 %3132
        %3134 = vrot.lane.b32.xlu0 %v3093, 88
        %v3135 = vpop.permute.xlu0 %3134
        %3136 = vrot.lane.b32.xlu0 %v3094, 88
        %v3137 = vpop.permute.xlu0 %3136
        %3138 = vrot.lane.b32.xlu0 %v3095, 88
        %v3139 = vpop.permute.xlu0 %3138
        %3140 = vrot.lane.b32.xlu0 %v3096, 88
        %v3141 = vpop.permute.xlu0 %3140
        %3142 = vrot.lane.b32.xlu0 %v3097, 88
        %v3143 = vpop.permute.xlu0 %3142
        %3144 = vrot.lane.b32.xlu0 %v3098, 88
        %v3145 = vpop.permute.xlu0 %3144
        %3146 = vrot.lane.b32.xlu0 %v3099, 88
        %v3147 = vpop.permute.xlu0 %3146
        %vm3164 = vcmask 753344
        %3165 = vst.msk [vmem:[#allocation2] sm:$0xff] %vm3164, %v3117
        %3166 = vst.msk [vmem:[#allocation2 + $0x8] sm:$0xff] %vm3164, %v3119
        %3167 = vst.msk [vmem:[#allocation2 + $0x10] sm:$0xff] %vm3164, %v3121
        %3168 = vst.msk [vmem:[#allocation2 + $0x18] sm:$0xff] %vm3164, %v3123
        %3169 = vst.msk [vmem:[#allocation2 + $0x20] sm:$0xff] %vm3164, %v3125
        %3170 = vst.msk [vmem:[#allocation2 + $0x28] sm:$0xff] %vm3164, %v3127
        %3171 = vst.msk [vmem:[#allocation2 + $0x30] sm:$0xff] %vm3164, %v3129
        %3172 = vst.msk [vmem:[#allocation2 + $0x38] sm:$0xff] %vm3164, %v3131
        %3173 = vst.msk [vmem:[#allocation2 + $0x40] sm:$0xff] %vm3164, %v3133
        %3174 = vst.msk [vmem:[#allocation2 + $0x48] sm:$0xff] %vm3164, %v3135
        %3175 = vst.msk [vmem:[#allocation2 + $0x50] sm:$0xff] %vm3164, %v3137
        %3176 = vst.msk [vmem:[#allocation2 + $0x58] sm:$0xff] %vm3164, %v3139
        %3177 = vst.msk [vmem:[#allocation2 + $0x60] sm:$0xff] %vm3164, %v3141
        %3178 = vst.msk [vmem:[#allocation2 + $0x68] sm:$0xff] %vm3164, %v3143
        %3179 = vst.msk [vmem:[#allocation2 + $0x70] sm:$0xff] %vm3164, %v3145
        %3180 = vst.msk [vmem:[#allocation2 + $0x78] sm:$0xff] %vm3164, %v3147
        %v3181 = vld [vmem:[%s2922 + $0x2] sm:$0xff]
        %v3182 = vld [vmem:[%s2922 + $0x12] sm:$0xff]
        %v3183 = vld [vmem:[%s2922 + $0x22] sm:$0xff]
        %v3184 = vld [vmem:[%s2922 + $0x32] sm:$0xff]
        %v3185 = vld [vmem:[%s2922 + $0x42] sm:$0xff]
        %v3186 = vld [vmem:[%s2922 + $0x52] sm:$0xff]
        %v3187 = vld [vmem:[%s2922 + $0x62] sm:$0xff]
        %v3188 = vld [vmem:[%s2922 + $0x72] sm:$0xff]
        %v3189 = vld [vmem:[%s2922 + $0xa2] sm:$0xff]
        %v3190 = vld [vmem:[%s2922 + $0xb2] sm:$0xff]
        %v3191 = vld [vmem:[%s2922 + $0xc2] sm:$0xff]
        %v3192 = vld [vmem:[%s2922 + $0xd2] sm:$0xff]
        %v3193 = vld [vmem:[%s2922 + $0xe2] sm:$0xff]
        %v3194 = vld [vmem:[%s2922 + $0xf2] sm:$0xff]
        %v3195 = vld [vmem:[%s2922 + $0x102] sm:$0xff]
        %v3196 = vld [vmem:[%s2922 + $0x112] sm:$0xff]
        %v3197 = vld [vmem:[%s2922 + $0x142] sm:$0xff]
        %v3198 = vld [vmem:[%s2922 + $0x152] sm:$0xff]
        %v3199 = vld [vmem:[%s2922 + $0x162] sm:$0xff]
        %v3200 = vld [vmem:[%s2922 + $0x172] sm:$0xff]
        %v3201 = vld [vmem:[%s2922 + $0x182] sm:$0xff]
        %v3202 = vld [vmem:[%s2922 + $0x192] sm:$0xff]
        %v3203 = vld [vmem:[%s2922 + $0x1a2] sm:$0xff]
        %v3204 = vld [vmem:[%s2922 + $0x1b2] sm:$0xff]
        %v3205 = vld [vmem:[%s2922 + $0x1e2] sm:$0xff]
        %v3206 = vld [vmem:[%s2922 + $0x1f2] sm:$0xff]
        %v3207 = vld [vmem:[%s2922 + $0x202] sm:$0xff]
        %v3208 = vld [vmem:[%s2922 + $0x212] sm:$0xff]
        %v3209 = vld [vmem:[%s2922 + $0x222] sm:$0xff]
        %v3210 = vld [vmem:[%s2922 + $0x232] sm:$0xff]
        %v3211 = vld [vmem:[%s2922 + $0x242] sm:$0xff]
        %v3212 = vld [vmem:[%s2922 + $0x252] sm:$0xff]
        %v3213 = vpack.c.bf16 %v3182, %v3181
        %v3214 = vpack.c.bf16 %v3184, %v3183
        %v3215 = vpack.c.bf16 %v3186, %v3185
        %v3216 = vpack.c.bf16 %v3188, %v3187
        %v3217 = vpack.c.bf16 %v3190, %v3189
        %v3218 = vpack.c.bf16 %v3192, %v3191
        %v3219 = vpack.c.bf16 %v3194, %v3193
        %v3220 = vpack.c.bf16 %v3196, %v3195
        %v3221 = vpack.c.bf16 %v3198, %v3197
        %v3222 = vpack.c.bf16 %v3200, %v3199
        %v3223 = vpack.c.bf16 %v3202, %v3201
        %v3224 = vpack.c.bf16 %v3204, %v3203
        %v3225 = vpack.c.bf16 %v3206, %v3205
        %v3226 = vpack.c.bf16 %v3208, %v3207
        %v3227 = vpack.c.bf16 %v3210, %v3209
        %v3228 = vpack.c.bf16 %v3212, %v3211
        %3245 = vrot.lane.b32.xlu0 %v3213, 92
        %v3246 = vpop.permute.xlu0 %3245
        %3247 = vrot.lane.b32.xlu0 %v3214, 92
        %v3248 = vpop.permute.xlu0 %3247
        %3249 = vrot.lane.b32.xlu0 %v3215, 92
        %v3250 = vpop.permute.xlu0 %3249
        %3251 = vrot.lane.b32.xlu0 %v3216, 92
        %v3252 = vpop.permute.xlu0 %3251
        %3253 = vrot.lane.b32.xlu0 %v3217, 92
        %v3254 = vpop.permute.xlu0 %3253
        %3255 = vrot.lane.b32.xlu0 %v3218, 92
        %v3256 = vpop.permute.xlu0 %3255
        %3257 = vrot.lane.b32.xlu0 %v3219, 92
        %v3258 = vpop.permute.xlu0 %3257
        %3259 = vrot.lane.b32.xlu0 %v3220, 92
        %v3260 = vpop.permute.xlu0 %3259
        %3261 = vrot.lane.b32.xlu0 %v3221, 92
        %v3262 = vpop.permute.xlu0 %3261
        %3263 = vrot.lane.b32.xlu0 %v3222, 92
        %v3264 = vpop.permute.xlu0 %3263
        %3265 = vrot.lane.b32.xlu0 %v3223, 92
        %v3266 = vpop.permute.xlu0 %3265
        %3267 = vrot.lane.b32.xlu0 %v3224, 92
        %v3268 = vpop.permute.xlu0 %3267
        %3269 = vrot.lane.b32.xlu0 %v3225, 92
        %v3270 = vpop.permute.xlu0 %3269
        %3271 = vrot.lane.b32.xlu0 %v3226, 92
        %v3272 = vpop.permute.xlu0 %3271
        %3273 = vrot.lane.b32.xlu0 %v3227, 92
        %v3274 = vpop.permute.xlu0 %3273
        %3275 = vrot.lane.b32.xlu0 %v3228, 92
        %v3276 = vpop.permute.xlu0 %3275
        %vm3293 = vcmask 786144
        %3294 = vst.msk [vmem:[#allocation2] sm:$0xff] %vm3293, %v3246
        %3295 = vst.msk [vmem:[#allocation2 + $0x8] sm:$0xff] %vm3293, %v3248
        %3296 = vst.msk [vmem:[#allocation2 + $0x10] sm:$0xff] %vm3293, %v3250
        %3297 = vst.msk [vmem:[#allocation2 + $0x18] sm:$0xff] %vm3293, %v3252
        %3298 = vst.msk [vmem:[#allocation2 + $0x20] sm:$0xff] %vm3293, %v3254
        %3299 = vst.msk [vmem:[#allocation2 + $0x28] sm:$0xff] %vm3293, %v3256
        %3300 = vst.msk [vmem:[#allocation2 + $0x30] sm:$0xff] %vm3293, %v3258
        %3301 = vst.msk [vmem:[#allocation2 + $0x38] sm:$0xff] %vm3293, %v3260
        %3302 = vst.msk [vmem:[#allocation2 + $0x40] sm:$0xff] %vm3293, %v3262
        %3303 = vst.msk [vmem:[#allocation2 + $0x48] sm:$0xff] %vm3293, %v3264
        %3304 = vst.msk [vmem:[#allocation2 + $0x50] sm:$0xff] %vm3293, %v3266
        %3305 = vst.msk [vmem:[#allocation2 + $0x58] sm:$0xff] %vm3293, %v3268
        %3306 = vst.msk [vmem:[#allocation2 + $0x60] sm:$0xff] %vm3293, %v3270
        %3307 = vst.msk [vmem:[#allocation2 + $0x68] sm:$0xff] %vm3293, %v3272
        %3308 = vst.msk [vmem:[#allocation2 + $0x70] sm:$0xff] %vm3293, %v3274
        %3309 = vst.msk [vmem:[#allocation2 + $0x78] sm:$0xff] %vm3293, %v3276
        %s3310 = sadd.s32 32, %s2532
        %s3311 = scalar_lea.vmem %s256, %s3310
        %v3312 = vld [vmem:[%s3311] sm:$0xff]
        %v3313 = vld [vmem:[%s3311 + $0x10] sm:$0xff]
        %v3314 = vld [vmem:[%s3311 + $0x20] sm:$0xff]
        %v3315 = vld [vmem:[%s3311 + $0x30] sm:$0xff]
        %v3316 = vld [vmem:[%s3311 + $0x40] sm:$0xff]
        %v3317 = vld [vmem:[%s3311 + $0x50] sm:$0xff]
        %v3318 = vld [vmem:[%s3311 + $0x60] sm:$0xff]
        %v3319 = vld [vmem:[%s3311 + $0x70] sm:$0xff]
        %v3320 = vld [vmem:[%s3311 + $0xa0] sm:$0xff]
        %v3321 = vld [vmem:[%s3311 + $0xb0] sm:$0xff]
        %v3322 = vld [vmem:[%s3311 + $0xc0] sm:$0xff]
        %v3323 = vld [vmem:[%s3311 + $0xd0] sm:$0xff]
        %v3324 = vld [vmem:[%s3311 + $0xe0] sm:$0xff]
        %v3325 = vld [vmem:[%s3311 + $0xf0] sm:$0xff]
        %v3326 = vld [vmem:[%s3311 + $0x100] sm:$0xff]
        %v3327 = vld [vmem:[%s3311 + $0x110] sm:$0xff]
        %v3328 = vld [vmem:[%s3311 + $0x140] sm:$0xff]
        %v3329 = vld [vmem:[%s3311 + $0x150] sm:$0xff]
        %v3330 = vld [vmem:[%s3311 + $0x160] sm:$0xff]
        %v3331 = vld [vmem:[%s3311 + $0x170] sm:$0xff]
        %v3332 = vld [vmem:[%s3311 + $0x180] sm:$0xff]
        %v3333 = vld [vmem:[%s3311 + $0x190] sm:$0xff]
        %v3334 = vld [vmem:[%s3311 + $0x1a0] sm:$0xff]
        %v3335 = vld [vmem:[%s3311 + $0x1b0] sm:$0xff]
        %v3336 = vld [vmem:[%s3311 + $0x1e0] sm:$0xff]
        %v3337 = vld [vmem:[%s3311 + $0x1f0] sm:$0xff]
        %v3338 = vld [vmem:[%s3311 + $0x200] sm:$0xff]
        %v3339 = vld [vmem:[%s3311 + $0x210] sm:$0xff]
        %v3340 = vld [vmem:[%s3311 + $0x220] sm:$0xff]
        %v3341 = vld [vmem:[%s3311 + $0x230] sm:$0xff]
        %v3342 = vld [vmem:[%s3311 + $0x240] sm:$0xff]
        %v3343 = vld [vmem:[%s3311 + $0x250] sm:$0xff]
        %v3344 = vpack.c.bf16 %v3313, %v3312
        %v3345 = vpack.c.bf16 %v3315, %v3314
        %v3346 = vpack.c.bf16 %v3317, %v3316
        %v3347 = vpack.c.bf16 %v3319, %v3318
        %v3348 = vpack.c.bf16 %v3321, %v3320
        %v3349 = vpack.c.bf16 %v3323, %v3322
        %v3350 = vpack.c.bf16 %v3325, %v3324
        %v3351 = vpack.c.bf16 %v3327, %v3326
        %v3352 = vpack.c.bf16 %v3329, %v3328
        %v3353 = vpack.c.bf16 %v3331, %v3330
        %v3354 = vpack.c.bf16 %v3333, %v3332
        %v3355 = vpack.c.bf16 %v3335, %v3334
        %v3356 = vpack.c.bf16 %v3337, %v3336
        %v3357 = vpack.c.bf16 %v3339, %v3338
        %v3358 = vpack.c.bf16 %v3341, %v3340
        %v3359 = vpack.c.bf16 %v3343, %v3342
        %3376 = vrot.lane.b32.xlu0 %v3344, 96
        %v3377 = vpop.permute.xlu0 %3376
        %3378 = vrot.lane.b32.xlu0 %v3345, 96
        %v3379 = vpop.permute.xlu0 %3378
        %3380 = vrot.lane.b32.xlu0 %v3346, 96
        %v3381 = vpop.permute.xlu0 %3380
        %3382 = vrot.lane.b32.xlu0 %v3347, 96
        %v3383 = vpop.permute.xlu0 %3382
        %3384 = vrot.lane.b32.xlu0 %v3348, 96
        %v3385 = vpop.permute.xlu0 %3384
        %3386 = vrot.lane.b32.xlu0 %v3349, 96
        %v3387 = vpop.permute.xlu0 %3386
        %3388 = vrot.lane.b32.xlu0 %v3350, 96
        %v3389 = vpop.permute.xlu0 %3388
        %3390 = vrot.lane.b32.xlu0 %v3351, 96
        %v3391 = vpop.permute.xlu0 %3390
        %3392 = vrot.lane.b32.xlu0 %v3352, 96
        %v3393 = vpop.permute.xlu0 %3392
        %3394 = vrot.lane.b32.xlu0 %v3353, 96
        %v3395 = vpop.permute.xlu0 %3394
        %3396 = vrot.lane.b32.xlu0 %v3354, 96
        %v3397 = vpop.permute.xlu0 %3396
        %3398 = vrot.lane.b32.xlu0 %v3355, 96
        %v3399 = vpop.permute.xlu0 %3398
        %3400 = vrot.lane.b32.xlu0 %v3356, 96
        %v3401 = vpop.permute.xlu0 %3400
        %3402 = vrot.lane.b32.xlu0 %v3357, 96
        %v3403 = vpop.permute.xlu0 %3402
        %3404 = vrot.lane.b32.xlu0 %v3358, 96
        %v3405 = vpop.permute.xlu0 %3404
        %3406 = vrot.lane.b32.xlu0 %v3359, 96
        %v3407 = vpop.permute.xlu0 %3406
        %vm3424 = vcmask 818944
        %3425 = vst.msk [vmem:[#allocation2] sm:$0xff] %vm3424, %v3377
        %3426 = vst.msk [vmem:[#allocation2 + $0x8] sm:$0xff] %vm3424, %v3379
        %3427 = vst.msk [vmem:[#allocation2 + $0x10] sm:$0xff] %vm3424, %v3381
        %3428 = vst.msk [vmem:[#allocation2 + $0x18] sm:$0xff] %vm3424, %v3383
        %3429 = vst.msk [vmem:[#allocation2 + $0x20] sm:$0xff] %vm3424, %v3385
        %3430 = vst.msk [vmem:[#allocation2 + $0x28] sm:$0xff] %vm3424, %v3387
        %3431 = vst.msk [vmem:[#allocation2 + $0x30] sm:$0xff] %vm3424, %v3389
        %3432 = vst.msk [vmem:[#allocation2 + $0x38] sm:$0xff] %vm3424, %v3391
        %3433 = vst.msk [vmem:[#allocation2 + $0x40] sm:$0xff] %vm3424, %v3393
        %3434 = vst.msk [vmem:[#allocation2 + $0x48] sm:$0xff] %vm3424, %v3395
        %3435 = vst.msk [vmem:[#allocation2 + $0x50] sm:$0xff] %vm3424, %v3397
        %3436 = vst.msk [vmem:[#allocation2 + $0x58] sm:$0xff] %vm3424, %v3399
        %3437 = vst.msk [vmem:[#allocation2 + $0x60] sm:$0xff] %vm3424, %v3401
        %3438 = vst.msk [vmem:[#allocation2 + $0x68] sm:$0xff] %vm3424, %v3403
        %3439 = vst.msk [vmem:[#allocation2 + $0x70] sm:$0xff] %vm3424, %v3405
        %3440 = vst.msk [vmem:[#allocation2 + $0x78] sm:$0xff] %vm3424, %v3407
        %v3441 = vld [vmem:[%s3311 + $0x1] sm:$0xff]
        %v3442 = vld [vmem:[%s3311 + $0x11] sm:$0xff]
        %v3443 = vld [vmem:[%s3311 + $0x21] sm:$0xff]
        %v3444 = vld [vmem:[%s3311 + $0x31] sm:$0xff]
        %v3445 = vld [vmem:[%s3311 + $0x41] sm:$0xff]
        %v3446 = vld [vmem:[%s3311 + $0x51] sm:$0xff]
        %v3447 = vld [vmem:[%s3311 + $0x61] sm:$0xff]
        %v3448 = vld [vmem:[%s3311 + $0x71] sm:$0xff]
        %v3449 = vld [vmem:[%s3311 + $0xa1] sm:$0xff]
        %v3450 = vld [vmem:[%s3311 + $0xb1] sm:$0xff]
        %v3451 = vld [vmem:[%s3311 + $0xc1] sm:$0xff]
        %v3452 = vld [vmem:[%s3311 + $0xd1] sm:$0xff]
        %v3453 = vld [vmem:[%s3311 + $0xe1] sm:$0xff]
        %v3454 = vld [vmem:[%s3311 + $0xf1] sm:$0xff]
        %v3455 = vld [vmem:[%s3311 + $0x101] sm:$0xff]
        %v3456 = vld [vmem:[%s3311 + $0x111] sm:$0xff]
        %v3457 = vld [vmem:[%s3311 + $0x141] sm:$0xff]
        %v3458 = vld [vmem:[%s3311 + $0x151] sm:$0xff]
        %v3459 = vld [vmem:[%s3311 + $0x161] sm:$0xff]
        %v3460 = vld [vmem:[%s3311 + $0x171] sm:$0xff]
        %v3461 = vld [vmem:[%s3311 + $0x181] sm:$0xff]
        %v3462 = vld [vmem:[%s3311 + $0x191] sm:$0xff]
        %v3463 = vld [vmem:[%s3311 + $0x1a1] sm:$0xff]
        %v3464 = vld [vmem:[%s3311 + $0x1b1] sm:$0xff]
        %v3465 = vld [vmem:[%s3311 + $0x1e1] sm:$0xff]
        %v3466 = vld [vmem:[%s3311 + $0x1f1] sm:$0xff]
        %v3467 = vld [vmem:[%s3311 + $0x201] sm:$0xff]
        %v3468 = vld [vmem:[%s3311 + $0x211] sm:$0xff]
        %v3469 = vld [vmem:[%s3311 + $0x221] sm:$0xff]
        %v3470 = vld [vmem:[%s3311 + $0x231] sm:$0xff]
        %v3471 = vld [vmem:[%s3311 + $0x241] sm:$0xff]
        %v3472 = vld [vmem:[%s3311 + $0x251] sm:$0xff]
        %v3473 = vpack.c.bf16 %v3442, %v3441
        %v3474 = vpack.c.bf16 %v3444, %v3443
        %v3475 = vpack.c.bf16 %v3446, %v3445
        %v3476 = vpack.c.bf16 %v3448, %v3447
        %v3477 = vpack.c.bf16 %v3450, %v3449
        %v3478 = vpack.c.bf16 %v3452, %v3451
        %v3479 = vpack.c.bf16 %v3454, %v3453
        %v3480 = vpack.c.bf16 %v3456, %v3455
        %v3481 = vpack.c.bf16 %v3458, %v3457
        %v3482 = vpack.c.bf16 %v3460, %v3459
        %v3483 = vpack.c.bf16 %v3462, %v3461
        %v3484 = vpack.c.bf16 %v3464, %v3463
        %v3485 = vpack.c.bf16 %v3466, %v3465
        %v3486 = vpack.c.bf16 %v3468, %v3467
        %v3487 = vpack.c.bf16 %v3470, %v3469
        %v3488 = vpack.c.bf16 %v3472, %v3471
        %3505 = vrot.lane.b32.xlu0 %v3473, 100
        %v3506 = vpop.permute.xlu0 %3505
        %3507 = vrot.lane.b32.xlu0 %v3474, 100
        %v3508 = vpop.permute.xlu0 %3507
        %3509 = vrot.lane.b32.xlu0 %v3475, 100
        %v3510 = vpop.permute.xlu0 %3509
        %3511 = vrot.lane.b32.xlu0 %v3476, 100
        %v3512 = vpop.permute.xlu0 %3511
        %3513 = vrot.lane.b32.xlu0 %v3477, 100
        %v3514 = vpop.permute.xlu0 %3513
        %3515 = vrot.lane.b32.xlu0 %v3478, 100
        %v3516 = vpop.permute.xlu0 %3515
        %3517 = vrot.lane.b32.xlu0 %v3479, 100
        %v3518 = vpop.permute.xlu0 %3517
        %3519 = vrot.lane.b32.xlu0 %v3480, 100
        %v3520 = vpop.permute.xlu0 %3519
        %3521 = vrot.lane.b32.xlu0 %v3481, 100
        %v3522 = vpop.permute.xlu0 %3521
        %3523 = vrot.lane.b32.xlu0 %v3482, 100
        %v3524 = vpop.permute.xlu0 %3523
        %3525 = vrot.lane.b32.xlu0 %v3483, 100
        %v3526 = vpop.permute.xlu0 %3525
        %3527 = vrot.lane.b32.xlu0 %v3484, 100
        %v3528 = vpop.permute.xlu0 %3527
        %3529 = vrot.lane.b32.xlu0 %v3485, 100
        %v3530 = vpop.permute.xlu0 %3529
        %3531 = vrot.lane.b32.xlu0 %v3486, 100
        %v3532 = vpop.permute.xlu0 %3531
        %3533 = vrot.lane.b32.xlu0 %v3487, 100
        %v3534 = vpop.permute.xlu0 %3533
        %3535 = vrot.lane.b32.xlu0 %v3488, 100
        %v3536 = vpop.permute.xlu0 %3535
        %vm3553 = vcmask 851744
        %3554 = vst.msk [vmem:[#allocation2] sm:$0xff] %vm3553, %v3506
        %3555 = vst.msk [vmem:[#allocation2 + $0x8] sm:$0xff] %vm3553, %v3508
        %3556 = vst.msk [vmem:[#allocation2 + $0x10] sm:$0xff] %vm3553, %v3510
        %3557 = vst.msk [vmem:[#allocation2 + $0x18] sm:$0xff] %vm3553, %v3512
        %3558 = vst.msk [vmem:[#allocation2 + $0x20] sm:$0xff] %vm3553, %v3514
        %3559 = vst.msk [vmem:[#allocation2 + $0x28] sm:$0xff] %vm3553, %v3516
        %3560 = vst.msk [vmem:[#allocation2 + $0x30] sm:$0xff] %vm3553, %v3518
        %3561 = vst.msk [vmem:[#allocation2 + $0x38] sm:$0xff] %vm3553, %v3520
        %3562 = vst.msk [vmem:[#allocation2 + $0x40] sm:$0xff] %vm3553, %v3522
        %3563 = vst.msk [vmem:[#allocation2 + $0x48] sm:$0xff] %vm3553, %v3524
        %3564 = vst.msk [vmem:[#allocation2 + $0x50] sm:$0xff] %vm3553, %v3526
        %3565 = vst.msk [vmem:[#allocation2 + $0x58] sm:$0xff] %vm3553, %v3528
        %3566 = vst.msk [vmem:[#allocation2 + $0x60] sm:$0xff] %vm3553, %v3530
        %3567 = vst.msk [vmem:[#allocation2 + $0x68] sm:$0xff] %vm3553, %v3532
        %3568 = vst.msk [vmem:[#allocation2 + $0x70] sm:$0xff] %vm3553, %v3534
        %3569 = vst.msk [vmem:[#allocation2 + $0x78] sm:$0xff] %vm3553, %v3536
        %v3570 = vld [vmem:[%s3311 + $0x2] sm:$0xff]
        %v3571 = vld [vmem:[%s3311 + $0x12] sm:$0xff]
        %v3572 = vld [vmem:[%s3311 + $0x22] sm:$0xff]
        %v3573 = vld [vmem:[%s3311 + $0x32] sm:$0xff]
        %v3574 = vld [vmem:[%s3311 + $0x42] sm:$0xff]
        %v3575 = vld [vmem:[%s3311 + $0x52] sm:$0xff]
        %v3576 = vld [vmem:[%s3311 + $0x62] sm:$0xff]
        %v3577 = vld [vmem:[%s3311 + $0x72] sm:$0xff]
        %v3578 = vld [vmem:[%s3311 + $0xa2] sm:$0xff]
        %v3579 = vld [vmem:[%s3311 + $0xb2] sm:$0xff]
        %v3580 = vld [vmem:[%s3311 + $0xc2] sm:$0xff]
        %v3581 = vld [vmem:[%s3311 + $0xd2] sm:$0xff]
        %v3582 = vld [vmem:[%s3311 + $0xe2] sm:$0xff]
        %v3583 = vld [vmem:[%s3311 + $0xf2] sm:$0xff]
        %v3584 = vld [vmem:[%s3311 + $0x102] sm:$0xff]
        %v3585 = vld [vmem:[%s3311 + $0x112] sm:$0xff]
        %v3586 = vld [vmem:[%s3311 + $0x142] sm:$0xff]
        %v3587 = vld [vmem:[%s3311 + $0x152] sm:$0xff]
        %v3588 = vld [vmem:[%s3311 + $0x162] sm:$0xff]
        %v3589 = vld [vmem:[%s3311 + $0x172] sm:$0xff]
        %v3590 = vld [vmem:[%s3311 + $0x182] sm:$0xff]
        %v3591 = vld [vmem:[%s3311 + $0x192] sm:$0xff]
        %v3592 = vld [vmem:[%s3311 + $0x1a2] sm:$0xff]
        %v3593 = vld [vmem:[%s3311 + $0x1b2] sm:$0xff]
        %v3594 = vld [vmem:[%s3311 + $0x1e2] sm:$0xff]
        %v3595 = vld [vmem:[%s3311 + $0x1f2] sm:$0xff]
        %v3596 = vld [vmem:[%s3311 + $0x202] sm:$0xff]
        %v3597 = vld [vmem:[%s3311 + $0x212] sm:$0xff]
        %v3598 = vld [vmem:[%s3311 + $0x222] sm:$0xff]
        %v3599 = vld [vmem:[%s3311 + $0x232] sm:$0xff]
        %v3600 = vld [vmem:[%s3311 + $0x242] sm:$0xff]
        %v3601 = vld [vmem:[%s3311 + $0x252] sm:$0xff]
        %v3602 = vpack.c.bf16 %v3571, %v3570
        %v3603 = vpack.c.bf16 %v3573, %v3572
        %v3604 = vpack.c.bf16 %v3575, %v3574
        %v3605 = vpack.c.bf16 %v3577, %v3576
        %v3606 = vpack.c.bf16 %v3579, %v3578
        %v3607 = vpack.c.bf16 %v3581, %v3580
        %v3608 = vpack.c.bf16 %v3583, %v3582
        %v3609 = vpack.c.bf16 %v3585, %v3584
        %v3610 = vpack.c.bf16 %v3587, %v3586
        %v3611 = vpack.c.bf16 %v3589, %v3588
        %v3612 = vpack.c.bf16 %v3591, %v3590
        %v3613 = vpack.c.bf16 %v3593, %v3592
        %v3614 = vpack.c.bf16 %v3595, %v3594
        %v3615 = vpack.c.bf16 %v3597, %v3596
        %v3616 = vpack.c.bf16 %v3599, %v3598
        %v3617 = vpack.c.bf16 %v3601, %v3600
        %3634 = vrot.lane.b32.xlu0 %v3602, 104
        %v3635 = vpop.permute.xlu0 %3634
        %3636 = vrot.lane.b32.xlu0 %v3603, 104
        %v3637 = vpop.permute.xlu0 %3636
        %3638 = vrot.lane.b32.xlu0 %v3604, 104
        %v3639 = vpop.permute.xlu0 %3638
        %3640 = vrot.lane.b32.xlu0 %v3605, 104
        %v3641 = vpop.permute.xlu0 %3640
        %3642 = vrot.lane.b32.xlu0 %v3606, 104
        %v3643 = vpop.permute.xlu0 %3642
        %3644 = vrot.lane.b32.xlu0 %v3607, 104
        %v3645 = vpop.permute.xlu0 %3644
        %3646 = vrot.lane.b32.xlu0 %v3608, 104
        %v3647 = vpop.permute.xlu0 %3646
        %3648 = vrot.lane.b32.xlu0 %v3609, 104
        %v3649 = vpop.permute.xlu0 %3648
        %3650 = vrot.lane.b32.xlu0 %v3610, 104
        %v3651 = vpop.permute.xlu0 %3650
        %3652 = vrot.lane.b32.xlu0 %v3611, 104
        %v3653 = vpop.permute.xlu0 %3652
        %3654 = vrot.lane.b32.xlu0 %v3612, 104
        %v3655 = vpop.permute.xlu0 %3654
        %3656 = vrot.lane.b32.xlu0 %v3613, 104
        %v3657 = vpop.permute.xlu0 %3656
        %3658 = vrot.lane.b32.xlu0 %v3614, 104
        %v3659 = vpop.permute.xlu0 %3658
        %3660 = vrot.lane.b32.xlu0 %v3615, 104
        %v3661 = vpop.permute.xlu0 %3660
        %3662 = vrot.lane.b32.xlu0 %v3616, 104
        %v3663 = vpop.permute.xlu0 %3662
        %3664 = vrot.lane.b32.xlu0 %v3617, 104
        %v3665 = vpop.permute.xlu0 %3664
        %vm3682 = vcmask 884544
        %3683 = vst.msk [vmem:[#allocation2] sm:$0xff] %vm3682, %v3635
        %3684 = vst.msk [vmem:[#allocation2 + $0x8] sm:$0xff] %vm3682, %v3637
        %3685 = vst.msk [vmem:[#allocation2 + $0x10] sm:$0xff] %vm3682, %v3639
        %3686 = vst.msk [vmem:[#allocation2 + $0x18] sm:$0xff] %vm3682, %v3641
        %3687 = vst.msk [vmem:[#allocation2 + $0x20] sm:$0xff] %vm3682, %v3643
        %3688 = vst.msk [vmem:[#allocation2 + $0x28] sm:$0xff] %vm3682, %v3645
        %3689 = vst.msk [vmem:[#allocation2 + $0x30] sm:$0xff] %vm3682, %v3647
        %3690 = vst.msk [vmem:[#allocation2 + $0x38] sm:$0xff] %vm3682, %v3649
        %3691 = vst.msk [vmem:[#allocation2 + $0x40] sm:$0xff] %vm3682, %v3651
        %3692 = vst.msk [vmem:[#allocation2 + $0x48] sm:$0xff] %vm3682, %v3653
        %3693 = vst.msk [vmem:[#allocation2 + $0x50] sm:$0xff] %vm3682, %v3655
        %3694 = vst.msk [vmem:[#allocation2 + $0x58] sm:$0xff] %vm3682, %v3657
        %3695 = vst.msk [vmem:[#allocation2 + $0x60] sm:$0xff] %vm3682, %v3659
        %3696 = vst.msk [vmem:[#allocation2 + $0x68] sm:$0xff] %vm3682, %v3661
        %3697 = vst.msk [vmem:[#allocation2 + $0x70] sm:$0xff] %vm3682, %v3663
        %3698 = vst.msk [vmem:[#allocation2 + $0x78] sm:$0xff] %vm3682, %v3665
        %v3699 = vld [vmem:[#allocation2] sm:$0xff]
        %v3700 = vld [vmem:[#allocation2 + $0x8] sm:$0xff]
        %v3701 = vld [vmem:[#allocation2 + $0x10] sm:$0xff]
        %v3702 = vld [vmem:[#allocation2 + $0x18] sm:$0xff]
        %v3703 = vld [vmem:[#allocation2 + $0x20] sm:$0xff]
        %v3704 = vld [vmem:[#allocation2 + $0x28] sm:$0xff]
        %v3705 = vld [vmem:[#allocation2 + $0x30] sm:$0xff]
        %v3706 = vld [vmem:[#allocation2 + $0x38] sm:$0xff]
        %v3707 = vld [vmem:[#allocation2 + $0x40] sm:$0xff]
        %v3708 = vld [vmem:[#allocation2 + $0x48] sm:$0xff]
        %v3709 = vld [vmem:[#allocation2 + $0x50] sm:$0xff]
        %v3710 = vld [vmem:[#allocation2 + $0x58] sm:$0xff]
        %v3711 = vld [vmem:[#allocation2 + $0x60] sm:$0xff]
        %v3712 = vld [vmem:[#allocation2 + $0x68] sm:$0xff]
        %v3713 = vld [vmem:[#allocation2 + $0x70] sm:$0xff]
        %v3714 = vld [vmem:[#allocation2 + $0x78] sm:$0xff]
        %v3715 = vld [vmem:[%s1] sm:$0xf]
        %v3716 = vld [vmem:[%s1 + $0x4] sm:$0xf]
        %v3717 = vld [vmem:[%s1 + $0x8] sm:$0xf]
        %v3718 = vld [vmem:[%s1 + $0xc] sm:$0xf]
        %v3719 = vld [vmem:[%s1 + $0x10] sm:$0xf]
        %v3720 = vld [vmem:[%s1 + $0x14] sm:$0xf]
        %v3721 = vld [vmem:[%s1 + $0x18] sm:$0xf]
        %v3722 = vld [vmem:[%s1 + $0x1c] sm:$0xf]
        %v3723 = vld [vmem:[%s1 + $0x20] sm:$0xf]
        %v3724 = vld [vmem:[%s1 + $0x24] sm:$0xf]
        %v3725 = vld [vmem:[%s1 + $0x28] sm:$0xf]
        %v3726 = vld [vmem:[%s1 + $0x2c] sm:$0xf]
        %v3727 = vld [vmem:[%s1 + $0x30] sm:$0xf]
        %v3728 = vld [vmem:[%s1 + $0x34] sm:$0x3]
        %v3729 = vld [vmem:[%s2] sm:$0x1]
        %v3731 = vlaneseq
        %v3732 = vshrl.u32 %v3731, 7
        %v3733 = vsub.s32 0, %v3732
        %v3734 = vrot.slane %v3729, %v3733
        %v3750 = vunpack.c.l.b16 %v3715
        %v3751 = vunpack.c.l.b16 %v3716
        %v3752 = vunpack.c.l.b16 %v3717
        %v3753 = vunpack.c.l.b16 %v3718
        %v3754 = vunpack.c.l.b16 %v3719
        %v3755 = vunpack.c.l.b16 %v3720
        %v3756 = vunpack.c.l.b16 %v3721
        %v3757 = vunpack.c.l.b16 %v3722
        %v3758 = vunpack.c.l.b16 %v3723
        %v3759 = vunpack.c.l.b16 %v3724
        %v3760 = vunpack.c.l.b16 %v3725
        %v3761 = vunpack.c.l.b16 %v3726
        %v3762 = vunpack.c.l.b16 %v3727
        %v3763 = vunpack.c.l.b16 %v3728
        %v3764 = vpack.c.b16 %v3751, %v3750
        %v3765 = vpack.c.b16 %v3753, %v3752
        %v3766 = vpack.c.b16 %v3755, %v3754
        %v3767 = vpack.c.b16 %v3757, %v3756
        %v3768 = vpack.c.b16 %v3759, %v3758
        %v3769 = vpack.c.b16 %v3761, %v3760
        %v3770 = vpack.c.b16 %v3763, %v3762
        %vm3777 = vcmask 883712
        %v3779 = vsel %vm3777, %v3699, 0
        %v3782 = vsel %vm3777, %v3700, 0
        %v3785 = vsel %vm3777, %v3701, 0
        %v3788 = vsel %vm3777, %v3702, 0
        %v3791 = vsel %vm3777, %v3703, 0
        %v3794 = vsel %vm3777, %v3704, 0
        %v3797 = vsel %vm3777, %v3705, 0
        %v3800 = vsel %vm3777, %v3706, 0
        %v3803 = vsel %vm3777, %v3707, 0
        %v3806 = vsel %vm3777, %v3708, 0
        %v3809 = vsel %vm3777, %v3709, 0
        %v3812 = vsel %vm3777, %v3710, 0
        %v3815 = vsel %vm3777, %v3711, 0
        %v3818 = vsel %vm3777, %v3712, 0
        %v3821 = vsel %vm3777, %v3713, 0
        %v3824 = vsel %vm3777, %v3714, 0
        %vm3826 = vcmask 1045504
        %v3828 = vsel %vm3826, %v3770, 0
        %3830 = vmatprep.subr.bf16.mxu0 0
        %3831 = vmatpush1.bf16.msra.mxu0 %v3764
        %3832 = vmatprep.subr.bf16.mxu0 0
        %3833 = vmatpush1.bf16.msra.mxu0 %v3765
        %3834 = vmatprep.subr.bf16.mxu0 0
        %3835 = vmatpush1.bf16.msra.mxu0 %v3766
        %3836 = vmatprep.subr.bf16.mxu0 0
        %3837 = vmatpush1.bf16.msra.mxu0 %v3767
        %3838 = vmatprep.subr.bf16.mxu0 0
        %3839 = vmatpush1.bf16.msra.mxu0 %v3768
        %3840 = vmatprep.subr.bf16.mxu0 0
        %3841 = vmatpush1.bf16.msra.mxu0 %v3769
        %3842 = vmatprep.subr.bf16.mxu0 0
        %3843 = vmatpush1.bf16.msra.mxu0 %v3828
        %3844 = vmatprep.subr.bf16.mxu0 0
        %3845 = vmatpush1.bf16.msra.mxu0 0
        %3846 = vmatprep.subr.bf16.mxu0 0
        %3847 = vmatpush1.bf16.msra.mxu0 0
        %3848 = vmatprep.subr.bf16.mxu0 0
        %3849 = vmatpush1.bf16.msra.mxu0 0
        %3850 = vmatprep.subr.bf16.mxu0 0
        %3851 = vmatpush1.bf16.msra.mxu0 0
        %3852 = vmatprep.subr.bf16.mxu0 0
        %3853 = vmatpush1.bf16.msra.mxu0 0
        %3854 = vmatprep.subr.bf16.mxu0 0
        %3855 = vmatpush1.bf16.msra.mxu0 0
        %3856 = vmatprep.subr.bf16.mxu0 0
        %3857 = vmatpush1.bf16.msra.mxu0 0
        %3858 = vmatprep.subr.bf16.mxu0 0
        %3859 = vmatpush1.bf16.msra.mxu0 0
        %3860 = vmatprep.subr.bf16.mxu0 0
        %3861 = vmatpush1.bf16.msra.mxu0 0
        %3862 = vmatprep.mubr.bf16.mxu0 0
        %3863 = vmatmul.mubr.bf16.gmra.mrb[0].mxu0 %v3779
        %v3864 = vpop.f32.mrb[0].mxu0
        %v3865 = vadd.f32 %v3734, %v3864
        %v3866 = vpop.f32.mrb[0].mxu0
        %v3867 = vpop.f32.mrb[0].mxu0
        %v3868 = vadd.f32 %v3734, %v3867
        %v3869 = vpop.f32.mrb[0].mxu0
        %3870 = vmatprep.mubr.bf16.mxu0 0
        %3871 = vmatmul.mubr.bf16.gmra.mrb[0].mxu0 %v3782
        %v3872 = vpop.f32.mrb[0].mxu0
        %v3873 = vadd.f32 %v3734, %v3872
        %v3874 = vpop.f32.mrb[0].mxu0
        %v3875 = vpop.f32.mrb[0].mxu0
        %v3876 = vadd.f32 %v3734, %v3875
        %v3877 = vpop.f32.mrb[0].mxu0
        %3878 = vmatprep.mubr.bf16.mxu0 0
        %3879 = vmatmul.mubr.bf16.gmra.mrb[0].mxu0 %v3785
        %v3880 = vpop.f32.mrb[0].mxu0
        %v3881 = vadd.f32 %v3734, %v3880
        %v3882 = vpop.f32.mrb[0].mxu0
        %v3883 = vpop.f32.mrb[0].mxu0
        %v3884 = vadd.f32 %v3734, %v3883
        %v3885 = vpop.f32.mrb[0].mxu0
        %3886 = vmatprep.mubr.bf16.mxu0 0
        %3887 = vmatmul.mubr.bf16.gmra.mrb[0].mxu0 %v3788
        %v3888 = vpop.f32.mrb[0].mxu0
        %v3889 = vadd.f32 %v3734, %v3888
        %v3890 = vpop.f32.mrb[0].mxu0
        %v3891 = vpop.f32.mrb[0].mxu0
        %v3892 = vadd.f32 %v3734, %v3891
        %v3893 = vpop.f32.mrb[0].mxu0
        %3894 = vmatprep.mubr.bf16.mxu0 0
        %3895 = vmatmul.mubr.bf16.gmra.mrb[0].mxu0 %v3791
        %v3896 = vpop.f32.mrb[0].mxu0
        %v3897 = vadd.f32 %v3734, %v3896
        %v3898 = vpop.f32.mrb[0].mxu0
        %v3899 = vpop.f32.mrb[0].mxu0
        %v3900 = vadd.f32 %v3734, %v3899
        %v3901 = vpop.f32.mrb[0].mxu0
        %3902 = vmatprep.mubr.bf16.mxu0 0
        %3903 = vmatmul.mubr.bf16.gmra.mrb[0].mxu0 %v3794
        %v3904 = vpop.f32.mrb[0].mxu0
        %v3905 = vadd.f32 %v3734, %v3904
        %v3906 = vpop.f32.mrb[0].mxu0
        %v3907 = vpop.f32.mrb[0].mxu0
        %v3908 = vadd.f32 %v3734, %v3907
        %v3909 = vpop.f32.mrb[0].mxu0
        %3910 = vmatprep.mubr.bf16.mxu0 0
        %3911 = vmatmul.mubr.bf16.gmra.mrb[0].mxu0 %v3797
        %v3912 = vpop.f32.mrb[0].mxu0
        %v3913 = vadd.f32 %v3734, %v3912
        %v3914 = vpop.f32.mrb[0].mxu0
        %v3915 = vpop.f32.mrb[0].mxu0
        %v3916 = vadd.f32 %v3734, %v3915
        %v3917 = vpop.f32.mrb[0].mxu0
        %3918 = vmatprep.mubr.bf16.mxu0 0
        %3919 = vmatmul.mubr.bf16.gmra.mrb[0].mxu0 %v3800
        %v3920 = vpop.f32.mrb[0].mxu0
        %v3921 = vadd.f32 %v3734, %v3920
        %v3922 = vpop.f32.mrb[0].mxu0
        %v3923 = vpop.f32.mrb[0].mxu0
        %v3924 = vadd.f32 %v3734, %v3923
        %v3925 = vpop.f32.mrb[0].mxu0
        %3926 = vmatprep.mubr.bf16.mxu0 0
        %3927 = vmatmul.mubr.bf16.gmra.mrb[0].mxu0 %v3803
        %v3928 = vpop.f32.mrb[0].mxu0
        %v3929 = vadd.f32 %v3734, %v3928
        %v3930 = vpop.f32.mrb[0].mxu0
        %v3931 = vpop.f32.mrb[0].mxu0
        %v3932 = vadd.f32 %v3734, %v3931
        %v3933 = vpop.f32.mrb[0].mxu0
        %3934 = vmatprep.mubr.bf16.mxu0 0
        %3935 = vmatmul.mubr.bf16.gmra.mrb[0].mxu0 %v3806
        %v3936 = vpop.f32.mrb[0].mxu0
        %v3937 = vadd.f32 %v3734, %v3936
        %v3938 = vpop.f32.mrb[0].mxu0
        %v3939 = vpop.f32.mrb[0].mxu0
        %v3940 = vadd.f32 %v3734, %v3939
        %v3941 = vpop.f32.mrb[0].mxu0
        %3942 = vmatprep.mubr.bf16.mxu0 0
        %3943 = vmatmul.mubr.bf16.gmra.mrb[0].mxu0 %v3809
        %v3944 = vpop.f32.mrb[0].mxu0
        %v3945 = vadd.f32 %v3734, %v3944
        %v3946 = vpop.f32.mrb[0].mxu0
        %v3947 = vpop.f32.mrb[0].mxu0
        %v3948 = vadd.f32 %v3734, %v3947
        %v3949 = vpop.f32.mrb[0].mxu0
        %3950 = vmatprep.mubr.bf16.mxu0 0
        %3951 = vmatmul.mubr.bf16.gmra.mrb[0].mxu0 %v3812
        %v3952 = vpop.f32.mrb[0].mxu0
        %v3953 = vadd.f32 %v3734, %v3952
        %v3954 = vpop.f32.mrb[0].mxu0
        %v3955 = vpop.f32.mrb[0].mxu0
        %v3956 = vadd.f32 %v3734, %v3955
        %v3957 = vpop.f32.mrb[0].mxu0
        %3958 = vmatprep.mubr.bf16.mxu0 0
        %3959 = vmatmul.mubr.bf16.gmra.mrb[0].mxu0 %v3815
        %v3960 = vpop.f32.mrb[0].mxu0
        %v3961 = vadd.f32 %v3734, %v3960
        %v3962 = vpop.f32.mrb[0].mxu0
        %v3963 = vpop.f32.mrb[0].mxu0
        %v3964 = vadd.f32 %v3734, %v3963
        %v3965 = vpop.f32.mrb[0].mxu0
        %3966 = vmatprep.mubr.bf16.mxu0 0
        %3967 = vmatmul.mubr.bf16.gmra.mrb[0].mxu0 %v3818
        %v3968 = vpop.f32.mrb[0].mxu0
        %v3969 = vadd.f32 %v3734, %v3968
        %v3970 = vpop.f32.mrb[0].mxu0
        %v3971 = vpop.f32.mrb[0].mxu0
        %v3972 = vadd.f32 %v3734, %v3971
        %v3973 = vpop.f32.mrb[0].mxu0
        %3974 = vmatprep.mubr.bf16.mxu0 0
        %3975 = vmatmul.mubr.bf16.gmra.mrb[0].mxu0 %v3821
        %v3976 = vpop.f32.mrb[0].mxu0
        %v3977 = vadd.f32 %v3734, %v3976
        %v3978 = vpop.f32.mrb[0].mxu0
        %v3979 = vpop.f32.mrb[0].mxu0
        %v3980 = vadd.f32 %v3734, %v3979
        %v3981 = vpop.f32.mrb[0].mxu0
        %3982 = vmatprep.mubr.bf16.mxu0 0
        %3983 = vmatmul.mubr.bf16.gmra.mrb[0].mxu0 %v3824
        %v3984 = vpop.f32.mrb[0].mxu0
        %v3985 = vadd.f32 %v3734, %v3984
        %v3986 = vpop.f32.mrb[0].mxu0
        %v3987 = vpop.f32.mrb[0].mxu0
        %v3988 = vadd.f32 %v3734, %v3987
        %v3989 = vpop.f32.mrb[0].mxu0
        %3990 = vdwg.mxu0
        %vm3991 = vcmask 64512
        %3992 = vst.msk [vmem:[%s239] sm:$0xff] %vm3991, %v3865
        %3993 = vst.msk [vmem:[%s239 + $0x8] sm:$0xff] %vm3991, %v3868
        %3994 = vst.msk [vmem:[%s239 + $0x10] sm:$0xff] %vm3991, %v3873
        %3995 = vst.msk [vmem:[%s239 + $0x18] sm:$0xff] %vm3991, %v3876
        %3996 = vst.msk [vmem:[%s239 + $0x20] sm:$0xff] %vm3991, %v3881
        %3997 = vst.msk [vmem:[%s239 + $0x28] sm:$0xff] %vm3991, %v3884
        %3998 = vst.msk [vmem:[%s239 + $0x30] sm:$0xff] %vm3991, %v3889
        %3999 = vst.msk [vmem:[%s239 + $0x38] sm:$0xff] %vm3991, %v3892
        %4000 = vst.msk [vmem:[%s239 + $0x40] sm:$0xff] %vm3991, %v3897
        %4001 = vst.msk [vmem:[%s239 + $0x48] sm:$0xff] %vm3991, %v3900
        %4002 = vst.msk [vmem:[%s239 + $0x50] sm:$0xff] %vm3991, %v3905
        %4003 = vst.msk [vmem:[%s239 + $0x58] sm:$0xff] %vm3991, %v3908
        %4004 = vst.msk [vmem:[%s239 + $0x60] sm:$0xff] %vm3991, %v3913
        %4005 = vst.msk [vmem:[%s239 + $0x68] sm:$0xff] %vm3991, %v3916
        %4006 = vst.msk [vmem:[%s239 + $0x70] sm:$0xff] %vm3991, %v3921
        %4007 = vst.msk [vmem:[%s239 + $0x78] sm:$0xff] %vm3991, %v3924
        %4008 = vst.msk [vmem:[%s239 + $0x80] sm:$0xff] %vm3991, %v3929
        %4009 = vst.msk [vmem:[%s239 + $0x88] sm:$0xff] %vm3991, %v3932
        %4010 = vst.msk [vmem:[%s239 + $0x90] sm:$0xff] %vm3991, %v3937
        %4011 = vst.msk [vmem:[%s239 + $0x98] sm:$0xff] %vm3991, %v3940
        %4012 = vst.msk [vmem:[%s239 + $0xa0] sm:$0xff] %vm3991, %v3945
        %4013 = vst.msk [vmem:[%s239 + $0xa8] sm:$0xff] %vm3991, %v3948
        %4014 = vst.msk [vmem:[%s239 + $0xb0] sm:$0xff] %vm3991, %v3953
        %4015 = vst.msk [vmem:[%s239 + $0xb8] sm:$0xff] %vm3991, %v3956
        %4016 = vst.msk [vmem:[%s239 + $0xc0] sm:$0xff] %vm3991, %v3961
        %4017 = vst.msk [vmem:[%s239 + $0xc8] sm:$0xff] %vm3991, %v3964
        %4018 = vst.msk [vmem:[%s239 + $0xd0] sm:$0xff] %vm3991, %v3969
        %4019 = vst.msk [vmem:[%s239 + $0xd8] sm:$0xff] %vm3991, %v3972
        %4020 = vst.msk [vmem:[%s239 + $0xe0] sm:$0xff] %vm3991, %v3977
        %4021 = vst.msk [vmem:[%s239 + $0xe8] sm:$0xff] %vm3991, %v3980
        %4022 = vst.msk [vmem:[%s239 + $0xf0] sm:$0xff] %vm3991, %v3985
        %4023 = vst.msk [vmem:[%s239 + $0xf8] sm:$0xff] %vm3991, %v3988
        %v4024 = vsel %vm3991, %v3865, 0.0
        %v4025 = vsel %vm3991, %v3868, 0.0
        %v4026 = vadd.f32 %v4024, %v4025
        %v4027 = vsel %vm3991, %v3873, 0.0
        %v4028 = vadd.f32 %v4026, %v4027
        %v4029 = vsel %vm3991, %v3876, 0.0
        %v4030 = vadd.f32 %v4028, %v4029
        %v4031 = vsel %vm3991, %v3881, 0.0
        %v4032 = vadd.f32 %v4030, %v4031
        %v4033 = vsel %vm3991, %v3884, 0.0
        %v4034 = vadd.f32 %v4032, %v4033
        %v4035 = vsel %vm3991, %v3889, 0.0
        %v4036 = vadd.f32 %v4034, %v4035
        %v4037 = vsel %vm3991, %v3892, 0.0
        %v4038 = vadd.f32 %v4036, %v4037
        %v4039 = vsel %vm3991, %v3897, 0.0
        %v4040 = vadd.f32 %v4038, %v4039
        %v4041 = vsel %vm3991, %v3900, 0.0
        %v4042 = vadd.f32 %v4040, %v4041
        %v4043 = vsel %vm3991, %v3905, 0.0
        %v4044 = vadd.f32 %v4042, %v4043
        %v4045 = vsel %vm3991, %v3908, 0.0
        %v4046 = vadd.f32 %v4044, %v4045
        %v4047 = vsel %vm3991, %v3913, 0.0
        %v4048 = vadd.f32 %v4046, %v4047
        %v4049 = vsel %vm3991, %v3916, 0.0
        %v4050 = vadd.f32 %v4048, %v4049
        %v4051 = vsel %vm3991, %v3921, 0.0
        %v4052 = vadd.f32 %v4050, %v4051
        %v4053 = vsel %vm3991, %v3924, 0.0
        %v4054 = vadd.f32 %v4052, %v4053
        %v4055 = vsel %vm3991, %v3929, 0.0
        %v4056 = vadd.f32 %v4054, %v4055
        %v4057 = vsel %vm3991, %v3932, 0.0
        %v4058 = vadd.f32 %v4056, %v4057
        %v4059 = vsel %vm3991, %v3937, 0.0
        %v4060 = vadd.f32 %v4058, %v4059
        %v4061 = vsel %vm3991, %v3940, 0.0
        %v4062 = vadd.f32 %v4060, %v4061
        %v4063 = vsel %vm3991, %v3945, 0.0
        %v4064 = vadd.f32 %v4062, %v4063
        %v4065 = vsel %vm3991, %v3948, 0.0
        %v4066 = vadd.f32 %v4064, %v4065
        %v4067 = vsel %vm3991, %v3953, 0.0
        %v4068 = vadd.f32 %v4066, %v4067
        %v4069 = vsel %vm3991, %v3956, 0.0
        %v4070 = vadd.f32 %v4068, %v4069
        %v4071 = vsel %vm3991, %v3961, 0.0
        %v4072 = vadd.f32 %v4070, %v4071
        %v4073 = vsel %vm3991, %v3964, 0.0
        %v4074 = vadd.f32 %v4072, %v4073
        %v4075 = vsel %vm3991, %v3969, 0.0
        %v4076 = vadd.f32 %v4074, %v4075
        %v4077 = vsel %vm3991, %v3972, 0.0
        %v4078 = vadd.f32 %v4076, %v4077
        %v4079 = vsel %vm3991, %v3977, 0.0
        %v4080 = vadd.f32 %v4078, %v4079
        %v4081 = vsel %vm3991, %v3980, 0.0
        %v4082 = vadd.f32 %v4080, %v4081
        %v4083 = vsel %vm3991, %v3985, 0.0
        %v4084 = vadd.f32 %v4082, %v4083
        %v4085 = vsel %vm3991, %v3988, 0.0
        %v4086 = vadd.f32 %v4084, %v4085
        %v4087 = vrot.slane %v4086, 4
        %v4088 = vadd.f32 %v4086, %v4087
        %v4089 = vrot.slane %v4088, 2
        %v4090 = vadd.f32 %v4088, %v4089
        %v4091 = vrot.slane %v4090, 1
        %v4092 = vadd.f32 %v4090, %v4091
        %vm4093 = vcmask 57344
        %4094 = vst.msk [vmem:[%s245] sm:$0x1] %vm4093, %v4092
        %v4095 = vmul.f32 %v3865, %v3865
        %v4096 = vmul.f32 %v3868, %v3868
        %v4097 = vmul.f32 %v3873, %v3873
        %v4098 = vmul.f32 %v3876, %v3876
        %v4099 = vmul.f32 %v3881, %v3881
        %v4100 = vmul.f32 %v3884, %v3884
        %v4101 = vmul.f32 %v3889, %v3889
        %v4102 = vmul.f32 %v3892, %v3892
        %v4103 = vmul.f32 %v3897, %v3897
        %v4104 = vmul.f32 %v3900, %v3900
        %v4105 = vmul.f32 %v3905, %v3905
        %v4106 = vmul.f32 %v3908, %v3908
        %v4107 = vmul.f32 %v3913, %v3913
        %v4108 = vmul.f32 %v3916, %v3916
        %v4109 = vmul.f32 %v3921, %v3921
        %v4110 = vmul.f32 %v3924, %v3924
        %v4111 = vmul.f32 %v3929, %v3929
        %v4112 = vmul.f32 %v3932, %v3932
        %v4113 = vmul.f32 %v3937, %v3937
        %v4114 = vmul.f32 %v3940, %v3940
        %v4115 = vmul.f32 %v3945, %v3945
        %v4116 = vmul.f32 %v3948, %v3948
        %v4117 = vmul.f32 %v3953, %v3953
        %v4118 = vmul.f32 %v3956, %v3956
        %v4119 = vmul.f32 %v3961, %v3961
        %v4120 = vmul.f32 %v3964, %v3964
        %v4121 = vmul.f32 %v3969, %v3969
        %v4122 = vmul.f32 %v3972, %v3972
        %v4123 = vmul.f32 %v3977, %v3977
        %v4124 = vmul.f32 %v3980, %v3980
        %v4125 = vmul.f32 %v3985, %v3985
        %v4126 = vmul.f32 %v3988, %v3988
        %v4127 = vsel %vm3991, %v4095, 0.0
        %v4128 = vsel %vm3991, %v4096, 0.0
        %v4129 = vadd.f32 %v4127, %v4128
        %v4130 = vsel %vm3991, %v4097, 0.0
        %v4131 = vadd.f32 %v4129, %v4130
        %v4132 = vsel %vm3991, %v4098, 0.0
        %v4133 = vadd.f32 %v4131, %v4132
        %v4134 = vsel %vm3991, %v4099, 0.0
        %v4135 = vadd.f32 %v4133, %v4134
        %v4136 = vsel %vm3991, %v4100, 0.0
        %v4137 = vadd.f32 %v4135, %v4136
        %v4138 = vsel %vm3991, %v4101, 0.0
        %v4139 = vadd.f32 %v4137, %v4138
        %v4140 = vsel %vm3991, %v4102, 0.0
        %v4141 = vadd.f32 %v4139, %v4140
        %v4142 = vsel %vm3991, %v4103, 0.0
        %v4143 = vadd.f32 %v4141, %v4142
        %v4144 = vsel %vm3991, %v4104, 0.0
        %v4145 = vadd.f32 %v4143, %v4144
        %v4146 = vsel %vm3991, %v4105, 0.0
        %v4147 = vadd.f32 %v4145, %v4146
        %v4148 = vsel %vm3991, %v4106, 0.0
        %v4149 = vadd.f32 %v4147, %v4148
        %v4150 = vsel %vm3991, %v4107, 0.0
        %v4151 = vadd.f32 %v4149, %v4150
        %v4152 = vsel %vm3991, %v4108, 0.0
        %v4153 = vadd.f32 %v4151, %v4152
        %v4154 = vsel %vm3991, %v4109, 0.0
        %v4155 = vadd.f32 %v4153, %v4154
        %v4156 = vsel %vm3991, %v4110, 0.0
        %v4157 = vadd.f32 %v4155, %v4156
        %v4158 = vsel %vm3991, %v4111, 0.0
        %v4159 = vadd.f32 %v4157, %v4158
        %v4160 = vsel %vm3991, %v4112, 0.0
        %v4161 = vadd.f32 %v4159, %v4160
        %v4162 = vsel %vm3991, %v4113, 0.0
        %v4163 = vadd.f32 %v4161, %v4162
        %v4164 = vsel %vm3991, %v4114, 0.0
        %v4165 = vadd.f32 %v4163, %v4164
        %v4166 = vsel %vm3991, %v4115, 0.0
        %v4167 = vadd.f32 %v4165, %v4166
        %v4168 = vsel %vm3991, %v4116, 0.0
        %v4169 = vadd.f32 %v4167, %v4168
        %v4170 = vsel %vm3991, %v4117, 0.0
        %v4171 = vadd.f32 %v4169, %v4170
        %v4172 = vsel %vm3991, %v4118, 0.0
        %v4173 = vadd.f32 %v4171, %v4172
        %v4174 = vsel %vm3991, %v4119, 0.0
        %v4175 = vadd.f32 %v4173, %v4174
        %v4176 = vsel %vm3991, %v4120, 0.0
        %v4177 = vadd.f32 %v4175, %v4176
        %v4178 = vsel %vm3991, %v4121, 0.0
        %v4179 = vadd.f32 %v4177, %v4178
        %v4180 = vsel %vm3991, %v4122, 0.0
        %v4181 = vadd.f32 %v4179, %v4180
        %v4182 = vsel %vm3991, %v4123, 0.0
        %v4183 = vadd.f32 %v4181, %v4182
        %v4184 = vsel %vm3991, %v4124, 0.0
        %v4185 = vadd.f32 %v4183, %v4184
        %v4186 = vsel %vm3991, %v4125, 0.0
        %v4187 = vadd.f32 %v4185, %v4186
        %v4188 = vsel %vm3991, %v4126, 0.0
        %v4189 = vadd.f32 %v4187, %v4188
        %v4190 = vrot.slane %v4189, 4
        %v4191 = vadd.f32 %v4189, %v4190
        %v4192 = vrot.slane %v4191, 2
        %v4193 = vadd.f32 %v4191, %v4192
        %v4194 = vrot.slane %v4193, 1
        %v4195 = vadd.f32 %v4193, %v4194
        %4196 = vst.msk [vmem:[%s251] sm:$0x1] %vm4093, %v4195
        %s4197 = sand.u32 %s113, 1
        %s4198 = scalar_lea.sflag [#allocation4], %s4197
        %s4199 = sand.u32 %s113, 1
        %s4200 = smul.addr %s4199, 256
        %s4201 = scalar_lea.vmem [#allocation3], %s4200
        %s4202 = sand.u32 %s23, 1
        %s4203 = scalar_lea.sflag [#allocation6], %s4202
        %s4204 = sand.u32 %s141, 1
        %s4205 = scalar_lea.vmem [#allocation5], %s4204
        %s4206 = sand.u32 %s23, 1
        %s4207 = scalar_lea.sflag [#allocation6], %s4206
        %s4208 = sand.u32 %s169, 1
        %s4209 = scalar_lea.vmem [#allocation7], %s4208
        // Predicated region
        $region33: #{tpu_custom_call.1} parent=31 // pred_check
          %p4210 = pneg %p123
        $region34: #{tpu_custom_call.1} parent=31 // pred_check_branch
          %4212 = sbr.rel (%p4210) target = $region36
        $region35: #{tpu_custom_call.1} parent=31 // pred_region
          %s4213 = smul.u32 4, %s28
          %s4215 = ssub.s32 4096, 4096
          %4216 = vsyncadd %s4198, %s4215
          %s4217 = smul.addr %s4213, 8
          %s4218 = smul.addr %s27, 64
          %s4219 = sadd.s32 %s4217, %s4218
          %s4220 = smul.addr %s4219, 128
          %s4221 = scalar_lea.hbm %s3, %s4220
          %s4222 = sshll.u32 %s4201, 4
          %s4223 = int_to_ptr.vmem [resolvable:$true] %s4222
          %4228 = dma.vmem_to_hbm [thread:$0]  %s4223, 4096, %s4221, %s4198, 128, 128, 8
        $region36: #{tpu_custom_call.1} parent=31 // pred_fallthru
          _
        // Predicated region
        $region37: #{tpu_custom_call.1} parent=31 // pred_check
          %p4229 = pneg %p151
        $region38: #{tpu_custom_call.1} parent=31 // pred_check_branch
          %4231 = sbr.rel (%p4229) target = $region40
        $region39: #{tpu_custom_call.1} parent=31 // pred_region
          %s4233 = ssub.s32 16, 16
          %4234 = vsyncadd %s4203, %s4233
          %s4235 = smul.addr %s27, 2
          %s4236 = sadd.s32 %s28, %s4235
          %s4237 = smul.addr %s4236, 16
          %s4238 = scalar_lea.hbm %s4, %s4237
          %s4240 = sshll.u32 %s4205, 4
          %s4241 = int_to_ptr.vmem [resolvable:$true] %s4240
          %4243 = dma.vmem_to_hbm [thread:$0]  %s4241, 16, %s4238, %s4203
        $region40: #{tpu_custom_call.1} parent=31 // pred_fallthru
          _
        // Predicated region
        $region41: #{tpu_custom_call.1} parent=31 // pred_check
          %p4244 = pneg %p179
        $region42: #{tpu_custom_call.1} parent=31 // pred_check_branch
          %4246 = sbr.rel (%p4244) target = $region44
        $region43: #{tpu_custom_call.1} parent=31 // pred_region
          %s4248 = ssub.s32 16, 16
          %4249 = vsyncadd %s4207, %s4248
          %s4250 = smul.addr %s27, 2
          %s4251 = sadd.s32 %s28, %s4250
          %s4252 = smul.addr %s4251, 16
          %s4253 = scalar_lea.hbm %s5, %s4252
          %s4255 = sshll.u32 %s4209, 4
          %s4256 = int_to_ptr.vmem [resolvable:$true] %s4255
          %4258 = dma.vmem_to_hbm [thread:$0]  %s4256, 16, %s4253, %s4207
        $region44: #{tpu_custom_call.1} parent=31 // pred_fallthru
          _
      $region32: #{tpu_custom_call.1} parent=5 // pred_fallthru
        _
      %p4259 = scmp.le.s32.totalorder 2, %s18
      // Predicated region
      $region45: #{tpu_custom_call.1} parent=5 // pred_check
        %p4260 = pneg %p4259
      $region46: #{tpu_custom_call.1} parent=5 // pred_check_branch
        %4262 = sbr.rel (%p4260) target = $region48
      $region47: #{tpu_custom_call.1} parent=5 // pred_region
        %s4263 = ssub.s32 %s18, 2
        // Predicated region
        $region49: #{tpu_custom_call.1} parent=47 // pred_check
          %p4264 = pneg %p129
        $region50: #{tpu_custom_call.1} parent=47 // pred_check_branch
          %4266 = sbr.rel (%p4264) target = $region52
        $region51: #{tpu_custom_call.1} parent=47 // pred_region
          %s4267 = sand.u32 %s114, 1
          %s4268 = scalar_lea.sflag [#allocation4], %s4267
          %s4269 = sand.u32 %s114, 1
          %s4270 = smul.addr %s4269, 256
          %s4271 = scalar_lea.vmem [#allocation3], %s4270
          %4272 = dma.done %s4268, 4096
        $region52: #{tpu_custom_call.1} parent=47 // pred_fallthru
          _
        // Predicated region
        $region53: #{tpu_custom_call.1} parent=47 // pred_check
          %p4273 = pneg %p157
        $region54: #{tpu_custom_call.1} parent=47 // pred_check_branch
          %4275 = sbr.rel (%p4273) target = $region56
        $region55: #{tpu_custom_call.1} parent=47 // pred_region
          %s4276 = sand.u32 %s24, 1
          %s4277 = scalar_lea.sflag [#allocation6], %s4276
          %s4278 = sand.u32 %s142, 1
          %s4279 = scalar_lea.vmem [#allocation5], %s4278
          %4280 = dma.done %s4277, 16
        $region56: #{tpu_custom_call.1} parent=47 // pred_fallthru
          _
        // Predicated region
        $region57: #{tpu_custom_call.1} parent=47 // pred_check
          %p4281 = pneg %p185
        $region58: #{tpu_custom_call.1} parent=47 // pred_check_branch
          %4283 = sbr.rel (%p4281) target = $region60
        $region59: #{tpu_custom_call.1} parent=47 // pred_region
          %s4284 = sand.u32 %s24, 1
          %s4285 = scalar_lea.sflag [#allocation6], %s4284
          %s4286 = sand.u32 %s170, 1
          %s4287 = scalar_lea.vmem [#allocation7], %s4286
          %4288 = dma.done %s4285, 16
        $region60: #{tpu_custom_call.1} parent=47 // pred_fallthru
          _
      $region48: #{tpu_custom_call.1} parent=5 // pred_fallthru
        _
    $region6: #{tpu_custom_call.1} parent=1 // loop_footer
      %s22 = sadd.s32 1, %s18
    $region7: #{tpu_custom_call.1} parent=1 // loop_footer_branch
      %17 = sbr.rel target = $region3
    $region8: #{tpu_custom_call.1} parent=1 // loop_exit
      _
    %4289 = vsyncpa [#allocation4], 1
    %s4290 = scalar_lea.sflag [#allocation4], 1
    %4291 = vsyncpa %s4290, 1
    %4292 = vsyncpa [#allocation6], 1
    %s4293 = scalar_lea.sflag [#allocation6], 1
    %4294 = vsyncpa %s4293, 1

</llo_original>
